<compile_context>
chip_gen: v6e
topology: v6e:2x2x1
jax: 0.10.0
libtpu: 0.0.40
codegen_flags: <defaults>
</compile_context>

<pallas_src>
import functools

import jax
import jax.numpy as jnp
from jax import lax
from jax.experimental import pallas as pl
from jax.experimental.pallas import tpu as pltpu

_LN_EPS = 1e-6                    # nn.LayerNorm(..., eps=1e-06)


def _vmem_limit():
    """Per-generation scoped-VMEM budget (~80% of physical, capped)."""
    try:
        cap = int(pltpu.get_tpu_info().vmem_capacity_bytes)
        if cap >= 32 * 1024 * 1024:
            return min(int(cap * 0.8), 112 * 1024 * 1024)
    except Exception:
        pass
    return 64 * 1024 * 1024


_VMEM_LIMIT = _vmem_limit()


def _cp(semantics):
    return pltpu.CompilerParams(dimension_semantics=semantics,
                                vmem_limit_bytes=_VMEM_LIMIT)


def _row_tile(m):
    """Largest row tile (>=128 preferred, multiple of 8) that divides m."""
    for t in (512, 256, 128, 64, 32, 16, 8):
        if t <= m and m % t == 0:
            return t
    return m


def _ff_tile(f):
    """d_ff reduction tile: multiple of 128 that divides f, else the full dim."""
    for t in (2048, 1024, 512, 256, 128):
        if t <= f and f % t == 0:
            return t
    return f


def _ln(x, g, b, eps):
    mu = jnp.mean(x, axis=-1, keepdims=True)
    xc = x - mu
    var = jnp.mean(xc * xc, axis=-1, keepdims=True)
    return xc * lax.rsqrt(var + eps) * g + b


def _bf16_dot(a, b):
    return jnp.dot(a.astype(jnp.bfloat16), b.astype(jnp.bfloat16),
                   preferred_element_type=jnp.float32)


# ----------------------------- Pallas kernels -----------------------------

def _mlp_kernel(x_ref, w1_ref, b1_ref, w2_ref, b2_ref, a1_ref, a2_ref, o_ref,
                *, act_last):
    """y = Linear2(PReLU(Linear1(x)))  (+PReLU iff act_last); alphas in SMEM."""
    x = x_ref[...]
    w1 = w1_ref[...]                          # bf16 weights
    if x_ref.shape[-1] == 1:                  # K == 1 contraction -> VPU outer product
        u = x * w1
    else:
        u = _bf16_dot(x, w1)
    u = u + b1_ref[...]
    u = jnp.where(u >= 0.0, u, a1_ref[0] * u)
    y = _bf16_dot(u, w2_ref[...]) + b2_ref[...]
    if act_last:
        y = jnp.where(y >= 0.0, y, a2_ref[0] * y)
    o_ref[...] = y


def _ln_qkv_kernel(h_ref, g_ref, b_ref, w_ref, bqkv_ref, o_ref, *, eps):
    """qkv = LayerNorm(h) @ W_qkv + b_qkv  (merged Q,K,V; bf16 output)."""
    hn = _ln(h_ref[...], g_ref[...], b_ref[...], eps)
    o_ref[...] = (_bf16_dot(hn, w_ref[...]) + bqkv_ref[...]).astype(jnp.bfloat16)


def _phase_attn_kernel(q_ref, kT_ref, v_ref, erelT_ref, phc_ref, phr_ref, o_ref):
    """One (batch, head) per grid step.  Blocks are head-major and lane-aligned.

    Relative term uses the Shaw skew implemented with a single strided
    pltpu.roll; the cos-phase bias is computed in-kernel on the EUP.
    """
    q = q_ref[...]                                 # [T, Dh]  bf16
    kT = kT_ref[...]                               # [Dh, T]  bf16
    v = v_ref[...]                                 # [T, Dh]  bf16
    T, Dh = q.shape
    Lp = erelT_ref.shape[1]
    scale = 1.0 / (float(Dh) ** 0.5)

    content = jnp.dot(q, kT, preferred_element_type=jnp.float32)          # [T, T]
    # E_rel lives in columns [1, 2T-1] of the lane-padded [Dh, Lp] slab, so the
    # needed per-row shift (i - T mod Lp) stays strictly inside (0, Lp).
    r = jnp.dot(q, erelT_ref[...], preferred_element_type=jnp.float32)    # [T, Lp]
    rel = pltpu.roll(r, Lp - T, 1, stride=1, stride_axis=0)[:, :T]        # [T, T]

    bias = jnp.cos(phc_ref[...] - phr_ref[...])                           # [T, T]
    s = (content + rel) * scale + bias
    s = s - jnp.max(s, axis=-1, keepdims=True)
    p = jnp.exp(s)
    p = p / jnp.sum(p, axis=-1, keepdims=True)
    o_ref[...] = jnp.dot(p.astype(jnp.bfloat16), v,
                         preferred_element_type=jnp.float32).astype(jnp.bfloat16)


def _attn_out_ffn_kernel(h_ref, ctx_ref, wo_ref, bo_ref, g_ref, b_ref,
                         w1_ref, b1_ref, w2_ref, b2_ref, a1_ref,
                         o_ref, hn_ref, *, eps):
    """h1 = h + ctx @ Wo + bo ; out = h1 + W2(PReLU(W1(LN(h1)))).

    Grid axis 1 tiles d_ff ("arbitrary"); LN(h1) is cached (bf16) in VMEM
    scratch and the output block accumulates the W2 partial products.
    """
    @pl.when(pl.program_id(1) == 0)
    def _():
        h1 = h_ref[...] + _bf16_dot(ctx_ref[...], wo_ref[...]) + bo_ref[...]
        hn_ref[...] = _ln(h1, g_ref[...], b_ref[...], eps).astype(jnp.bfloat16)
        o_ref[...] = h1 + b2_ref[...]

    u = jnp.dot(hn_ref[...], w1_ref[...],
                preferred_element_type=jnp.float32) + b1_ref[...]
    u = jnp.where(u >= 0.0, u, a1_ref[0] * u)
    o_ref[...] += _bf16_dot(u, w2_ref[...])


# --------------------------- pallas_call wrappers ---------------------------

def mlp(x, p, act_last):
    M, K = x.shape
    Dh_ = p['w1'].shape[1]
    N = p['w2'].shape[1]
    tm = _row_tile(M)
    row = lambda i: (i, 0)
    const = lambda i: (0, 0)
    return pl.pallas_call(
        functools.partial(_mlp_kernel, act_last=act_last),
        out_shape=jax.ShapeDtypeStruct((M, N), jnp.float32),
        grid=(M // tm,),
        in_specs=[
            pl.BlockSpec((tm, K), row),
            pl.BlockSpec((K, Dh_), const),
            pl.BlockSpec((1, Dh_), const),
            pl.BlockSpec((Dh_, N), const),
            pl.BlockSpec((1, N), const),
            pl.BlockSpec(memory_space=pltpu.MemorySpace.SMEM),   # alpha1
            pl.BlockSpec(memory_space=pltpu.MemorySpace.SMEM),   # alpha2
        ],
        out_specs=pl.BlockSpec((tm, N), row),
        compiler_params=_cp(("parallel",)),
    )(x, p['w1'], p['b1'].reshape(1, Dh_), p['w2'], p['b2'].reshape(1, N),
      p['a1'], p['a2'])


def ln_qkv(h, gamma, beta, wqkv, bqkv):
    M, D = h.shape
    N = wqkv.shape[1]
    tm = _row_tile(M)
    row = lambda i: (i, 0)
    const = lambda i: (0, 0)
    return pl.pallas_call(
        functools.partial(_ln_qkv_kernel, eps=_LN_EPS),
        out_shape=jax.ShapeDtypeStruct((M, N), jnp.bfloat16),
        grid=(M // tm,),
        in_specs=[
            pl.BlockSpec((tm, D), row),
            pl.BlockSpec((1, D), const),
            pl.BlockSpec((1, D), const),
            pl.BlockSpec((D, N), const),
            pl.BlockSpec((1, N), const),
        ],
        out_specs=pl.BlockSpec((tm, N), row),
        compiler_params=_cp(("parallel",)),
    )(h, gamma.reshape(1, D), beta.reshape(1, D), wqkv, bqkv.reshape(1, N))


def phase_attention(qkv_2d, e_rel_T, ph_col, ph_row, *, B, T, num_heads, head_dim):
    """qkv_2d: [B*T, 3*D] bf16; e_rel_T: [Dh, Lp] bf16; ph_*: [B,H,T,1]/[B,H,1,T]."""
    D = num_heads * head_dim
    Lp = e_rel_T.shape[1]
    qkv = qkv_2d.reshape(B, T, 3, num_heads, head_dim)
    q = jnp.transpose(qkv[:, :, 0], (0, 2, 1, 3))        # [B, H, T, Dh]
    kT = jnp.transpose(qkv[:, :, 1], (0, 2, 3, 1))       # [B, H, Dh, T]
    v = jnp.transpose(qkv[:, :, 2], (0, 2, 1, 3))        # [B, H, T, Dh]

    bh = lambda b, h: (b, h, 0, 0)
    out = pl.pallas_call(
        _phase_attn_kernel,
        out_shape=jax.ShapeDtypeStruct((B, num_heads, T, head_dim), jnp.bfloat16),
        grid=(B, num_heads),
        in_specs=[
            pl.BlockSpec((None, None, T, head_dim), bh),   # q
            pl.BlockSpec((None, None, head_dim, T), bh),   # k^T
            pl.BlockSpec((None, None, T, head_dim), bh),   # v
            pl.BlockSpec((head_dim, Lp), lambda b, h: (0, 0)),
            pl.BlockSpec((None, None, T, 1), bh),          # phase (col)
            pl.BlockSpec((None, None, 1, T), bh),          # phase (row)
        ],
        out_specs=pl.BlockSpec((None, None, T, head_dim), bh),
        compiler_params=_cp(("parallel", "parallel")),
    )(q, kT, v, e_rel_T, ph_col, ph_row)
    return jnp.transpose(out, (0, 2, 1, 3)).reshape(B * T, D)   # [M, D] bf16


def attn_out_ffn(h, ctx, attn_p, ffn_p, gamma, beta):
    M, D = h.shape
    F = ffn_p['w1'].shape[1]
    tm = _row_tile(M)
    tf = _ff_tile(F)
    row = lambda i, f: (i, 0)
    const = lambda i, f: (0, 0)
    return pl.pallas_call(
        functools.partial(_attn_out_ffn_kernel, eps=_LN_EPS),
        out_shape=jax.ShapeDtypeStruct((M, D), jnp.float32),
        grid=(M // tm, F // tf),
        in_specs=[
            pl.BlockSpec((tm, D), row),                      # h (f32 residual)
            pl.BlockSpec((tm, D), row),                      # ctx (bf16)
            pl.BlockSpec((D, D), const),                     # Wo (bf16)
            pl.BlockSpec((1, D), const),                     # bo
            pl.BlockSpec((1, D), const),                     # ln gamma
            pl.BlockSpec((1, D), const),                     # ln beta
            pl.BlockSpec((D, tf), lambda i, f: (0, f)),      # W1 tile (bf16)
            pl.BlockSpec((1, tf), lambda i, f: (0, f)),      # b1 tile
            pl.BlockSpec((tf, D), lambda i, f: (f, 0)),      # W2 tile (bf16)
            pl.BlockSpec((1, D), const),                     # b2
            pl.BlockSpec(memory_space=pltpu.MemorySpace.SMEM),   # alpha1
        ],
        out_specs=pl.BlockSpec((tm, D), row),
        scratch_shapes=[pltpu.VMEM((tm, D), jnp.bfloat16)],      # LN(h1) cache
        compiler_params=_cp(("parallel", "arbitrary")),
    )(h, ctx, attn_p['wo'], attn_p['bo'].reshape(1, D),
      gamma.reshape(1, D), beta.reshape(1, D),
      ffn_p['w1'], ffn_p['b1'].reshape(1, F),
      ffn_p['w2'], ffn_p['b2'].reshape(1, D), ffn_p['a1'])


# --------------------------- parameters (glue) ----------------------------

def _init_linear(key, fan_in, fan_out):
    kw, kb = jax.random.split(key)
    lim = 1.0 / jnp.sqrt(jnp.float32(fan_in))
    w = jax.random.uniform(kw, (fan_in, fan_out), jnp.float32, -lim, lim)
    b = jax.random.uniform(kb, (fan_out,), jnp.float32, -lim, lim)
    return w, b


def _init_mlp(key, din, dh, dout):
    k1, k2 = jax.random.split(key)
    w1, b1 = _init_linear(k1, din, dh)
    w2, b2 = _init_linear(k2, dh, dout)
    return dict(w1=w1.astype(jnp.bfloat16), b1=b1,
                w2=w2.astype(jnp.bfloat16), b2=b2,
                a1=jnp.full((1,), 0.25, jnp.float32),
                a2=jnp.full((1,), 0.25, jnp.float32))


def init_params(key, dof, num_layers, num_heads, d_model, d_ff):
    assert d_model % num_heads == 0
    keys = iter(jax.random.split(key, 3 + num_layers))
    params = dict(
        encoder=_init_mlp(next(keys), dof + 1, d_model, d_model),
        rel_pos=_init_mlp(next(keys), 1, d_model, d_model // num_heads),
        ln_gamma=jnp.ones((d_model,), jnp.float32),
        ln_beta=jnp.zeros((d_model,), jnp.float32),
        decoder=_init_mlp(next(keys), d_model, d_model, dof + 4),
        layers=[],
    )
    for _ in range(num_layers):
        ka, kf = jax.random.split(next(keys))
        kq, kk, kv, ko = jax.random.split(ka, 4)
        wq, bq = _init_linear(kq, d_model, d_model)
        wk, bk = _init_linear(kk, d_model, d_model)
        wv, bv = _init_linear(kv, d_model, d_model)
        wo, bo = _init_linear(ko, d_model, d_model)
        params['layers'].append(dict(
            attn=dict(wqkv=jnp.concatenate([wq, wk, wv], 1).astype(jnp.bfloat16),
                      bqkv=jnp.concatenate([bq, bk, bv], 0),
                      wo=wo.astype(jnp.bfloat16), bo=bo),
            ffn=_init_mlp(kf, d_model, d_ff, d_model),
        ))
    return params


# ------------------------------ forward pass ------------------------------

def phase_transformer_forward(params, x, mask_in, phase, *, num_heads):
    """x: [B,T,dof]; mask_in: [B,T,1]; phase: [B,T,num_heads] (PyTorch layout)."""
    B, T, dof = x.shape
    d_model = params['ln_gamma'].shape[0]
    head_dim = d_model // num_heads
    M = B * T

    # encoder: MLP(cat([x, mask_in], -1))
    inp = jnp.concatenate([x, mask_in], -1).reshape(M, dof + 1).astype(jnp.float32)
    h = mlp(inp, params['encoder'], act_last=True)                        # [M, D] f32

    # relative positional encoding over offsets [-(T-1), T-1]; pre-transpose,
    # pre-cast to bf16 and lane-pad to Lp (>= 2T, multiple of 128).  E_rel is
    # placed at columns [1, 2T-1] so the in-kernel strided roll never needs a
    # zero/full-width rotation amount; the padded columns are never read.
    L = 2 * T - 1
    Lp = ((2 * T + 127) // 128) * 128
    rel_in = jnp.arange(-T + 1, T, dtype=jnp.float32).reshape(L, 1)
    e_rel = mlp(rel_in, params['rel_pos'], act_last=False)                # [L, Dh] f32
    e_rel_T = jnp.pad(e_rel.T.astype(jnp.bfloat16), ((0, 0), (1, Lp - 1 - L)))

    # phase arrives [B, T, H] (reference does phase.transpose(1,2)); only the
    # tiny [B,H,T] tensor crosses HBM -- cos(phase_i - phase_j) is computed
    # per-head inside the attention kernel.
    ph = jnp.transpose(phase.astype(jnp.float32), (0, 2, 1))              # [B, H, T]
    ph_col = ph[:, :, :, None]                                            # [B, H, T, 1]
    ph_row = ph[:, :, None, :]                                            # [B, H, 1, T]
    # NOTE: the reference adds an all-zero mask_atten; adding zeros is dropped.

    g, be = params['ln_gamma'], params['ln_beta']
    for layer in params['layers']:
        qkv = ln_qkv(h, g, be, layer['attn']['wqkv'], layer['attn']['bqkv'])  # [M,3D] bf16
        ctx = phase_attention(qkv, e_rel_T, ph_col, ph_row,
                              B=B, T=T, num_heads=num_heads, head_dim=head_dim)
        h = attn_out_ffn(h, ctx, layer['attn'], layer['ffn'], g, be)          # [M, D] f32

    y = mlp(h, params['decoder'], act_last=False).reshape(B, T, dof + 4)
    y_out, contacts = y[..., :dof], y[..., dof:]
    return y_out, jax.nn.sigmoid(contacts)


# ---------------------------------- main -----------------------------------

if __name__ == "__main__":
    B, T = 2, 8
    dof, num_layers, num_heads, d_model, d_ff = 4, 2, 4, 128, 256

    key = jax.random.PRNGKey(0)
    kp, kx, km, kph = jax.random.split(key, 4)
    params = init_params(kp, dof, num_layers, num_heads, d_model, d_ff)

    x = jax.random.normal(kx, (B, T, dof), jnp.float32)
    mask_in = (jax.random.uniform(km, (B, T, 1)) > 0.5).astype(jnp.float32)
    phase = jax.random.uniform(kph, (B, T, num_heads), jnp.float32) * 2.0 * jnp.pi

    fwd = jax.jit(functools.partial(phase_transformer_forward, num_heads=num_heads))
    y, contacts = fwd(params, x, mask_in, phase)
    jax.block_until_ready((y, contacts))

    assert y.shape == (B, T, dof)
    assert contacts.shape == (B, T, 4)
    assert bool(jnp.all(jnp.isfinite(y))) and bool(jnp.all(jnp.isfinite(contacts)))
    print("KERNEL_OK")
</pallas_src>

<mosaic_0001>
module attributes {stable_mosaic.version = 11 : i64} {
  func.func @_mlp_kernel(%arg0: i32, %arg1: memref<16x5xf32, #tpu.memory_space<vmem>>, %arg2: memref<5x128xbf16, #tpu.memory_space<vmem>>, %arg3: memref<1x128xf32, #tpu.memory_space<vmem>>, %arg4: memref<128x128xbf16, #tpu.memory_space<vmem>>, %arg5: memref<1x128xf32, #tpu.memory_space<vmem>>, %arg6: memref<1xf32, #tpu.memory_space<smem>>, %arg7: memref<1xf32, #tpu.memory_space<smem>>, %arg8: memref<16x128xf32, #tpu.memory_space<vmem>>) attributes {dimension_semantics = [#tpu.dimension_semantics<parallel>], iteration_bounds = array<i64: 1>, scalar_prefetch = 0 : i64, scratch_operands = 0 : i64, tpu.core_type = #tpu.core_type<tc>, window_params = [{transform_indices = @transform_0, window_bounds = array<i64: 16, 5>}, {pipeline_mode = #tpu.pipeline_mode<synchronous>, transform_indices = @transform_1, window_bounds = array<i64: 5, 128>}, {pipeline_mode = #tpu.pipeline_mode<synchronous>, transform_indices = @transform_2, window_bounds = array<i64: 1, 128>}, {pipeline_mode = #tpu.pipeline_mode<synchronous>, transform_indices = @transform_3, window_bounds = array<i64: 128, 128>}, {pipeline_mode = #tpu.pipeline_mode<synchronous>, transform_indices = @transform_4, window_bounds = array<i64: 1, 128>}, {transform_indices = @transform_5, window_bounds = array<i64: 1>}, {transform_indices = @transform_6, window_bounds = array<i64: 1>}, {transform_indices = @transform_7, window_bounds = array<i64: 16, 128>}]} {
    %c0 = arith.constant 0 : index
    %c0_0 = arith.constant 0 : index
    %0 = vector.load %arg1[%c0, %c0_0] : memref<16x5xf32, #tpu.memory_space<vmem>>, vector<16x5xf32>
    %c0_1 = arith.constant 0 : index
    %c0_2 = arith.constant 0 : index
    %1 = vector.load %arg2[%c0_1, %c0_2] : memref<5x128xbf16, #tpu.memory_space<vmem>>, vector<5x128xbf16>
    %2 = arith.truncf %0 : vector<16x5xf32> to vector<16x5xbf16>
    %cst = arith.constant dense<0.000000e+00> : vector<16x128xf32>
    %3 = tpu.matmul %2, %1, %cst {dimension_numbers = #tpu.dot_dimension_numbers<[1], [0], [0], [1], [0, 0, 1, 1], [], []>} : vector<16x5xbf16>, vector<5x128xbf16>, vector<16x128xf32> -> vector<16x128xf32>
    %c0_3 = arith.constant 0 : index
    %c0_4 = arith.constant 0 : index
    %4 = vector.load %arg3[%c0_3, %c0_4] : memref<1x128xf32, #tpu.memory_space<vmem>>, vector<1x128xf32>
    %5 = vector.broadcast %4 : vector<1x128xf32> to vector<16x128xf32>
    %6 = arith.addf %3, %5 : vector<16x128xf32>
    %cst_5 = arith.constant 0.000000e+00 : f32
    %7 = vector.broadcast %cst_5 : f32 to vector<16x128xf32>
    %8 = arith.cmpf oge, %6, %7 : vector<16x128xf32>
    %c0_6 = arith.constant 0 : index
    %9 = memref.load %arg6[%c0_6] : memref<1xf32, #tpu.memory_space<smem>>
    %10 = vector.broadcast %9 : f32 to vector<16x128xf32>
    %11 = arith.mulf %10, %6 : vector<16x128xf32>
    %12 = arith.select %8, %6, %11 : vector<16x128xi1>, vector<16x128xf32>
    %c0_7 = arith.constant 0 : index
    %c0_8 = arith.constant 0 : index
    %13 = vector.load %arg4[%c0_7, %c0_8] : memref<128x128xbf16, #tpu.memory_space<vmem>>, vector<128x128xbf16>
    %14 = arith.truncf %12 : vector<16x128xf32> to vector<16x128xbf16>
    %cst_9 = arith.constant dense<0.000000e+00> : vector<16x128xf32>
    %15 = tpu.matmul %14, %13, %cst_9 {dimension_numbers = #tpu.dot_dimension_numbers<[1], [0], [0], [1], [0, 0, 1, 1], [], []>} : vector<16x128xbf16>, vector<128x128xbf16>, vector<16x128xf32> -> vector<16x128xf32>
    %c0_10 = arith.constant 0 : index
    %c0_11 = arith.constant 0 : index
    %16 = vector.load %arg5[%c0_10, %c0_11] : memref<1x128xf32, #tpu.memory_space<vmem>>, vector<1x128xf32>
    %17 = vector.broadcast %16 : vector<1x128xf32> to vector<16x128xf32>
    %18 = arith.addf %15, %17 : vector<16x128xf32>
    %cst_12 = arith.constant 0.000000e+00 : f32
    %19 = vector.broadcast %cst_12 : f32 to vector<16x128xf32>
    %20 = arith.cmpf oge, %18, %19 : vector<16x128xf32>
    %c0_13 = arith.constant 0 : index
    %21 = memref.load %arg7[%c0_13] : memref<1xf32, #tpu.memory_space<smem>>
    %22 = vector.broadcast %21 : f32 to vector<16x128xf32>
    %23 = arith.mulf %22, %18 : vector<16x128xf32>
    %24 = arith.select %20, %18, %23 : vector<16x128xi1>, vector<16x128xf32>
    %c0_14 = arith.constant 0 : index
    %c0_15 = arith.constant 0 : index
    %25 = vector.load %arg8[%c0_14, %c0_15] : memref<16x128xf32, #tpu.memory_space<vmem>>, vector<16x128xf32>
    tpu.vector_store %arg8[%c0_14, %c0_15], %24 {strides = array<i32>} : memref<16x128xf32, #tpu.memory_space<vmem>>, vector<16x128xf32>,
    return
  }
  func.func @transform_0(%arg0: i32) -> (i32, i32) {
    %c0_i32 = arith.constant 0 : i32
    %c0_i32_0 = arith.constant 0 : i32
    return %arg0, %c0_i32 : i32, i32
  }
  func.func @transform_1(%arg0: i32) -> (i32, i32) {
    %c0_i32 = arith.constant 0 : i32
    %c0_i32_0 = arith.constant 0 : i32
    %c0_i32_1 = arith.constant 0 : i32
    return %c0_i32, %c0_i32_0 : i32, i32
  }
  func.func @transform_2(%arg0: i32) -> (i32, i32) {
    %c0_i32 = arith.constant 0 : i32
    %c0_i32_0 = arith.constant 0 : i32
    %c0_i32_1 = arith.constant 0 : i32
    return %c0_i32, %c0_i32_0 : i32, i32
  }
  func.func @transform_3(%arg0: i32) -> (i32, i32) {
    %c0_i32 = arith.constant 0 : i32
    %c0_i32_0 = arith.constant 0 : i32
    %c0_i32_1 = arith.constant 0 : i32
    return %c0_i32, %c0_i32_0 : i32, i32
  }
  func.func @transform_4(%arg0: i32) -> (i32, i32) {
    %c0_i32 = arith.constant 0 : i32
    %c0_i32_0 = arith.constant 0 : i32
    %c0_i32_1 = arith.constant 0 : i32
    return %c0_i32, %c0_i32_0 : i32, i32
  }
  func.func @transform_5(%arg0: i32) -> i32 {
    %c0_i32 = arith.constant 0 : i32
    %c0_i32_0 = arith.constant 0 : i32
    return %c0_i32 : i32
  }
  func.func @transform_6(%arg0: i32) -> i32 {
    %c0_i32 = arith.constant 0 : i32
    %c0_i32_0 = arith.constant 0 : i32
    return %c0_i32 : i32
  }
  func.func @transform_7(%arg0: i32) -> (i32, i32) {
    %c0_i32 = arith.constant 0 : i32
    %c0_i32_0 = arith.constant 0 : i32
    return %arg0, %c0_i32 : i32, i32
  }
}

module attributes {stable_mosaic.version = 11 : i64} {
  func.func @_ln_qkv_kernel(%arg0: i32, %arg1: memref<16x128xf32, #tpu.memory_space<vmem>>, %arg2: memref<1x128xf32, #tpu.memory_space<vmem>>, %arg3: memref<1x128xf32, #tpu.memory_space<vmem>>, %arg4: memref<128x384xbf16, #tpu.memory_space<vmem>>, %arg5: memref<1x384xf32, #tpu.memory_space<vmem>>, %arg6: memref<16x384xbf16, #tpu.memory_space<vmem>>) attributes {dimension_semantics = [#tpu.dimension_semantics<parallel>], iteration_bounds = array<i64: 1>, scalar_prefetch = 0 : i64, scratch_operands = 0 : i64, tpu.core_type = #tpu.core_type<tc>, window_params = [{transform_indices = @transform_0, window_bounds = array<i64: 16, 128>}, {pipeline_mode = #tpu.pipeline_mode<synchronous>, transform_indices = @transform_1, window_bounds = array<i64: 1, 128>}, {pipeline_mode = #tpu.pipeline_mode<synchronous>, transform_indices = @transform_2, window_bounds = array<i64: 1, 128>}, {pipeline_mode = #tpu.pipeline_mode<synchronous>, transform_indices = @transform_3, window_bounds = array<i64: 128, 384>}, {pipeline_mode = #tpu.pipeline_mode<synchronous>, transform_indices = @transform_4, window_bounds = array<i64: 1, 384>}, {transform_indices = @transform_5, window_bounds = array<i64: 16, 384>}]} {
    %c0 = arith.constant 0 : index
    %c0_0 = arith.constant 0 : index
    %0 = vector.load %arg1[%c0, %c0_0] : memref<16x128xf32, #tpu.memory_space<vmem>>, vector<16x128xf32>
    %c0_1 = arith.constant 0 : index
    %c0_2 = arith.constant 0 : index
    %1 = vector.load %arg2[%c0_1, %c0_2] : memref<1x128xf32, #tpu.memory_space<vmem>>, vector<1x128xf32>
    %c0_3 = arith.constant 0 : index
    %c0_4 = arith.constant 0 : index
    %2 = vector.load %arg3[%c0_3, %c0_4] : memref<1x128xf32, #tpu.memory_space<vmem>>, vector<1x128xf32>
    %cst = arith.constant dense<0.000000e+00> : vector<16xf32>
    %3 = vector.multi_reduction <add>, %0, %cst [1] : vector<16x128xf32> to vector<16xf32>
    %4 = vector.shape_cast %3 : vector<16xf32> to vector<16x1xf32>
    %cst_5 = arith.constant 1.280000e+02 : f32
    %5 = vector.broadcast %cst_5 : f32 to vector<16x1xf32>
    %6 = arith.divf %4, %5 : vector<16x1xf32>
    %7 = vector.broadcast %6 : vector<16x1xf32> to vector<16x128xf32>
    %8 = arith.subf %0, %7 : vector<16x128xf32>
    %9 = arith.mulf %8, %8 : vector<16x128xf32>
    %cst_6 = arith.constant dense<0.000000e+00> : vector<16xf32>
    %10 = vector.multi_reduction <add>, %9, %cst_6 [1] : vector<16x128xf32> to vector<16xf32>
    %11 = vector.shape_cast %10 : vector<16xf32> to vector<16x1xf32>
    %cst_7 = arith.constant 1.280000e+02 : f32
    %12 = vector.broadcast %cst_7 : f32 to vector<16x1xf32>
    %13 = arith.divf %11, %12 : vector<16x1xf32>
    %cst_8 = arith.constant 9.99999997E-7 : f32
    %14 = vector.broadcast %cst_8 : f32 to vector<16x1xf32>
    %15 = arith.addf %13, %14 : vector<16x1xf32>
    %16 = math.rsqrt %15 : vector<16x1xf32>
    %17 = vector.broadcast %16 : vector<16x1xf32> to vector<16x128xf32>
    %18 = arith.mulf %8, %17 : vector<16x128xf32>
    %19 = vector.broadcast %1 : vector<1x128xf32> to vector<16x128xf32>
    %20 = arith.mulf %18, %19 : vector<16x128xf32>
    %21 = vector.broadcast %2 : vector<1x128xf32> to vector<16x128xf32>
    %22 = arith.addf %20, %21 : vector<16x128xf32>
    %c0_9 = arith.constant 0 : index
    %c0_10 = arith.constant 0 : index
    %23 = vector.load %arg4[%c0_9, %c0_10] : memref<128x384xbf16, #tpu.memory_space<vmem>>, vector<128x384xbf16>
    %24 = arith.truncf %22 : vector<16x128xf32> to vector<16x128xbf16>
    %cst_11 = arith.constant dense<0.000000e+00> : vector<16x384xf32>
    %25 = tpu.matmul %24, %23, %cst_11 {dimension_numbers = #tpu.dot_dimension_numbers<[1], [0], [0], [1], [0, 0, 1, 1], [], []>} : vector<16x128xbf16>, vector<128x384xbf16>, vector<16x384xf32> -> vector<16x384xf32>
    %c0_12 = arith.constant 0 : index
    %c0_13 = arith.constant 0 : index
    %26 = vector.load %arg5[%c0_12, %c0_13] : memref<1x384xf32, #tpu.memory_space<vmem>>, vector<1x384xf32>
    %27 = vector.broadcast %26 : vector<1x384xf32> to vector<16x384xf32>
    %28 = arith.addf %25, %27 : vector<16x384xf32>
    %29 = arith.truncf %28 : vector<16x384xf32> to vector<16x384xbf16>
    %c0_14 = arith.constant 0 : index
    %c0_15 = arith.constant 0 : index
    %30 = vector.load %arg6[%c0_14, %c0_15] : memref<16x384xbf16, #tpu.memory_space<vmem>>, vector<16x384xbf16>
    tpu.vector_store %arg6[%c0_14, %c0_15], %29 {strides = array<i32>} : memref<16x384xbf16, #tpu.memory_space<vmem>>, vector<16x384xbf16>,
    return
  }
  func.func @transform_0(%arg0: i32) -> (i32, i32) {
    %c0_i32 = arith.constant 0 : i32
    %c0_i32_0 = arith.constant 0 : i32
    return %arg0, %c0_i32 : i32, i32
  }
  func.func @transform_1(%arg0: i32) -> (i32, i32) {
    %c0_i32 = arith.constant 0 : i32
    %c0_i32_0 = arith.constant 0 : i32
    %c0_i32_1 = arith.constant 0 : i32
    return %c0_i32, %c0_i32_0 : i32, i32
  }
  func.func @transform_2(%arg0: i32) -> (i32, i32) {
    %c0_i32 = arith.constant 0 : i32
    %c0_i32_0 = arith.constant 0 : i32
    %c0_i32_1 = arith.constant 0 : i32
    return %c0_i32, %c0_i32_0 : i32, i32
  }
  func.func @transform_3(%arg0: i32) -> (i32, i32) {
    %c0_i32 = arith.constant 0 : i32
    %c0_i32_0 = arith.constant 0 : i32
    %c0_i32_1 = arith.constant 0 : i32
    return %c0_i32, %c0_i32_0 : i32, i32
  }
  func.func @transform_4(%arg0: i32) -> (i32, i32) {
    %c0_i32 = arith.constant 0 : i32
    %c0_i32_0 = arith.constant 0 : i32
    %c0_i32_1 = arith.constant 0 : i32
    return %c0_i32, %c0_i32_0 : i32, i32
  }
  func.func @transform_5(%arg0: i32) -> (i32, i32) {
    %c0_i32 = arith.constant 0 : i32
    %c0_i32_0 = arith.constant 0 : i32
    return %arg0, %c0_i32 : i32, i32
  }
}

module attributes {stable_mosaic.version = 11 : i64} {
  func.func @_mlp_kernel(%arg0: i32, %arg1: memref<15x1xf32, #tpu.memory_space<vmem>>, %arg2: memref<1x128xbf16, #tpu.memory_space<vmem>>, %arg3: memref<1x128xf32, #tpu.memory_space<vmem>>, %arg4: memref<128x32xbf16, #tpu.memory_space<vmem>>, %arg5: memref<1x32xf32, #tpu.memory_space<vmem>>, %arg6: memref<1xf32, #tpu.memory_space<smem>>, %arg7: memref<1xf32, #tpu.memory_space<smem>>, %arg8: memref<15x32xf32, #tpu.memory_space<vmem>>) attributes {dimension_semantics = [#tpu.dimension_semantics<parallel>], iteration_bounds = array<i64: 1>, scalar_prefetch = 0 : i64, scratch_operands = 0 : i64, tpu.core_type = #tpu.core_type<tc>, window_params = [{transform_indices = @transform_0, window_bounds = array<i64: 15, 1>}, {pipeline_mode = #tpu.pipeline_mode<synchronous>, transform_indices = @transform_1, window_bounds = array<i64: 1, 128>}, {pipeline_mode = #tpu.pipeline_mode<synchronous>, transform_indices = @transform_2, window_bounds = array<i64: 1, 128>}, {pipeline_mode = #tpu.pipeline_mode<synchronous>, transform_indices = @transform_3, window_bounds = array<i64: 128, 32>}, {pipeline_mode = #tpu.pipeline_mode<synchronous>, transform_indices = @transform_4, window_bounds = array<i64: 1, 32>}, {transform_indices = @transform_5, window_bounds = array<i64: 1>}, {transform_indices = @transform_6, window_bounds = array<i64: 1>}, {transform_indices = @transform_7, window_bounds = array<i64: 15, 32>}]} {
    %c0 = arith.constant 0 : index
    %c0_0 = arith.constant 0 : index
    %0 = vector.load %arg1[%c0, %c0_0] : memref<15x1xf32, #tpu.memory_space<vmem>>, vector<15x1xf32>
    %c0_1 = arith.constant 0 : index
    %c0_2 = arith.constant 0 : index
    %1 = vector.load %arg2[%c0_1, %c0_2] : memref<1x128xbf16, #tpu.memory_space<vmem>>, vector<1x128xbf16>
    %2 = arith.extf %1 : vector<1x128xbf16> to vector<1x128xf32>
    %3 = vector.broadcast %0 : vector<15x1xf32> to vector<15x128xf32>
    %4 = vector.broadcast %2 : vector<1x128xf32> to vector<15x128xf32>
    %5 = arith.mulf %3, %4 : vector<15x128xf32>
    %c0_3 = arith.constant 0 : index
    %c0_4 = arith.constant 0 : index
    %6 = vector.load %arg3[%c0_3, %c0_4] : memref<1x128xf32, #tpu.memory_space<vmem>>, vector<1x128xf32>
    %7 = vector.broadcast %6 : vector<1x128xf32> to vector<15x128xf32>
    %8 = arith.addf %5, %7 : vector<15x128xf32>
    %cst = arith.constant 0.000000e+00 : f32
    %9 = vector.broadcast %cst : f32 to vector<15x128xf32>
    %10 = arith.cmpf oge, %8, %9 : vector<15x128xf32>
    %c0_5 = arith.constant 0 : index
    %11 = memref.load %arg6[%c0_5] : memref<1xf32, #tpu.memory_space<smem>>
    %12 = vector.broadcast %11 : f32 to vector<15x128xf32>
    %13 = arith.mulf %12, %8 : vector<15x128xf32>
    %14 = arith.select %10, %8, %13 : vector<15x128xi1>, vector<15x128xf32>
    %c0_6 = arith.constant 0 : index
    %c0_7 = arith.constant 0 : index
    %15 = vector.load %arg4[%c0_6, %c0_7] : memref<128x32xbf16, #tpu.memory_space<vmem>>, vector<128x32xbf16>
    %16 = arith.truncf %14 : vector<15x128xf32> to vector<15x128xbf16>
    %cst_8 = arith.constant dense<0.000000e+00> : vector<15x32xf32>
    %17 = tpu.matmul %16, %15, %cst_8 {dimension_numbers = #tpu.dot_dimension_numbers<[1], [0], [0], [1], [0, 0, 1, 1], [], []>} : vector<15x128xbf16>, vector<128x32xbf16>, vector<15x32xf32> -> vector<15x32xf32>
    %c0_9 = arith.constant 0 : index
    %c0_10 = arith.constant 0 : index
    %18 = vector.load %arg5[%c0_9, %c0_10] : memref<1x32xf32, #tpu.memory_space<vmem>>, vector<1x32xf32>
    %19 = vector.broadcast %18 : vector<1x32xf32> to vector<15x32xf32>
    %20 = arith.addf %17, %19 : vector<15x32xf32>
    %c0_11 = arith.constant 0 : index
    %c0_12 = arith.constant 0 : index
    %21 = vector.load %arg8[%c0_11, %c0_12] : memref<15x32xf32, #tpu.memory_space<vmem>>, vector<15x32xf32>
    tpu.vector_store %arg8[%c0_11, %c0_12], %20 {strides = array<i32>} : memref<15x32xf32, #tpu.memory_space<vmem>>, vector<15x32xf32>,
    return
  }
  func.func @transform_0(%arg0: i32) -> (i32, i32) {
    %c0_i32 = arith.constant 0 : i32
    %c0_i32_0 = arith.constant 0 : i32
    return %arg0, %c0_i32 : i32, i32
  }
  func.func @transform_1(%arg0: i32) -> (i32, i32) {
    %c0_i32 = arith.constant 0 : i32
    %c0_i32_0 = arith.constant 0 : i32
    %c0_i32_1 = arith.constant 0 : i32
    return %c0_i32, %c0_i32_0 : i32, i32
  }
  func.func @transform_2(%arg0: i32) -> (i32, i32) {
    %c0_i32 = arith.constant 0 : i32
    %c0_i32_0 = arith.constant 0 : i32
    %c0_i32_1 = arith.constant 0 : i32
    return %c0_i32, %c0_i32_0 : i32, i32
  }
  func.func @transform_3(%arg0: i32) -> (i32, i32) {
    %c0_i32 = arith.constant 0 : i32
    %c0_i32_0 = arith.constant 0 : i32
    %c0_i32_1 = arith.constant 0 : i32
    return %c0_i32, %c0_i32_0 : i32, i32
  }
  func.func @transform_4(%arg0: i32) -> (i32, i32) {
    %c0_i32 = arith.constant 0 : i32
    %c0_i32_0 = arith.constant 0 : i32
    %c0_i32_1 = arith.constant 0 : i32
    return %c0_i32, %c0_i32_0 : i32, i32
  }
  func.func @transform_5(%arg0: i32) -> i32 {
    %c0_i32 = arith.constant 0 : i32
    %c0_i32_0 = arith.constant 0 : i32
    return %c0_i32 : i32
  }
  func.func @transform_6(%arg0: i32) -> i32 {
    %c0_i32 = arith.constant 0 : i32
    %c0_i32_0 = arith.constant 0 : i32
    return %c0_i32 : i32
  }
  func.func @transform_7(%arg0: i32) -> (i32, i32) {
    %c0_i32 = arith.constant 0 : i32
    %c0_i32_0 = arith.constant 0 : i32
    return %arg0, %c0_i32 : i32, i32
  }
}

module attributes {stable_mosaic.version = 11 : i64} {
  func.func @_phase_attn_kernel(%arg0: i32, %arg1: i32, %arg2: memref<1x1x8x32xbf16, #tpu.memory_space<vmem>>, %arg3: memref<1x1x32x8xbf16, #tpu.memory_space<vmem>>, %arg4: memref<1x1x8x32xbf16, #tpu.memory_space<vmem>>, %arg5: memref<32x128xbf16, #tpu.memory_space<vmem>>, %arg6: memref<1x1x8x1xf32, #tpu.memory_space<vmem>>, %arg7: memref<1x1x1x8xf32, #tpu.memory_space<vmem>>, %arg8: memref<1x1x8x32xbf16, #tpu.memory_space<vmem>>) attributes {dimension_semantics = [#tpu.dimension_semantics<parallel>, #tpu.dimension_semantics<parallel>], iteration_bounds = array<i64: 2, 4>, scalar_prefetch = 0 : i64, scratch_operands = 0 : i64, tpu.core_type = #tpu.core_type<tc>, window_params = [{transform_indices = @transform_0, window_bounds = array<i64: 1, 1, 8, 32>}, {transform_indices = @transform_1, window_bounds = array<i64: 1, 1, 32, 8>}, {transform_indices = @transform_2, window_bounds = array<i64: 1, 1, 8, 32>}, {pipeline_mode = #tpu.pipeline_mode<synchronous>, transform_indices = @transform_3, window_bounds = array<i64: 32, 128>}, {transform_indices = @transform_4, window_bounds = array<i64: 1, 1, 8, 1>}, {transform_indices = @transform_5, window_bounds = array<i64: 1, 1, 1, 8>}, {transform_indices = @transform_6, window_bounds = array<i64: 1, 1, 8, 32>}]} {
    %c0 = arith.constant 0 : index
    %c0_0 = arith.constant 0 : index
    %c0_1 = arith.constant 0 : index
    %c0_2 = arith.constant 0 : index
    %0 = vector.load %arg2[%c0, %c0_0, %c0_1, %c0_2] : memref<1x1x8x32xbf16, #tpu.memory_space<vmem>>, vector<1x1x8x32xbf16>
    %1 = vector.shape_cast %0 : vector<1x1x8x32xbf16> to vector<8x32xbf16>
    %c0_3 = arith.constant 0 : index
    %c0_4 = arith.constant 0 : index
    %c0_5 = arith.constant 0 : index
    %c0_6 = arith.constant 0 : index
    %2 = vector.load %arg3[%c0_3, %c0_4, %c0_5, %c0_6] : memref<1x1x32x8xbf16, #tpu.memory_space<vmem>>, vector<1x1x32x8xbf16>
    %3 = vector.shape_cast %2 : vector<1x1x32x8xbf16> to vector<32x8xbf16>
    %c0_7 = arith.constant 0 : index
    %c0_8 = arith.constant 0 : index
    %c0_9 = arith.constant 0 : index
    %c0_10 = arith.constant 0 : index
    %4 = vector.load %arg4[%c0_7, %c0_8, %c0_9, %c0_10] : memref<1x1x8x32xbf16, #tpu.memory_space<vmem>>, vector<1x1x8x32xbf16>
    %5 = vector.shape_cast %4 : vector<1x1x8x32xbf16> to vector<8x32xbf16>
    %cst = arith.constant dense<0.000000e+00> : vector<8x8xf32>
    %6 = tpu.matmul %1, %3, %cst {dimension_numbers = #tpu.dot_dimension_numbers<[1], [0], [0], [1], [0, 0, 1, 1], [], []>} : vector<8x32xbf16>, vector<32x8xbf16>, vector<8x8xf32> -> vector<8x8xf32>
    %c0_11 = arith.constant 0 : index
    %c0_12 = arith.constant 0 : index
    %7 = vector.load %arg5[%c0_11, %c0_12] : memref<32x128xbf16, #tpu.memory_space<vmem>>, vector<32x128xbf16>
    %cst_13 = arith.constant dense<0.000000e+00> : vector<8x128xf32>
    %8 = tpu.matmul %1, %7, %cst_13 {dimension_numbers = #tpu.dot_dimension_numbers<[1], [0], [0], [1], [0, 0, 1, 1], [], []>} : vector<8x32xbf16>, vector<32x128xbf16>, vector<8x128xf32> -> vector<8x128xf32>
    %c120_i32 = arith.constant 120 : i32
    %9 = tpu.dynamic_rotate %8 by %c120_i32 dim 1 {stride = 1 : si32, stride_dimension = 0 : si32} : vector<8x128xf32>, i32 -> vector<8x128xf32>
    %10 = vector.extract_strided_slice %9 {offsets = [0, 0], sizes = [8, 8], strides = [1, 1]} : vector<8x128xf32> to vector<8x8xf32>
    %c0_14 = arith.constant 0 : index
    %c0_15 = arith.constant 0 : index
    %c0_16 = arith.constant 0 : index
    %c0_17 = arith.constant 0 : index
    %11 = vector.load %arg6[%c0_14, %c0_15, %c0_16, %c0_17] : memref<1x1x8x1xf32, #tpu.memory_space<vmem>>, vector<1x1x8x1xf32>
    %12 = vector.shape_cast %11 : vector<1x1x8x1xf32> to vector<8x1xf32>
    %c0_18 = arith.constant 0 : index
    %c0_19 = arith.constant 0 : index
    %c0_20 = arith.constant 0 : index
    %c0_21 = arith.constant 0 : index
    %13 = vector.load %arg7[%c0_18, %c0_19, %c0_20, %c0_21] : memref<1x1x1x8xf32, #tpu.memory_space<vmem>>, vector<1x1x1x8xf32>
    %14 = vector.shape_cast %13 : vector<1x1x1x8xf32> to vector<1x8xf32>
    %15 = vector.broadcast %12 : vector<8x1xf32> to vector<8x8xf32>
    %16 = vector.broadcast %14 : vector<1x8xf32> to vector<8x8xf32>
    %17 = arith.subf %15, %16 : vector<8x8xf32>
    %18 = math.cos %17 : vector<8x8xf32>
    %19 = arith.addf %6, %10 : vector<8x8xf32>
    %cst_22 = arith.constant 0.176776692 : f32
    %20 = vector.broadcast %cst_22 : f32 to vector<8x8xf32>
    %21 = arith.mulf %19, %20 : vector<8x8xf32>
    %22 = arith.addf %21, %18 : vector<8x8xf32>
    %cst_23 = arith.constant dense<0xFF800000> : vector<8xf32>
    %23 = vector.multi_reduction <maximumf>, %22, %cst_23 [1] : vector<8x8xf32> to vector<8xf32>
    %24 = vector.shape_cast %23 : vector<8xf32> to vector<8x1xf32>
    %25 = vector.broadcast %24 : vector<8x1xf32> to vector<8x8xf32>
    %26 = arith.subf %22, %25 : vector<8x8xf32>
    %27 = math.exp %26 : vector<8x8xf32>
    %cst_24 = arith.constant dense<0.000000e+00> : vector<8xf32>
    %28 = vector.multi_reduction <add>, %27, %cst_24 [1] : vector<8x8xf32> to vector<8xf32>
    %29 = vector.shape_cast %28 : vector<8xf32> to vector<8x1xf32>
    %30 = vector.broadcast %29 : vector<8x1xf32> to vector<8x8xf32>
    %31 = arith.divf %27, %30 : vector<8x8xf32>
    %32 = arith.truncf %31 : vector<8x8xf32> to vector<8x8xbf16>
    %cst_25 = arith.constant dense<0.000000e+00> : vector<8x32xf32>
    %33 = tpu.matmul %32, %5, %cst_25 {dimension_numbers = #tpu.dot_dimension_numbers<[1], [0], [0], [1], [0, 0, 1, 1], [], []>} : vector<8x8xbf16>, vector<8x32xbf16>, vector<8x32xf32> -> vector<8x32xf32>
    %34 = arith.truncf %33 : vector<8x32xf32> to vector<8x32xbf16>
    %c0_26 = arith.constant 0 : index
    %c0_27 = arith.constant 0 : index
    %c0_28 = arith.constant 0 : index
    %c0_29 = arith.constant 0 : index
    %35 = vector.load %arg8[%c0_26, %c0_27, %c0_28, %c0_29] : memref<1x1x8x32xbf16, #tpu.memory_space<vmem>>, vector<1x1x8x32xbf16>
    %36 = vector.shape_cast %35 : vector<1x1x8x32xbf16> to vector<8x32xbf16>
    %37 = vector.shape_cast %34 : vector<8x32xbf16> to vector<1x1x8x32xbf16>
    tpu.vector_store %arg8[%c0_26, %c0_27, %c0_28, %c0_29], %37 {strides = array<i32>} : memref<1x1x8x32xbf16, #tpu.memory_space<vmem>>, vector<1x1x8x32xbf16>,
    return
  }
  func.func @transform_0(%arg0: i32, %arg1: i32) -> (i32, i32, i32, i32) {
    %c0_i32 = arith.constant 0 : i32
    %c0_i32_0 = arith.constant 0 : i32
    %c0_i32_1 = arith.constant 0 : i32
    return %arg0, %arg1, %c0_i32, %c0_i32_0 : i32, i32, i32, i32
  }
  func.func @transform_1(%arg0: i32, %arg1: i32) -> (i32, i32, i32, i32) {
    %c0_i32 = arith.constant 0 : i32
    %c0_i32_0 = arith.constant 0 : i32
    %c0_i32_1 = arith.constant 0 : i32
    return %arg0, %arg1, %c0_i32, %c0_i32_0 : i32, i32, i32, i32
  }
  func.func @transform_2(%arg0: i32, %arg1: i32) -> (i32, i32, i32, i32) {
    %c0_i32 = arith.constant 0 : i32
    %c0_i32_0 = arith.constant 0 : i32
    %c0_i32_1 = arith.constant 0 : i32
    return %arg0, %arg1, %c0_i32, %c0_i32_0 : i32, i32, i32, i32
  }
  func.func @transform_3(%arg0: i32, %arg1: i32) -> (i32, i32) {
    %c0_i32 = arith.constant 0 : i32
    %c0_i32_0 = arith.constant 0 : i32
    %c0_i32_1 = arith.constant 0 : i32
    return %c0_i32, %c0_i32_0 : i32, i32
  }
  func.func @transform_4(%arg0: i32, %arg1: i32) -> (i32, i32, i32, i32) {
    %c0_i32 = arith.constant 0 : i32
    %c0_i32_0 = arith.constant 0 : i32
    %c0_i32_1 = arith.constant 0 : i32
    return %arg0, %arg1, %c0_i32, %c0_i32_0 : i32, i32, i32, i32
  }
  func.func @transform_5(%arg0: i32, %arg1: i32) -> (i32, i32, i32, i32) {
    %c0_i32 = arith.constant 0 : i32
    %c0_i32_0 = arith.constant 0 : i32
    %c0_i32_1 = arith.constant 0 : i32
    return %arg0, %arg1, %c0_i32, %c0_i32_0 : i32, i32, i32, i32
  }
  func.func @transform_6(%arg0: i32, %arg1: i32) -> (i32, i32, i32, i32) {
    %c0_i32 = arith.constant 0 : i32
    %c0_i32_0 = arith.constant 0 : i32
    %c0_i32_1 = arith.constant 0 : i32
    return %arg0, %arg1, %c0_i32, %c0_i32_0 : i32, i32, i32, i32
  }
}

module attributes {stable_mosaic.version = 11 : i64} {
  func.func @_attn_out_ffn_kernel(%arg0: i32, %arg1: i32, %arg2: memref<16x128xf32, #tpu.memory_space<vmem>>, %arg3: memref<16x128xbf16, #tpu.memory_space<vmem>>, %arg4: memref<128x128xbf16, #tpu.memory_space<vmem>>, %arg5: memref<1x128xf32, #tpu.memory_space<vmem>>, %arg6: memref<1x128xf32, #tpu.memory_space<vmem>>, %arg7: memref<1x128xf32, #tpu.memory_space<vmem>>, %arg8: memref<128x256xbf16, #tpu.memory_space<vmem>>, %arg9: memref<1x256xf32, #tpu.memory_space<vmem>>, %arg10: memref<256x128xbf16, #tpu.memory_space<vmem>>, %arg11: memref<1x128xf32, #tpu.memory_space<vmem>>, %arg12: memref<1xf32, #tpu.memory_space<smem>>, %arg13: memref<16x128xf32, #tpu.memory_space<vmem>>, %arg14: memref<16x128xbf16, #tpu.memory_space<vmem>>) attributes {dimension_semantics = [#tpu.dimension_semantics<parallel>, #tpu.dimension_semantics<arbitrary>], iteration_bounds = array<i64: 1, 1>, scalar_prefetch = 0 : i64, scratch_operands = 1 : i64, tpu.core_type = #tpu.core_type<tc>, window_params = [{transform_indices = @transform_0, window_bounds = array<i64: 16, 128>}, {transform_indices = @transform_1, window_bounds = array<i64: 16, 128>}, {pipeline_mode = #tpu.pipeline_mode<synchronous>, transform_indices = @transform_2, window_bounds = array<i64: 128, 128>}, {pipeline_mode = #tpu.pipeline_mode<synchronous>, transform_indices = @transform_3, window_bounds = array<i64: 1, 128>}, {pipeline_mode = #tpu.pipeline_mode<synchronous>, transform_indices = @transform_4, window_bounds = array<i64: 1, 128>}, {pipeline_mode = #tpu.pipeline_mode<synchronous>, transform_indices = @transform_5, window_bounds = array<i64: 1, 128>}, {transform_indices = @transform_6, window_bounds = array<i64: 128, 256>}, {transform_indices = @transform_7, window_bounds = array<i64: 1, 256>}, {transform_indices = @transform_8, window_bounds = array<i64: 256, 128>}, {pipeline_mode = #tpu.pipeline_mode<synchronous>, transform_indices = @transform_9, window_bounds = array<i64: 1, 128>}, {transform_indices = @transform_10, window_bounds = array<i64: 1>}, {transform_indices = @transform_11, window_bounds = array<i64: 16, 128>}]} {
    %c0_i32 = arith.constant 0 : i32
    %0 = arith.cmpi eq, %arg1, %c0_i32 : i32
    %1 = arith.extui %0 : i1 to i32
    %c0_i32_0 = arith.constant 0 : i32
    %2 = arith.cmpi ne, %1, %c0_i32_0 : i32
    scf.if %2 {
      %c0_15 = arith.constant 0 : index
      %c0_16 = arith.constant 0 : index
      %21 = vector.load %arg2[%c0_15, %c0_16] : memref<16x128xf32, #tpu.memory_space<vmem>>, vector<16x128xf32>
      %c0_17 = arith.constant 0 : index
      %c0_18 = arith.constant 0 : index
      %22 = vector.load %arg3[%c0_17, %c0_18] : memref<16x128xbf16, #tpu.memory_space<vmem>>, vector<16x128xbf16>
      %c0_19 = arith.constant 0 : index
      %c0_20 = arith.constant 0 : index
      %23 = vector.load %arg4[%c0_19, %c0_20] : memref<128x128xbf16, #tpu.memory_space<vmem>>, vector<128x128xbf16>
      %cst_21 = arith.constant dense<0.000000e+00> : vector<16x128xf32>
      %24 = tpu.matmul %22, %23, %cst_21 {dimension_numbers = #tpu.dot_dimension_numbers<[1], [0], [0], [1], [0, 0, 1, 1], [], []>} : vector<16x128xbf16>, vector<128x128xbf16>, vector<16x128xf32> -> vector<16x128xf32>
      %25 = arith.addf %21, %24 : vector<16x128xf32>
      %c0_22 = arith.constant 0 : index
      %c0_23 = arith.constant 0 : index
      %26 = vector.load %arg5[%c0_22, %c0_23] : memref<1x128xf32, #tpu.memory_space<vmem>>, vector<1x128xf32>
      %27 = vector.broadcast %26 : vector<1x128xf32> to vector<16x128xf32>
      %28 = arith.addf %25, %27 : vector<16x128xf32>
      %c0_24 = arith.constant 0 : index
      %c0_25 = arith.constant 0 : index
      %29 = vector.load %arg6[%c0_24, %c0_25] : memref<1x128xf32, #tpu.memory_space<vmem>>, vector<1x128xf32>
      %c0_26 = arith.constant 0 : index
      %c0_27 = arith.constant 0 : index
      %30 = vector.load %arg7[%c0_26, %c0_27] : memref<1x128xf32, #tpu.memory_space<vmem>>, vector<1x128xf32>
      %cst_28 = arith.constant dense<0.000000e+00> : vector<16xf32>
      %31 = vector.multi_reduction <add>, %28, %cst_28 [1] : vector<16x128xf32> to vector<16xf32>
      %32 = vector.shape_cast %31 : vector<16xf32> to vector<16x1xf32>
      %cst_29 = arith.constant 1.280000e+02 : f32
      %33 = vector.broadcast %cst_29 : f32 to vector<16x1xf32>
      %34 = arith.divf %32, %33 : vector<16x1xf32>
      %35 = vector.broadcast %34 : vector<16x1xf32> to vector<16x128xf32>
      %36 = arith.subf %28, %35 : vector<16x128xf32>
      %37 = arith.mulf %36, %36 : vector<16x128xf32>
      %cst_30 = arith.constant dense<0.000000e+00> : vector<16xf32>
      %38 = vector.multi_reduction <add>, %37, %cst_30 [1] : vector<16x128xf32> to vector<16xf32>
      %39 = vector.shape_cast %38 : vector<16xf32> to vector<16x1xf32>
      %cst_31 = arith.constant 1.280000e+02 : f32
      %40 = vector.broadcast %cst_31 : f32 to vector<16x1xf32>
      %41 = arith.divf %39, %40 : vector<16x1xf32>
      %cst_32 = arith.constant 9.99999997E-7 : f32
      %42 = vector.broadcast %cst_32 : f32 to vector<16x1xf32>
      %43 = arith.addf %41, %42 : vector<16x1xf32>
      %44 = math.rsqrt %43 : vector<16x1xf32>
      %45 = vector.broadcast %44 : vector<16x1xf32> to vector<16x128xf32>
      %46 = arith.mulf %36, %45 : vector<16x128xf32>
      %47 = vector.broadcast %29 : vector<1x128xf32> to vector<16x128xf32>
      %48 = arith.mulf %46, %47 : vector<16x128xf32>
      %49 = vector.broadcast %30 : vector<1x128xf32> to vector<16x128xf32>
      %50 = arith.addf %48, %49 : vector<16x128xf32>
      %51 = arith.truncf %50 : vector<16x128xf32> to vector<16x128xbf16>
      %c0_33 = arith.constant 0 : index
      %c0_34 = arith.constant 0 : index
      %52 = vector.load %arg14[%c0_33, %c0_34] : memref<16x128xbf16, #tpu.memory_space<vmem>>, vector<16x128xbf16>
      tpu.vector_store %arg14[%c0_33, %c0_34], %51 {strides = array<i32>} : memref<16x128xbf16, #tpu.memory_space<vmem>>, vector<16x128xbf16>,
      %c0_35 = arith.constant 0 : index
      %c0_36 = arith.constant 0 : index
      %53 = vector.load %arg11[%c0_35, %c0_36] : memref<1x128xf32, #tpu.memory_space<vmem>>, vector<1x128xf32>
      %54 = vector.broadcast %53 : vector<1x128xf32> to vector<16x128xf32>
      %55 = arith.addf %28, %54 : vector<16x128xf32>
      %c0_37 = arith.constant 0 : index
      %c0_38 = arith.constant 0 : index
      %56 = vector.load %arg13[%c0_37, %c0_38] : memref<16x128xf32, #tpu.memory_space<vmem>>, vector<16x128xf32>
      tpu.vector_store %arg13[%c0_37, %c0_38], %55 {strides = array<i32>} : memref<16x128xf32, #tpu.memory_space<vmem>>, vector<16x128xf32>,
    } else {
    }
    %c0 = arith.constant 0 : index
    %c0_1 = arith.constant 0 : index
    %3 = vector.load %arg14[%c0, %c0_1] : memref<16x128xbf16, #tpu.memory_space<vmem>>, vector<16x128xbf16>
    %c0_2 = arith.constant 0 : index
    %c0_3 = arith.constant 0 : index
    %4 = vector.load %arg8[%c0_2, %c0_3] : memref<128x256xbf16, #tpu.memory_space<vmem>>, vector<128x256xbf16>
    %cst = arith.constant dense<0.000000e+00> : vector<16x256xf32>
    %5 = tpu.matmul %3, %4, %cst {dimension_numbers = #tpu.dot_dimension_numbers<[1], [0], [0], [1], [0, 0, 1, 1], [], []>} : vector<16x128xbf16>, vector<128x256xbf16>, vector<16x256xf32> -> vector<16x256xf32>
    %c0_4 = arith.constant 0 : index
    %c0_5 = arith.constant 0 : index
    %6 = vector.load %arg9[%c0_4, %c0_5] : memref<1x256xf32, #tpu.memory_space<vmem>>, vector<1x256xf32>
    %7 = vector.broadcast %6 : vector<1x256xf32> to vector<16x256xf32>
    %8 = arith.addf %5, %7 : vector<16x256xf32>
    %cst_6 = arith.constant 0.000000e+00 : f32
    %9 = vector.broadcast %cst_6 : f32 to vector<16x256xf32>
    %10 = arith.cmpf oge, %8, %9 : vector<16x256xf32>
    %c0_7 = arith.constant 0 : index
    %11 = memref.load %arg12[%c0_7] : memref<1xf32, #tpu.memory_space<smem>>
    %12 = vector.broadcast %11 : f32 to vector<16x256xf32>
    %13 = arith.mulf %12, %8 : vector<16x256xf32>
    %14 = arith.select %10, %8, %13 : vector<16x256xi1>, vector<16x256xf32>
    %c0_8 = arith.constant 0 : index
    %c0_9 = arith.constant 0 : index
    %15 = vector.load %arg13[%c0_8, %c0_9] : memref<16x128xf32, #tpu.memory_space<vmem>>, vector<16x128xf32>
    %c0_10 = arith.constant 0 : index
    %c0_11 = arith.constant 0 : index
    %16 = vector.load %arg10[%c0_10, %c0_11] : memref<256x128xbf16, #tpu.memory_space<vmem>>, vector<256x128xbf16>
    %17 = arith.truncf %14 : vector<16x256xf32> to vector<16x256xbf16>
    %cst_12 = arith.constant dense<0.000000e+00> : vector<16x128xf32>
    %18 = tpu.matmul %17, %16, %cst_12 {dimension_numbers = #tpu.dot_dimension_numbers<[1], [0], [0], [1], [0, 0, 1, 1], [], []>} : vector<16x256xbf16>, vector<256x128xbf16>, vector<16x128xf32> -> vector<16x128xf32>
    %19 = arith.addf %15, %18 : vector<16x128xf32>
    %c0_13 = arith.constant 0 : index
    %c0_14 = arith.constant 0 : index
    %20 = vector.load %arg13[%c0_13, %c0_14] : memref<16x128xf32, #tpu.memory_space<vmem>>, vector<16x128xf32>
    tpu.vector_store %arg13[%c0_13, %c0_14], %19 {strides = array<i32>} : memref<16x128xf32, #tpu.memory_space<vmem>>, vector<16x128xf32>,
    return
  }
  func.func @transform_0(%arg0: i32, %arg1: i32) -> (i32, i32) {
    %c0_i32 = arith.constant 0 : i32
    %c0_i32_0 = arith.constant 0 : i32
    return %arg0, %c0_i32 : i32, i32
  }
  func.func @transform_1(%arg0: i32, %arg1: i32) -> (i32, i32) {
    %c0_i32 = arith.constant 0 : i32
    %c0_i32_0 = arith.constant 0 : i32
    return %arg0, %c0_i32 : i32, i32
  }
  func.func @transform_2(%arg0: i32, %arg1: i32) -> (i32, i32) {
    %c0_i32 = arith.constant 0 : i32
    %c0_i32_0 = arith.constant 0 : i32
    %c0_i32_1 = arith.constant 0 : i32
    return %c0_i32, %c0_i32_0 : i32, i32
  }
  func.func @transform_3(%arg0: i32, %arg1: i32) -> (i32, i32) {
    %c0_i32 = arith.constant 0 : i32
    %c0_i32_0 = arith.constant 0 : i32
    %c0_i32_1 = arith.constant 0 : i32
    return %c0_i32, %c0_i32_0 : i32, i32
  }
  func.func @transform_4(%arg0: i32, %arg1: i32) -> (i32, i32) {
    %c0_i32 = arith.constant 0 : i32
    %c0_i32_0 = arith.constant 0 : i32
    %c0_i32_1 = arith.constant 0 : i32
    return %c0_i32, %c0_i32_0 : i32, i32
  }
  func.func @transform_5(%arg0: i32, %arg1: i32) -> (i32, i32) {
    %c0_i32 = arith.constant 0 : i32
    %c0_i32_0 = arith.constant 0 : i32
    %c0_i32_1 = arith.constant 0 : i32
    return %c0_i32, %c0_i32_0 : i32, i32
  }
  func.func @transform_6(%arg0: i32, %arg1: i32) -> (i32, i32) {
    %c0_i32 = arith.constant 0 : i32
    %c0_i32_0 = arith.constant 0 : i32
    return %c0_i32, %arg1 : i32, i32
  }
  func.func @transform_7(%arg0: i32, %arg1: i32) -> (i32, i32) {
    %c0_i32 = arith.constant 0 : i32
    %c0_i32_0 = arith.constant 0 : i32
    return %c0_i32, %arg1 : i32, i32
  }
  func.func @transform_8(%arg0: i32, %arg1: i32) -> (i32, i32) {
    %c0_i32 = arith.constant 0 : i32
    %c0_i32_0 = arith.constant 0 : i32
    return %arg1, %c0_i32 : i32, i32
  }
  func.func @transform_9(%arg0: i32, %arg1: i32) -> (i32, i32) {
    %c0_i32 = arith.constant 0 : i32
    %c0_i32_0 = arith.constant 0 : i32
    %c0_i32_1 = arith.constant 0 : i32
    return %c0_i32, %c0_i32_0 : i32, i32
  }
  func.func @transform_10(%arg0: i32, %arg1: i32) -> i32 {
    %c0_i32 = arith.constant 0 : i32
    %c0_i32_0 = arith.constant 0 : i32
    return %c0_i32 : i32
  }
  func.func @transform_11(%arg0: i32, %arg1: i32) -> (i32, i32) {
    %c0_i32 = arith.constant 0 : i32
    %c0_i32_0 = arith.constant 0 : i32
    return %arg0, %c0_i32 : i32, i32
  }
}

module attributes {stable_mosaic.version = 11 : i64} {
  func.func @_mlp_kernel(%arg0: i32, %arg1: memref<16x128xf32, #tpu.memory_space<vmem>>, %arg2: memref<128x128xbf16, #tpu.memory_space<vmem>>, %arg3: memref<1x128xf32, #tpu.memory_space<vmem>>, %arg4: memref<128x8xbf16, #tpu.memory_space<vmem>>, %arg5: memref<1x8xf32, #tpu.memory_space<vmem>>, %arg6: memref<1xf32, #tpu.memory_space<smem>>, %arg7: memref<1xf32, #tpu.memory_space<smem>>, %arg8: memref<16x8xf32, #tpu.memory_space<vmem>>) attributes {dimension_semantics = [#tpu.dimension_semantics<parallel>], iteration_bounds = array<i64: 1>, scalar_prefetch = 0 : i64, scratch_operands = 0 : i64, tpu.core_type = #tpu.core_type<tc>, window_params = [{transform_indices = @transform_0, window_bounds = array<i64: 16, 128>}, {pipeline_mode = #tpu.pipeline_mode<synchronous>, transform_indices = @transform_1, window_bounds = array<i64: 128, 128>}, {pipeline_mode = #tpu.pipeline_mode<synchronous>, transform_indices = @transform_2, window_bounds = array<i64: 1, 128>}, {pipeline_mode = #tpu.pipeline_mode<synchronous>, transform_indices = @transform_3, window_bounds = array<i64: 128, 8>}, {pipeline_mode = #tpu.pipeline_mode<synchronous>, transform_indices = @transform_4, window_bounds = array<i64: 1, 8>}, {transform_indices = @transform_5, window_bounds = array<i64: 1>}, {transform_indices = @transform_6, window_bounds = array<i64: 1>}, {transform_indices = @transform_7, window_bounds = array<i64: 16, 8>}]} {
    %c0 = arith.constant 0 : index
    %c0_0 = arith.constant 0 : index
    %0 = vector.load %arg1[%c0, %c0_0] : memref<16x128xf32, #tpu.memory_space<vmem>>, vector<16x128xf32>
    %c0_1 = arith.constant 0 : index
    %c0_2 = arith.constant 0 : index
    %1 = vector.load %arg2[%c0_1, %c0_2] : memref<128x128xbf16, #tpu.memory_space<vmem>>, vector<128x128xbf16>
    %2 = arith.truncf %0 : vector<16x128xf32> to vector<16x128xbf16>
    %cst = arith.constant dense<0.000000e+00> : vector<16x128xf32>
    %3 = tpu.matmul %2, %1, %cst {dimension_numbers = #tpu.dot_dimension_numbers<[1], [0], [0], [1], [0, 0, 1, 1], [], []>} : vector<16x128xbf16>, vector<128x128xbf16>, vector<16x128xf32> -> vector<16x128xf32>
    %c0_3 = arith.constant 0 : index
    %c0_4 = arith.constant 0 : index
    %4 = vector.load %arg3[%c0_3, %c0_4] : memref<1x128xf32, #tpu.memory_space<vmem>>, vector<1x128xf32>
    %5 = vector.broadcast %4 : vector<1x128xf32> to vector<16x128xf32>
    %6 = arith.addf %3, %5 : vector<16x128xf32>
    %cst_5 = arith.constant 0.000000e+00 : f32
    %7 = vector.broadcast %cst_5 : f32 to vector<16x128xf32>
    %8 = arith.cmpf oge, %6, %7 : vector<16x128xf32>
    %c0_6 = arith.constant 0 : index
    %9 = memref.load %arg6[%c0_6] : memref<1xf32, #tpu.memory_space<smem>>
    %10 = vector.broadcast %9 : f32 to vector<16x128xf32>
    %11 = arith.mulf %10, %6 : vector<16x128xf32>
    %12 = arith.select %8, %6, %11 : vector<16x128xi1>, vector<16x128xf32>
    %c0_7 = arith.constant 0 : index
    %c0_8 = arith.constant 0 : index
    %13 = vector.load %arg4[%c0_7, %c0_8] : memref<128x8xbf16, #tpu.memory_space<vmem>>, vector<128x8xbf16>
    %14 = arith.truncf %12 : vector<16x128xf32> to vector<16x128xbf16>
    %cst_9 = arith.constant dense<0.000000e+00> : vector<16x8xf32>
    %15 = tpu.matmul %14, %13, %cst_9 {dimension_numbers = #tpu.dot_dimension_numbers<[1], [0], [0], [1], [0, 0, 1, 1], [], []>} : vector<16x128xbf16>, vector<128x8xbf16>, vector<16x8xf32> -> vector<16x8xf32>
    %c0_10 = arith.constant 0 : index
    %c0_11 = arith.constant 0 : index
    %16 = vector.load %arg5[%c0_10, %c0_11] : memref<1x8xf32, #tpu.memory_space<vmem>>, vector<1x8xf32>
    %17 = vector.broadcast %16 : vector<1x8xf32> to vector<16x8xf32>
    %18 = arith.addf %15, %17 : vector<16x8xf32>
    %c0_12 = arith.constant 0 : index
    %c0_13 = arith.constant 0 : index
    %19 = vector.load %arg8[%c0_12, %c0_13] : memref<16x8xf32, #tpu.memory_space<vmem>>, vector<16x8xf32>
    tpu.vector_store %arg8[%c0_12, %c0_13], %18 {strides = array<i32>} : memref<16x8xf32, #tpu.memory_space<vmem>>, vector<16x8xf32>,
    return
  }
  func.func @transform_0(%arg0: i32) -> (i32, i32) {
    %c0_i32 = arith.constant 0 : i32
    %c0_i32_0 = arith.constant 0 : i32
    return %arg0, %c0_i32 : i32, i32
  }
  func.func @transform_1(%arg0: i32) -> (i32, i32) {
    %c0_i32 = arith.constant 0 : i32
    %c0_i32_0 = arith.constant 0 : i32
    %c0_i32_1 = arith.constant 0 : i32
    return %c0_i32, %c0_i32_0 : i32, i32
  }
  func.func @transform_2(%arg0: i32) -> (i32, i32) {
    %c0_i32 = arith.constant 0 : i32
    %c0_i32_0 = arith.constant 0 : i32
    %c0_i32_1 = arith.constant 0 : i32
    return %c0_i32, %c0_i32_0 : i32, i32
  }
  func.func @transform_3(%arg0: i32) -> (i32, i32) {
    %c0_i32 = arith.constant 0 : i32
    %c0_i32_0 = arith.constant 0 : i32
    %c0_i32_1 = arith.constant 0 : i32
    return %c0_i32, %c0_i32_0 : i32, i32
  }
  func.func @transform_4(%arg0: i32) -> (i32, i32) {
    %c0_i32 = arith.constant 0 : i32
    %c0_i32_0 = arith.constant 0 : i32
    %c0_i32_1 = arith.constant 0 : i32
    return %c0_i32, %c0_i32_0 : i32, i32
  }
  func.func @transform_5(%arg0: i32) -> i32 {
    %c0_i32 = arith.constant 0 : i32
    %c0_i32_0 = arith.constant 0 : i32
    return %c0_i32 : i32
  }
  func.func @transform_6(%arg0: i32) -> i32 {
    %c0_i32 = arith.constant 0 : i32
    %c0_i32_0 = arith.constant 0 : i32
    return %c0_i32 : i32
  }
  func.func @transform_7(%arg0: i32) -> (i32, i32) {
    %c0_i32 = arith.constant 0 : i32
    %c0_i32_0 = arith.constant 0 : i32
    return %arg0, %c0_i32 : i32, i32
  }
}

</mosaic_0001>

<llo_original>
// kernel: phase_transformer_forward.9
$region0: #{phase_transformer_forward.9}
  #allocation0 [shape = 'u32[]', space=smem, size = 0x4, offset = 0x4, fixed_abs, tag = 'smem constant byte address 0x4 - core index']
  #allocation1 [shape = 'u32[144,128]{1,0:T(1,128)}', space=vmem, size = 0x12000, scoped, tag = 'internal scratch']
  #allocation2 [shape = 'f32[1]{0:T(128)S(6)}', space=smem, size = 0x200, scoped, tag = 'scoped memory for phase_transformer_forward.9']
  #allocation3 [shape = 'f32[1]{0:T(128)S(6)}', space=smem, size = 0x200, scoped, tag = 'scoped memory for phase_transformer_forward.9']
  %s0 = inlined_call_operand.vmem [shape: f32[16,5], index: 0, kind: input, shape index: {}]
  %s1 = inlined_call_operand.vmem [shape: bf16[5,128], index: 1, kind: input, shape index: {}]
  %s2 = inlined_call_operand.vmem [shape: f32[1,128], index: 2, kind: input, shape index: {}]
  %s3 = inlined_call_operand.hbm [shape: bf16[128,128], index: 3, kind: input, shape index: {}]
  %s4 = inlined_call_operand.vmem [shape: f32[1,128], index: 4, kind: input, shape index: {}]
  %s5 = inlined_call_operand.<no memory space> [shape: f32[1], index: 5, kind: input, shape index: {}]
  %s6 = inlined_call_operand.<no memory space> [shape: f32[1], index: 6, kind: input, shape index: {}]
  %s7 = inlined_call_operand.vmem [shape: f32[16,128], index: 7, kind: output, shape index: {}]
  %s8 = sld [smem:[#allocation0]]
  $region42: #{phase_transformer_forward.9} parent=0
    _
  %s10 = ssub.s32 1, %s8
  %s11 = scalar_select 0, %s10, %s8
  %12 = sst [smem:[#allocation2]] %s5
  %13 = sst [smem:[#allocation3]] %s6
  $region1: #{phase_transformer_forward.9} parent=0
    #allocation4 [shape = 'u8[32768]{0}', space=vmem, size = 0x8000, scoped, tag = 'input window, operand 3, single buffered']
    #allocation5 [shape = 's32[1]{0}', space=sflag, size = 0x4, scoped, tag = 'scoped memory for phase_transformer_forward.9']
    %14 = vsyncpa [#allocation5], 0
    // Predicated region
    $region2: #{phase_transformer_forward.9} parent=1 // pred_check
      _
    $region3: #{phase_transformer_forward.9} parent=1 // pred_check_branch
      %16 = sbr.rel (0) target = $region5
    $region4: #{phase_transformer_forward.9} parent=1 // pred_region
      _
    $region5: #{phase_transformer_forward.9} parent=1 // pred_fallthru
      _
    // Predicated region
    $region6: #{phase_transformer_forward.9} parent=1 // pred_check
      _
    $region7: #{phase_transformer_forward.9} parent=1 // pred_check_branch
      %18 = sbr.rel (0) target = $region9
    $region8: #{phase_transformer_forward.9} parent=1 // pred_region
      _
    $region9: #{phase_transformer_forward.9} parent=1 // pred_fallthru
      _
    // Predicated region
    $region10: #{phase_transformer_forward.9} parent=1 // pred_check
      _
    $region11: #{phase_transformer_forward.9} parent=1 // pred_check_branch
      %20 = sbr.rel (0) target = $region13
    $region12: #{phase_transformer_forward.9} parent=1 // pred_region
      _
    $region13: #{phase_transformer_forward.9} parent=1 // pred_fallthru
      _
    // Predicated region
    $region14: #{phase_transformer_forward.9} parent=1 // pred_check
      _
    $region15: #{phase_transformer_forward.9} parent=1 // pred_check_branch
      %22 = sbr.rel (0) target = $region17
    $region16: #{phase_transformer_forward.9} parent=1 // pred_region
      %s24 = ssub.s32 1024, 1024
      %25 = vsyncadd [#allocation5], %s24
      %s26 = sshll.u32 [#allocation4], 4
      %s27 = int_to_ptr.vmem [resolvable:$true] %s26
      %32 = dma.hbm_to_vmem [thread:$0]  %s3, 1024, %s27, [#allocation5], 64, 64, 4
    $region17: #{phase_transformer_forward.9} parent=1 // pred_fallthru
      _
    // Predicated region
    $region18: #{phase_transformer_forward.9} parent=1 // pred_check
      _
    $region19: #{phase_transformer_forward.9} parent=1 // pred_check_branch
      %34 = sbr.rel (0) target = $region21
    $region20: #{phase_transformer_forward.9} parent=1 // pred_region
      _
    $region21: #{phase_transformer_forward.9} parent=1 // pred_fallthru
      _
    // Predicated region
    $region22: #{phase_transformer_forward.9} parent=1 // pred_check
      _
    $region23: #{phase_transformer_forward.9} parent=1 // pred_check_branch
      %36 = sbr.rel (0) target = $region25
    $region24: #{phase_transformer_forward.9} parent=1 // pred_region
      _
    $region25: #{phase_transformer_forward.9} parent=1 // pred_fallthru
      _
    // Predicated region
    $region26: #{phase_transformer_forward.9} parent=1 // pred_check
      _
    $region27: #{phase_transformer_forward.9} parent=1 // pred_check_branch
      %38 = sbr.rel (0) target = $region29
    $region28: #{phase_transformer_forward.9} parent=1 // pred_region
      _
    $region29: #{phase_transformer_forward.9} parent=1 // pred_fallthru
      _
    // Predicated region
    $region30: #{phase_transformer_forward.9} parent=1 // pred_check
      _
    $region31: #{phase_transformer_forward.9} parent=1 // pred_check_branch
      %40 = sbr.rel (0) target = $region33
    $region32: #{phase_transformer_forward.9} parent=1 // pred_region
      %41 = dma.done [#allocation5], 1024
    $region33: #{phase_transformer_forward.9} parent=1 // pred_fallthru
      _
    %v43 = vld [vmem:[%s0] sm:$0xff]
    %v44 = vld [vmem:[%s0 + $0x8] sm:$0xff]
    %v45 = vld [vmem:[%s1] sm:$0x7]
    %v46 = vpack.c.bf16 %v44, %v43
    %v47 = vld [vmem:[%s2] sm:$0x1]
    %v49 = vlaneseq
    %v50 = vshrl.u32 %v49, 7
    %v51 = vsub.s32 0, %v50
    %v52 = vrot.slane %v47, %v51
    %vm54 = vcmask 39936
    %v56 = vsel %vm54, %v46, 0
    %vm58 = vcmask 1041408
    %vm59 = vcmask 1042432
    %v60 = vsel %vm58, 4294967295, 65535
    %v61 = vsel %vm59, %v60, 0
    %v63 = vand.u32 %v45, %v61
    %65 = vmatprep.subr.bf16.mxu0 0
    %66 = vmatpush1.bf16.msra.mxu0 0
    %67 = vmatprep.subr.bf16.mxu0 0
    %68 = vmatpush1.bf16.msra.mxu0 0
    %69 = vmatprep.subr.bf16.mxu0 0
    %70 = vmatpush1.bf16.msra.mxu0 0
    %71 = vmatprep.subr.bf16.mxu0 0
    %72 = vmatpush1.bf16.msra.mxu0 0
    %73 = vmatprep.subr.bf16.mxu0 0
    %74 = vmatpush1.bf16.msra.mxu0 0
    %75 = vmatprep.subr.bf16.mxu0 0
    %76 = vmatpush1.bf16.msra.mxu0 0
    %77 = vmatprep.subr.bf16.mxu0 0
    %78 = vmatpush1.bf16.msra.mxu0 0
    %79 = vmatprep.subr.bf16.mxu0 0
    %80 = vmatpush1.bf16.msra.mxu0 %v63
    %81 = vmatprep.subr.bf16.mxu0 0
    %82 = vmatpush2.bf16.msra.mxu0 0
    %83 = vmatprep.subr.bf16.mxu0 0
    %84 = vmatpush2.bf16.msra.mxu0 0
    %85 = vmatprep.subr.bf16.mxu0 0
    %86 = vmatpush2.bf16.msra.mxu0 0
    %87 = vmatprep.subr.bf16.mxu0 0
    %88 = vmatpush2.bf16.msra.mxu0 0
    %89 = vmatprep.subr.bf16.mxu0 0
    %90 = vmatpush2.bf16.msra.mxu0 0
    %91 = vmatprep.subr.bf16.mxu0 0
    %92 = vmatpush2.bf16.msra.mxu0 0
    %93 = vmatprep.subr.bf16.mxu0 0
    %94 = vmatpush2.bf16.msra.mxu0 0
    %95 = vmatprep.subr.bf16.mxu0 0
    %96 = vmatpush2.bf16.msra.mxu0 0
    %97 = vmatprep.mubr.bf16.mxu0 0
    %98 = vmatmul.mubr.bf16.gmra.mxu0 %v56
    %v99 = vpop.f32.mrf.mxu0
    %v100 = vadd.f32 %v52, %v99
    %v101 = vpop.f32.mrf.mxu0
    %v102 = vpop.f32.mrf.mxu0
    %v103 = vadd.f32 %v52, %v102
    %v104 = vpop.f32.mrf.mxu0
    %105 = vdwg.mxu0
    %vm106 = vcmp.ge.f32.partialorder %v100, 0.0
    %vm107 = vcmp.ge.f32.partialorder %v103, 0.0
    %s108 = sld [smem:[#allocation2]]
    %v109 = vstv %s108
    %v110 = vmul.f32 %v109, %v100
    %v111 = vmul.f32 %v109, %v103
    %v112 = vsel %vm106, %v100, %v110
    %v113 = vsel %vm107, %v103, %v111
    %v114 = vld [vmem:[#allocation4] sm:$0xf]
    %v115 = vld [vmem:[#allocation4 + $0x4] sm:$0xf]
    %v116 = vld [vmem:[#allocation4 + $0x8] sm:$0xf]
    %v117 = vld [vmem:[#allocation4 + $0xc] sm:$0xf]
    %v118 = vld [vmem:[#allocation4 + $0x10] sm:$0xf]
    %v119 = vld [vmem:[#allocation4 + $0x14] sm:$0xf]
    %v120 = vld [vmem:[#allocation4 + $0x18] sm:$0xf]
    %v121 = vld [vmem:[#allocation4 + $0x1c] sm:$0xf]
    %v122 = vld [vmem:[#allocation4 + $0x20] sm:$0xf]
    %v123 = vld [vmem:[#allocation4 + $0x24] sm:$0xf]
    %v124 = vld [vmem:[#allocation4 + $0x28] sm:$0xf]
    %v125 = vld [vmem:[#allocation4 + $0x2c] sm:$0xf]
    %v126 = vld [vmem:[#allocation4 + $0x30] sm:$0xf]
    %v127 = vld [vmem:[#allocation4 + $0x34] sm:$0xf]
    %v128 = vld [vmem:[#allocation4 + $0x38] sm:$0xf]
    %v129 = vld [vmem:[#allocation4 + $0x3c] sm:$0xf]
    %v130 = vpack.c.bf16 %v113, %v112
    %v131 = vld [vmem:[%s4] sm:$0x1]
    %v133 = vlaneseq
    %v134 = vshrl.u32 %v133, 7
    %v135 = vsub.s32 0, %v134
    %v136 = vrot.slane %v131, %v135
    %v154 = vunpack.c.l.b16 %v114
    %v155 = vunpack.c.l.b16 %v115
    %v156 = vunpack.c.l.b16 %v116
    %v157 = vunpack.c.l.b16 %v117
    %v158 = vunpack.c.l.b16 %v118
    %v159 = vunpack.c.l.b16 %v119
    %v160 = vunpack.c.l.b16 %v120
    %v161 = vunpack.c.l.b16 %v121
    %v162 = vunpack.c.l.b16 %v122
    %v163 = vunpack.c.l.b16 %v123
    %v164 = vunpack.c.l.b16 %v124
    %v165 = vunpack.c.l.b16 %v125
    %v166 = vunpack.c.l.b16 %v126
    %v167 = vunpack.c.l.b16 %v127
    %v168 = vunpack.c.l.b16 %v128
    %v169 = vunpack.c.l.b16 %v129
    %v170 = vpack.c.b16 %v155, %v154
    %v171 = vpack.c.b16 %v157, %v156
    %v172 = vpack.c.b16 %v159, %v158
    %v173 = vpack.c.b16 %v161, %v160
    %v174 = vpack.c.b16 %v163, %v162
    %v175 = vpack.c.b16 %v165, %v164
    %v176 = vpack.c.b16 %v167, %v166
    %v177 = vpack.c.b16 %v169, %v168
    %186 = vmatprep.subr.bf16.mxu0 0
    %187 = vmatpush1.bf16.msra.mxu0 %v177
    %188 = vmatprep.subr.bf16.mxu0 0
    %189 = vmatpush1.bf16.msra.mxu0 %v176
    %190 = vmatprep.subr.bf16.mxu0 0
    %191 = vmatpush1.bf16.msra.mxu0 %v175
    %192 = vmatprep.subr.bf16.mxu0 0
    %193 = vmatpush1.bf16.msra.mxu0 %v174
    %194 = vmatprep.subr.bf16.mxu0 0
    %195 = vmatpush1.bf16.msra.mxu0 %v173
    %196 = vmatprep.subr.bf16.mxu0 0
    %197 = vmatpush1.bf16.msra.mxu0 %v172
    %198 = vmatprep.subr.bf16.mxu0 0
    %199 = vmatpush1.bf16.msra.mxu0 %v171
    %200 = vmatprep.subr.bf16.mxu0 0
    %201 = vmatpush1.bf16.msra.mxu0 %v170
    %202 = vmatprep.subr.bf16.mxu0 0
    %203 = vmatpush2.bf16.msra.mxu0 0
    %204 = vmatprep.subr.bf16.mxu0 0
    %205 = vmatpush2.bf16.msra.mxu0 0
    %206 = vmatprep.subr.bf16.mxu0 0
    %207 = vmatpush2.bf16.msra.mxu0 0
    %208 = vmatprep.subr.bf16.mxu0 0
    %209 = vmatpush2.bf16.msra.mxu0 0
    %210 = vmatprep.subr.bf16.mxu0 0
    %211 = vmatpush2.bf16.msra.mxu0 0
    %212 = vmatprep.subr.bf16.mxu0 0
    %213 = vmatpush2.bf16.msra.mxu0 0
    %214 = vmatprep.subr.bf16.mxu0 0
    %215 = vmatpush2.bf16.msra.mxu0 0
    %216 = vmatprep.subr.bf16.mxu0 0
    %217 = vmatpush2.bf16.msra.mxu0 0
    %218 = vmatprep.mubr.bf16.mxu0 0
    %219 = vmatmul.mubr.bf16.gmra.mxu0 %v130
    %v220 = vpop.f32.mrf.mxu0
    %v221 = vadd.f32 %v136, %v220
    %v222 = vpop.f32.mrf.mxu0
    %v223 = vpop.f32.mrf.mxu0
    %v224 = vadd.f32 %v136, %v223
    %v225 = vpop.f32.mrf.mxu0
    %226 = vdwg.mxu0
    %vm227 = vcmp.ge.f32.partialorder %v221, 0.0
    %vm228 = vcmp.ge.f32.partialorder %v224, 0.0
    %s229 = sld [smem:[#allocation3]]
    %v230 = vstv %s229
    %v231 = vmul.f32 %v230, %v221
    %v232 = vmul.f32 %v230, %v224
    %v233 = vsel %vm227, %v221, %v231
    %v234 = vsel %vm228, %v224, %v232
    %235 = vst [vmem:[%s7] sm:$0xff] %v233
    %236 = vst [vmem:[%s7 + $0x8] sm:$0xff] %v234
    // Predicated region
    $region34: #{phase_transformer_forward.9} parent=1 // pred_check
      _
    $region35: #{phase_transformer_forward.9} parent=1 // pred_check_branch
      %238 = sbr.rel (0) target = $region37
    $region36: #{phase_transformer_forward.9} parent=1 // pred_region
      _
    $region37: #{phase_transformer_forward.9} parent=1 // pred_fallthru
      _
    // Predicated region
    $region38: #{phase_transformer_forward.9} parent=1 // pred_check
      _
    $region39: #{phase_transformer_forward.9} parent=1 // pred_check_branch
      %240 = sbr.rel (0) target = $region41
    $region40: #{phase_transformer_forward.9} parent=1 // pred_region
      _
    $region41: #{phase_transformer_forward.9} parent=1 // pred_fallthru
      _
    %241 = vsyncpa [#allocation5], 1

// kernel: phase_transformer_forward.11
$region0: #{phase_transformer_forward.11}
  #allocation0 [shape = 'u32[]', space=smem, size = 0x4, offset = 0x4, fixed_abs, tag = 'smem constant byte address 0x4 - core index']
  #allocation1 [shape = 'u32[144,128]{1,0:T(1,128)}', space=vmem, size = 0x12000, scoped, tag = 'internal scratch']
  %s0 = inlined_call_operand.vmem [shape: f32[16,128], index: 0, kind: input, shape index: {}]
  %s1 = inlined_call_operand.vmem [shape: f32[1,128], index: 1, kind: input, shape index: {}]
  %s2 = inlined_call_operand.vmem [shape: f32[1,128], index: 2, kind: input, shape index: {}]
  %s3 = inlined_call_operand.vmem [shape: bf16[128,384], index: 3, kind: input, shape index: {}]
  %s4 = inlined_call_operand.vmem [shape: f32[1,384], index: 4, kind: input, shape index: {}]
  %s5 = inlined_call_operand.vmem [shape: bf16[16,384], index: 5, kind: output, shape index: {}]
  %s6 = sld [smem:[#allocation0]]
  $region30: #{phase_transformer_forward.11} parent=0
    _
  %s8 = ssub.s32 1, %s6
  %s9 = scalar_select 0, %s8, %s6
  // Predicated region
  $region2: #{phase_transformer_forward.11} parent=0 // pred_check
    _
  $region3: #{phase_transformer_forward.11} parent=0 // pred_check_branch
    %11 = sbr.rel (0) target = $region5
  $region4: #{phase_transformer_forward.11} parent=0 // pred_region
    _
  $region5: #{phase_transformer_forward.11} parent=0 // pred_fallthru
    _
  // Predicated region
  $region6: #{phase_transformer_forward.11} parent=0 // pred_check
    _
  $region7: #{phase_transformer_forward.11} parent=0 // pred_check_branch
    %13 = sbr.rel (0) target = $region9
  $region8: #{phase_transformer_forward.11} parent=0 // pred_region
    _
  $region9: #{phase_transformer_forward.11} parent=0 // pred_fallthru
    _
  // Predicated region
  $region10: #{phase_transformer_forward.11} parent=0 // pred_check
    _
  $region11: #{phase_transformer_forward.11} parent=0 // pred_check_branch
    %15 = sbr.rel (0) target = $region13
  $region12: #{phase_transformer_forward.11} parent=0 // pred_region
    _
  $region13: #{phase_transformer_forward.11} parent=0 // pred_fallthru
    _
  // Predicated region
  $region14: #{phase_transformer_forward.11} parent=0 // pred_check
    _
  $region15: #{phase_transformer_forward.11} parent=0 // pred_check_branch
    %17 = sbr.rel (0) target = $region17
  $region16: #{phase_transformer_forward.11} parent=0 // pred_region
    _
  $region17: #{phase_transformer_forward.11} parent=0 // pred_fallthru
    _
  // Predicated region
  $region18: #{phase_transformer_forward.11} parent=0 // pred_check
    _
  $region19: #{phase_transformer_forward.11} parent=0 // pred_check_branch
    %19 = sbr.rel (0) target = $region21
  $region20: #{phase_transformer_forward.11} parent=0 // pred_region
    _
  $region21: #{phase_transformer_forward.11} parent=0 // pred_fallthru
    _
  %v21 = vld [vmem:[%s0] sm:$0xff]
  %v22 = vld [vmem:[%s0 + $0x8] sm:$0xff]
  %v23 = vld [vmem:[%s1] sm:$0x1]
  %v24 = vld [vmem:[%s2] sm:$0x1]
  %25 = vadd.xlane.f32.xlu0 %v21
  %v26 = vpop.xlane.xlu0 %25
  %27 = vadd.xlane.f32.xlu0 %v22
  %v28 = vpop.xlane.xlu0 %27
  %v29 = vrcp.pop 128.0
  %v30 = vmul.f32 %v26, %v29
  %v31 = vmul.f32 %v28, %v29
  %v32 = vsub.f32 %v21, %v30
  %v33 = vsub.f32 %v22, %v31
  %v34 = vmul.f32 %v32, %v32
  %v35 = vmul.f32 %v33, %v33
  %36 = vadd.xlane.f32.xlu0 %v34
  %v37 = vpop.xlane.xlu0 %36
  %38 = vadd.xlane.f32.xlu0 %v35
  %v39 = vpop.xlane.xlu0 %38
  %v40 = vmul.f32 %v37, %v29
  %v41 = vmul.f32 %v39, %v29
  %v42 = vadd.f32 %v40, 1e-06
  %v43 = vadd.f32 %v41, 1e-06
  %v44 = vrsqrt.pop %v42
  %v45 = vrsqrt.pop %v43
  %v46 = vmul.f32 %v32, %v44
  %v47 = vmul.f32 %v33, %v45
  %v49 = vlaneseq
  %v50 = vshrl.u32 %v49, 7
  %v51 = vsub.s32 0, %v50
  %v52 = vrot.slane %v23, %v51
  %v54 = vmul.f32 %v46, %v52
  %v55 = vmul.f32 %v47, %v52
  %v57 = vlaneseq
  %v58 = vshrl.u32 %v57, 7
  %v59 = vsub.s32 0, %v58
  %v60 = vrot.slane %v24, %v59
  %v62 = vadd.f32 %v54, %v60
  %v63 = vadd.f32 %v55, %v60
  %v64 = vld [vmem:[%s3] sm:$0xff]
  %v65 = vld [vmem:[%s3 + $0x8] sm:$0xf]
  %v66 = vld [vmem:[%s3 + $0xc] sm:$0xff]
  %v67 = vld [vmem:[%s3 + $0x14] sm:$0xf]
  %v68 = vld [vmem:[%s3 + $0x18] sm:$0xff]
  %v69 = vld [vmem:[%s3 + $0x20] sm:$0xf]
  %v70 = vld [vmem:[%s3 + $0x24] sm:$0xff]
  %v71 = vld [vmem:[%s3 + $0x2c] sm:$0xf]
  %v72 = vld [vmem:[%s3 + $0x30] sm:$0xff]
  %v73 = vld [vmem:[%s3 + $0x38] sm:$0xf]
  %v74 = vld [vmem:[%s3 + $0x3c] sm:$0xff]
  %v75 = vld [vmem:[%s3 + $0x44] sm:$0xf]
  %v76 = vld [vmem:[%s3 + $0x48] sm:$0xff]
  %v77 = vld [vmem:[%s3 + $0x50] sm:$0xf]
  %v78 = vld [vmem:[%s3 + $0x54] sm:$0xff]
  %v79 = vld [vmem:[%s3 + $0x5c] sm:$0xf]
  %v80 = vld [vmem:[%s3 + $0x60] sm:$0xff]
  %v81 = vld [vmem:[%s3 + $0x68] sm:$0xf]
  %v82 = vld [vmem:[%s3 + $0x6c] sm:$0xff]
  %v83 = vld [vmem:[%s3 + $0x74] sm:$0xf]
  %v84 = vld [vmem:[%s3 + $0x78] sm:$0xff]
  %v85 = vld [vmem:[%s3 + $0x80] sm:$0xf]
  %v86 = vld [vmem:[%s3 + $0x84] sm:$0xff]
  %v87 = vld [vmem:[%s3 + $0x8c] sm:$0xf]
  %v88 = vld [vmem:[%s3 + $0x90] sm:$0xff]
  %v89 = vld [vmem:[%s3 + $0x98] sm:$0xf]
  %v90 = vld [vmem:[%s3 + $0x9c] sm:$0xff]
  %v91 = vld [vmem:[%s3 + $0xa4] sm:$0xf]
  %v92 = vld [vmem:[%s3 + $0xa8] sm:$0xff]
  %v93 = vld [vmem:[%s3 + $0xb0] sm:$0xf]
  %v94 = vld [vmem:[%s3 + $0xb4] sm:$0xff]
  %v95 = vld [vmem:[%s3 + $0xbc] sm:$0xf]
  %v96 = vpack.c.bf16 %v63, %v62
  %v97 = vld [vmem:[%s4] sm:$0x7]
  %v99 = vlaneseq
  %v100 = vshrl.u32 %v99, 7
  %v101 = vsub.s32 0, %v100
  %v102 = vrot.slane %v97, %v101
  %v103 = vlaneseq
  %v104 = vshrl.u32 %v103, 7
  %v105 = vsub.s32 1, %v104
  %v106 = vrot.slane %v97, %v105
  %v107 = vlaneseq
  %v108 = vshrl.u32 %v107, 7
  %v109 = vsub.s32 2, %v108
  %v110 = vrot.slane %v97, %v109
  %v146 = vunpack.c.l.b16 %v64
  %v147 = vunpack.c.h.b16 %v64
  %v148 = vunpack.c.l.b16 %v65
  %v149 = vunpack.c.l.b16 %v66
  %v150 = vunpack.c.h.b16 %v66
  %v151 = vunpack.c.l.b16 %v67
  %v152 = vunpack.c.l.b16 %v68
  %v153 = vunpack.c.h.b16 %v68
  %v154 = vunpack.c.l.b16 %v69
  %v155 = vunpack.c.l.b16 %v70
  %v156 = vunpack.c.h.b16 %v70
  %v157 = vunpack.c.l.b16 %v71
  %v158 = vunpack.c.l.b16 %v72
  %v159 = vunpack.c.h.b16 %v72
  %v160 = vunpack.c.l.b16 %v73
  %v161 = vunpack.c.l.b16 %v74
  %v162 = vunpack.c.h.b16 %v74
  %v163 = vunpack.c.l.b16 %v75
  %v164 = vunpack.c.l.b16 %v76
  %v165 = vunpack.c.h.b16 %v76
  %v166 = vunpack.c.l.b16 %v77
  %v167 = vunpack.c.l.b16 %v78
  %v168 = vunpack.c.h.b16 %v78
  %v169 = vunpack.c.l.b16 %v79
  %v170 = vunpack.c.l.b16 %v80
  %v171 = vunpack.c.h.b16 %v80
  %v172 = vunpack.c.l.b16 %v81
  %v173 = vunpack.c.l.b16 %v82
  %v174 = vunpack.c.h.b16 %v82
  %v175 = vunpack.c.l.b16 %v83
  %v176 = vunpack.c.l.b16 %v84
  %v177 = vunpack.c.h.b16 %v84
  %v178 = vunpack.c.l.b16 %v85
  %v179 = vunpack.c.l.b16 %v86
  %v180 = vunpack.c.h.b16 %v86
  %v181 = vunpack.c.l.b16 %v87
  %v182 = vunpack.c.l.b16 %v88
  %v183 = vunpack.c.h.b16 %v88
  %v184 = vunpack.c.l.b16 %v89
  %v185 = vunpack.c.l.b16 %v90
  %v186 = vunpack.c.h.b16 %v90
  %v187 = vunpack.c.l.b16 %v91
  %v188 = vunpack.c.l.b16 %v92
  %v189 = vunpack.c.h.b16 %v92
  %v190 = vunpack.c.l.b16 %v93
  %v191 = vunpack.c.l.b16 %v94
  %v192 = vunpack.c.h.b16 %v94
  %v193 = vunpack.c.l.b16 %v95
  %v194 = vpack.c.b16 %v149, %v146
  %v195 = vpack.c.b16 %v150, %v147
  %v196 = vpack.c.b16 %v151, %v148
  %v197 = vpack.c.b16 %v155, %v152
  %v198 = vpack.c.b16 %v156, %v153
  %v199 = vpack.c.b16 %v157, %v154
  %v200 = vpack.c.b16 %v161, %v158
  %v201 = vpack.c.b16 %v162, %v159
  %v202 = vpack.c.b16 %v163, %v160
  %v203 = vpack.c.b16 %v167, %v164
  %v204 = vpack.c.b16 %v168, %v165
  %v205 = vpack.c.b16 %v169, %v166
  %v206 = vpack.c.b16 %v173, %v170
  %v207 = vpack.c.b16 %v174, %v171
  %v208 = vpack.c.b16 %v175, %v172
  %v209 = vpack.c.b16 %v179, %v176
  %v210 = vpack.c.b16 %v180, %v177
  %v211 = vpack.c.b16 %v181, %v178
  %v212 = vpack.c.b16 %v185, %v182
  %v213 = vpack.c.b16 %v186, %v183
  %v214 = vpack.c.b16 %v187, %v184
  %v215 = vpack.c.b16 %v191, %v188
  %v216 = vpack.c.b16 %v192, %v189
  %v217 = vpack.c.b16 %v193, %v190
  %242 = vmatprep.subr.bf16.mxu0 %v216
  %243 = vmatpush1.bf16.msra.mxu0 %v215
  %244 = vmatprep.subr.bf16.mxu0 %v213
  %245 = vmatpush1.bf16.msra.mxu0 %v212
  %246 = vmatprep.subr.bf16.mxu0 %v210
  %247 = vmatpush1.bf16.msra.mxu0 %v209
  %248 = vmatprep.subr.bf16.mxu0 %v207
  %249 = vmatpush1.bf16.msra.mxu0 %v206
  %250 = vmatprep.subr.bf16.mxu0 %v204
  %251 = vmatpush1.bf16.msra.mxu0 %v203
  %252 = vmatprep.subr.bf16.mxu0 %v201
  %253 = vmatpush1.bf16.msra.mxu0 %v200
  %254 = vmatprep.subr.bf16.mxu0 %v198
  %255 = vmatpush1.bf16.msra.mxu0 %v197
  %256 = vmatprep.subr.bf16.mxu0 %v195
  %257 = vmatpush1.bf16.msra.mxu0 %v194
  %258 = vmatprep.subr.bf16.mxu0 0
  %259 = vmatpush2.bf16.msra.mxu0 0
  %260 = vmatprep.subr.bf16.mxu0 0
  %261 = vmatpush2.bf16.msra.mxu0 0
  %262 = vmatprep.subr.bf16.mxu0 0
  %263 = vmatpush2.bf16.msra.mxu0 0
  %264 = vmatprep.subr.bf16.mxu0 0
  %265 = vmatpush2.bf16.msra.mxu0 0
  %266 = vmatprep.subr.bf16.mxu0 0
  %267 = vmatpush2.bf16.msra.mxu0 0
  %268 = vmatprep.subr.bf16.mxu0 0
  %269 = vmatpush2.bf16.msra.mxu0 0
  %270 = vmatprep.subr.bf16.mxu0 0
  %271 = vmatpush2.bf16.msra.mxu0 0
  %272 = vmatprep.subr.bf16.mxu0 0
  %273 = vmatpush2.bf16.msra.mxu0 0
  %274 = vmatprep.mubr.bf16.mxu0 0
  %275 = vmatmul.mubr.bf16.gmra.mxu0 %v96
  %v276 = vpop.f32.mrf.mxu0
  %v277 = vadd.f32 %v102, %v276
  %v278 = vpop.f32.mrf.mxu0
  %v279 = vadd.f32 %v106, %v278
  %v280 = vpop.f32.mrf.mxu0
  %v281 = vadd.f32 %v102, %v280
  %v282 = vpop.f32.mrf.mxu0
  %v283 = vadd.f32 %v106, %v282
  %284 = vdwg.mxu0
  %285 = vmatprep.subr.bf16.mxu0 0
  %286 = vmatpush1.bf16.msra.mxu0 %v217
  %287 = vmatprep.subr.bf16.mxu0 0
  %288 = vmatpush1.bf16.msra.mxu0 %v214
  %289 = vmatprep.subr.bf16.mxu0 0
  %290 = vmatpush1.bf16.msra.mxu0 %v211
  %291 = vmatprep.subr.bf16.mxu0 0
  %292 = vmatpush1.bf16.msra.mxu0 %v208
  %293 = vmatprep.subr.bf16.mxu0 0
  %294 = vmatpush1.bf16.msra.mxu0 %v205
  %295 = vmatprep.subr.bf16.mxu0 0
  %296 = vmatpush1.bf16.msra.mxu0 %v202
  %297 = vmatprep.subr.bf16.mxu0 0
  %298 = vmatpush1.bf16.msra.mxu0 %v199
  %299 = vmatprep.subr.bf16.mxu0 0
  %300 = vmatpush1.bf16.msra.mxu0 %v196
  %301 = vmatprep.subr.bf16.mxu0 0
  %302 = vmatpush2.bf16.msra.mxu0 0
  %303 = vmatprep.subr.bf16.mxu0 0
  %304 = vmatpush2.bf16.msra.mxu0 0
  %305 = vmatprep.subr.bf16.mxu0 0
  %306 = vmatpush2.bf16.msra.mxu0 0
  %307 = vmatprep.subr.bf16.mxu0 0
  %308 = vmatpush2.bf16.msra.mxu0 0
  %309 = vmatprep.subr.bf16.mxu0 0
  %310 = vmatpush2.bf16.msra.mxu0 0
  %311 = vmatprep.subr.bf16.mxu0 0
  %312 = vmatpush2.bf16.msra.mxu0 0
  %313 = vmatprep.subr.bf16.mxu0 0
  %314 = vmatpush2.bf16.msra.mxu0 0
  %315 = vmatprep.subr.bf16.mxu0 0
  %316 = vmatpush2.bf16.msra.mxu0 0
  %317 = vmatprep.mubr.bf16.mxu0 0
  %318 = vmatmul.mubr.bf16.gmra.mxu0 %v96
  %v319 = vpop.f32.mrf.mxu0
  %v320 = vadd.f32 %v110, %v319
  %v321 = vpop.f32.mrf.mxu0
  %v322 = vpop.f32.mrf.mxu0
  %v323 = vadd.f32 %v110, %v322
  %v324 = vpop.f32.mrf.mxu0
  %325 = vdwg.mxu0
  %v326 = vpack.c.bf16 %v281, %v277
  %v327 = vpack.c.bf16 %v283, %v279
  %v328 = vpack.c.bf16 %v323, %v320
  %v332 = vunpack.c.l.b16 %v326
  %v333 = vunpack.c.l.b16 %v327
  %v334 = vunpack.c.l.b16 %v328
  %v335 = vunpack.c.h.b16 %v326
  %v336 = vunpack.c.h.b16 %v327
  %v337 = vunpack.c.h.b16 %v328
  %v338 = vpack.c.b16 %v333, %v332
  %v339 = vpack.c.b16 %v334, %v334
  %v340 = vpack.c.b16 %v336, %v335
  %v341 = vpack.c.b16 %v337, %v337
  %346 = vst [vmem:[%s5] sm:$0xff] %v338
  %347 = vst [vmem:[%s5 + $0x8] sm:$0xf] %v339
  %348 = vst [vmem:[%s5 + $0xc] sm:$0xff] %v340
  %349 = vst [vmem:[%s5 + $0x14] sm:$0xf] %v341
  // Predicated region
  $region22: #{phase_transformer_forward.11} parent=0 // pred_check
    _
  $region23: #{phase_transformer_forward.11} parent=0 // pred_check_branch
    %351 = sbr.rel (0) target = $region25
  $region24: #{phase_transformer_forward.11} parent=0 // pred_region
    _
  $region25: #{phase_transformer_forward.11} parent=0 // pred_fallthru
    _
  // Predicated region
  $region26: #{phase_transformer_forward.11} parent=0 // pred_check
    _
  $region27: #{phase_transformer_forward.11} parent=0 // pred_check_branch
    %353 = sbr.rel (0) target = $region29
  $region28: #{phase_transformer_forward.11} parent=0 // pred_region
    _
  $region29: #{phase_transformer_forward.11} parent=0 // pred_fallthru
    _

// kernel: phase_transformer_forward.10
$region0: #{phase_transformer_forward.10}
  #allocation0 [shape = 'u32[]', space=smem, size = 0x4, offset = 0x4, fixed_abs, tag = 'smem constant byte address 0x4 - core index']
  #allocation1 [shape = 'u32[144,128]{1,0:T(1,128)}', space=vmem, size = 0x12000, scoped, tag = 'internal scratch']
  #allocation2 [shape = 'f32[1]{0:T(128)S(6)}', space=smem, size = 0x200, scoped, tag = 'scoped memory for phase_transformer_forward.10']
  #allocation3 [shape = 'f32[1]{0:T(128)S(6)}', space=smem, size = 0x200, scoped, tag = 'scoped memory for phase_transformer_forward.10']
  %s0 = inlined_call_operand.vmem [shape: f32[15,1], index: 0, kind: input, shape index: {}]
  %s1 = inlined_call_operand.vmem [shape: bf16[1,128], index: 1, kind: input, shape index: {}]
  %s2 = inlined_call_operand.vmem [shape: f32[1,128], index: 2, kind: input, shape index: {}]
  %s3 = inlined_call_operand.vmem [shape: bf16[128,32], index: 3, kind: input, shape index: {}]
  %s4 = inlined_call_operand.vmem [shape: f32[1,32], index: 4, kind: input, shape index: {}]
  %s5 = inlined_call_operand.<no memory space> [shape: f32[1], index: 5, kind: input, shape index: {}]
  %s6 = inlined_call_operand.<no memory space> [shape: f32[1], index: 6, kind: input, shape index: {}]
  %s7 = inlined_call_operand.vmem [shape: f32[15,32], index: 7, kind: output, shape index: {}]
  %s8 = sld [smem:[#allocation0]]
  $region38: #{phase_transformer_forward.10} parent=0
    _
  %s10 = ssub.s32 1, %s8
  %s11 = scalar_select 0, %s10, %s8
  %12 = sst [smem:[#allocation2]] %s5
  %13 = sst [smem:[#allocation3]] %s6
  // Predicated region
  $region2: #{phase_transformer_forward.10} parent=0 // pred_check
    _
  $region3: #{phase_transformer_forward.10} parent=0 // pred_check_branch
    %15 = sbr.rel (0) target = $region5
  $region4: #{phase_transformer_forward.10} parent=0 // pred_region
    _
  $region5: #{phase_transformer_forward.10} parent=0 // pred_fallthru
    _
  // Predicated region
  $region6: #{phase_transformer_forward.10} parent=0 // pred_check
    _
  $region7: #{phase_transformer_forward.10} parent=0 // pred_check_branch
    %17 = sbr.rel (0) target = $region9
  $region8: #{phase_transformer_forward.10} parent=0 // pred_region
    _
  $region9: #{phase_transformer_forward.10} parent=0 // pred_fallthru
    _
  // Predicated region
  $region10: #{phase_transformer_forward.10} parent=0 // pred_check
    _
  $region11: #{phase_transformer_forward.10} parent=0 // pred_check_branch
    %19 = sbr.rel (0) target = $region13
  $region12: #{phase_transformer_forward.10} parent=0 // pred_region
    _
  $region13: #{phase_transformer_forward.10} parent=0 // pred_fallthru
    _
  // Predicated region
  $region14: #{phase_transformer_forward.10} parent=0 // pred_check
    _
  $region15: #{phase_transformer_forward.10} parent=0 // pred_check_branch
    %21 = sbr.rel (0) target = $region17
  $region16: #{phase_transformer_forward.10} parent=0 // pred_region
    _
  $region17: #{phase_transformer_forward.10} parent=0 // pred_fallthru
    _
  // Predicated region
  $region18: #{phase_transformer_forward.10} parent=0 // pred_check
    _
  $region19: #{phase_transformer_forward.10} parent=0 // pred_check_branch
    %23 = sbr.rel (0) target = $region21
  $region20: #{phase_transformer_forward.10} parent=0 // pred_region
    _
  $region21: #{phase_transformer_forward.10} parent=0 // pred_fallthru
    _
  // Predicated region
  $region22: #{phase_transformer_forward.10} parent=0 // pred_check
    _
  $region23: #{phase_transformer_forward.10} parent=0 // pred_check_branch
    %25 = sbr.rel (0) target = $region25
  $region24: #{phase_transformer_forward.10} parent=0 // pred_region
    _
  $region25: #{phase_transformer_forward.10} parent=0 // pred_fallthru
    _
  // Predicated region
  $region26: #{phase_transformer_forward.10} parent=0 // pred_check
    _
  $region27: #{phase_transformer_forward.10} parent=0 // pred_check_branch
    %27 = sbr.rel (0) target = $region29
  $region28: #{phase_transformer_forward.10} parent=0 // pred_region
    _
  $region29: #{phase_transformer_forward.10} parent=0 // pred_fallthru
    _
  %v29 = vld [vmem:[%s0] sm:$0xff]
  %v30 = vld [vmem:[%s0 + $0x8] sm:$0x7f]
  %v31 = vld [vmem:[%s1] sm:$0x1]
  %v32 = vunpack.c.l.bf16 %v31
  %34 = vset.pattern.permute.xlu0 0
  %35 = vperm.xlu0 %34, %v29
  %v36 = vpop.permute.xlu0 %35
  %39 = vset.pattern.permute.xlu0 0
  %40 = vperm.xlu0 %39, %v30
  %v41 = vpop.permute.xlu0 %40
  %v43 = vlaneseq
  %v44 = vshrl.u32 %v43, 7
  %v45 = vsub.s32 0, %v44
  %v46 = vrot.slane %v32, %v45
  %v47 = vmul.f32 %v36, %v46
  %v48 = vmul.f32 %v41, %v46
  %v49 = vld [vmem:[%s2] sm:$0x1]
  %v51 = vlaneseq
  %v52 = vshrl.u32 %v51, 7
  %v53 = vsub.s32 0, %v52
  %v54 = vrot.slane %v49, %v53
  %v56 = vadd.f32 %v47, %v54
  %v57 = vadd.f32 %v48, %v54
  %vm58 = vcmp.ge.f32.partialorder %v56, 0.0
  %vm59 = vcmp.ge.f32.partialorder %v57, 0.0
  %s60 = sld [smem:[#allocation2]]
  %v61 = vstv %s60
  %v62 = vmul.f32 %v61, %v56
  %v63 = vmul.f32 %v61, %v57
  %v64 = vsel %vm58, %v56, %v62
  %v65 = vsel %vm59, %v57, %v63
  %v66 = vld [vmem:[%s3] sm:$0xf]
  %v67 = vld [vmem:[%s3 + $0x4] sm:$0xf]
  %v68 = vld [vmem:[%s3 + $0x8] sm:$0xf]
  %v69 = vld [vmem:[%s3 + $0xc] sm:$0xf]
  %v70 = vld [vmem:[%s3 + $0x10] sm:$0xf]
  %v71 = vld [vmem:[%s3 + $0x14] sm:$0xf]
  %v72 = vld [vmem:[%s3 + $0x18] sm:$0xf]
  %v73 = vld [vmem:[%s3 + $0x1c] sm:$0xf]
  %v74 = vld [vmem:[%s3 + $0x20] sm:$0xf]
  %v75 = vld [vmem:[%s3 + $0x24] sm:$0xf]
  %v76 = vld [vmem:[%s3 + $0x28] sm:$0xf]
  %v77 = vld [vmem:[%s3 + $0x2c] sm:$0xf]
  %v78 = vld [vmem:[%s3 + $0x30] sm:$0xf]
  %v79 = vld [vmem:[%s3 + $0x34] sm:$0xf]
  %v80 = vld [vmem:[%s3 + $0x38] sm:$0xf]
  %v81 = vld [vmem:[%s3 + $0x3c] sm:$0xf]
  %v82 = vpack.c.bf16 %v65, %v64
  %v83 = vld [vmem:[%s4] sm:$0x1]
  %v85 = vlaneseq
  %v86 = vshrl.u32 %v85, 7
  %v87 = vsub.s32 0, %v86
  %v88 = vrot.slane %v83, %v87
  %v106 = vunpack.c.l.b16 %v66
  %v107 = vunpack.c.l.b16 %v67
  %v108 = vunpack.c.l.b16 %v68
  %v109 = vunpack.c.l.b16 %v69
  %v110 = vunpack.c.l.b16 %v70
  %v111 = vunpack.c.l.b16 %v71
  %v112 = vunpack.c.l.b16 %v72
  %v113 = vunpack.c.l.b16 %v73
  %v114 = vunpack.c.l.b16 %v74
  %v115 = vunpack.c.l.b16 %v75
  %v116 = vunpack.c.l.b16 %v76
  %v117 = vunpack.c.l.b16 %v77
  %v118 = vunpack.c.l.b16 %v78
  %v119 = vunpack.c.l.b16 %v79
  %v120 = vunpack.c.l.b16 %v80
  %v121 = vunpack.c.l.b16 %v81
  %v122 = vpack.c.b16 %v107, %v106
  %v123 = vpack.c.b16 %v109, %v108
  %v124 = vpack.c.b16 %v111, %v110
  %v125 = vpack.c.b16 %v113, %v112
  %v126 = vpack.c.b16 %v115, %v114
  %v127 = vpack.c.b16 %v117, %v116
  %v128 = vpack.c.b16 %v119, %v118
  %v129 = vpack.c.b16 %v121, %v120
  %138 = vmatprep.subr.bf16.mxu0 0
  %139 = vmatpush1.bf16.msra.mxu0 %v129
  %140 = vmatprep.subr.bf16.mxu0 0
  %141 = vmatpush1.bf16.msra.mxu0 %v128
  %142 = vmatprep.subr.bf16.mxu0 0
  %143 = vmatpush1.bf16.msra.mxu0 %v127
  %144 = vmatprep.subr.bf16.mxu0 0
  %145 = vmatpush1.bf16.msra.mxu0 %v126
  %146 = vmatprep.subr.bf16.mxu0 0
  %147 = vmatpush1.bf16.msra.mxu0 %v125
  %148 = vmatprep.subr.bf16.mxu0 0
  %149 = vmatpush1.bf16.msra.mxu0 %v124
  %150 = vmatprep.subr.bf16.mxu0 0
  %151 = vmatpush1.bf16.msra.mxu0 %v123
  %152 = vmatprep.subr.bf16.mxu0 0
  %153 = vmatpush1.bf16.msra.mxu0 %v122
  %154 = vmatprep.subr.bf16.mxu0 0
  %155 = vmatpush2.bf16.msra.mxu0 0
  %156 = vmatprep.subr.bf16.mxu0 0
  %157 = vmatpush2.bf16.msra.mxu0 0
  %158 = vmatprep.subr.bf16.mxu0 0
  %159 = vmatpush2.bf16.msra.mxu0 0
  %160 = vmatprep.subr.bf16.mxu0 0
  %161 = vmatpush2.bf16.msra.mxu0 0
  %162 = vmatprep.subr.bf16.mxu0 0
  %163 = vmatpush2.bf16.msra.mxu0 0
  %164 = vmatprep.subr.bf16.mxu0 0
  %165 = vmatpush2.bf16.msra.mxu0 0
  %166 = vmatprep.subr.bf16.mxu0 0
  %167 = vmatpush2.bf16.msra.mxu0 0
  %168 = vmatprep.subr.bf16.mxu0 0
  %169 = vmatpush2.bf16.msra.mxu0 0
  %170 = vmatprep.mubr.bf16.mxu0 0
  %171 = vmatmul.mubr.bf16.gmra.mxu0 %v82
  %v172 = vpop.f32.mrf.mxu0
  %v173 = vadd.f32 %v88, %v172
  %v174 = vpop.f32.mrf.mxu0
  %v175 = vpop.f32.mrf.mxu0
  %v176 = vadd.f32 %v88, %v175
  %v177 = vpop.f32.mrf.mxu0
  %178 = vdwg.mxu0
  %vm179 = vcmask 261120
  %180 = vst.msk [vmem:[%s7] sm:$0xff] %vm179, %v173
  %vm181 = vcmask 260096
  %182 = vst.msk [vmem:[%s7 + $0x8] sm:$0x7f] %vm181, %v176
  // Predicated region
  $region30: #{phase_transformer_forward.10} parent=0 // pred_check
    _
  $region31: #{phase_transformer_forward.10} parent=0 // pred_check_branch
    %184 = sbr.rel (0) target = $region33
  $region32: #{phase_transformer_forward.10} parent=0 // pred_region
    _
  $region33: #{phase_transformer_forward.10} parent=0 // pred_fallthru
    _
  // Predicated region
  $region34: #{phase_transformer_forward.10} parent=0 // pred_check
    _
  $region35: #{phase_transformer_forward.10} parent=0 // pred_check_branch
    %186 = sbr.rel (0) target = $region37
  $region36: #{phase_transformer_forward.10} parent=0 // pred_region
    _
  $region37: #{phase_transformer_forward.10} parent=0 // pred_fallthru
    _

// kernel: phase_transformer_forward.12
$region0: #{phase_transformer_forward.12}
  #allocation0 [shape = 'u32[]', space=smem, size = 0x4, offset = 0x4, fixed_abs, tag = 'smem constant byte address 0x4 - core index']
  #allocation1 [shape = 'u32[144,128]{1,0:T(1,128)}', space=vmem, size = 0x12000, scoped, tag = 'internal scratch']
  %s0 = inlined_call_operand.vmem [shape: bf16[2,4,8,32], index: 0, kind: input, shape index: {}]
  %s1 = inlined_call_operand.vmem [shape: bf16[2,4,32,8], index: 1, kind: input, shape index: {}]
  %s2 = inlined_call_operand.vmem [shape: bf16[2,4,8,32], index: 2, kind: input, shape index: {}]
  %s3 = inlined_call_operand.vmem [shape: bf16[32,128], index: 3, kind: input, shape index: {}]
  %s4 = inlined_call_operand.vmem [shape: f32[2,4,8,1], index: 4, kind: input, shape index: {}]
  %s5 = inlined_call_operand.vmem [shape: f32[2,4,1,8], index: 5, kind: input, shape index: {}]
  %s6 = inlined_call_operand.vmem [shape: bf16[2,4,8,32], index: 6, kind: output, shape index: {}]
  %s7 = sld [smem:[#allocation0]]
  $region57: #{phase_transformer_forward.12} parent=0
    _
  %s9 = ssub.s32 1, %s7
  %s10 = scalar_select 0, %s9, %s7
  loop: start=0, step=1, limit=10
  $region2: #{phase_transformer_forward.12} parent=0 // loop_pre_header
    _
  $region3: #{phase_transformer_forward.12} parent=0 // loop_header
    %s12 = sphi 0, %s16
    %p13 = scmp.ge.s32.totalorder %s12, 10
    %s19 = sphi 0, %s31
    %s20 = sphi 0, %s27
    %s21 = sphi 0, %s19
    %s22 = sphi 0, %s20
    %s23 = sphi 0, %s21
    %s24 = sphi 0, %s22
    %s36 = sphi 0, %s38
    %s39 = sphi 0, %s36
    %s40 = sphi 0, %s39
    %s56 = sphi 0, %s40
    %s64 = sphi 0, %s66
    %s67 = sphi 0, %s64
    %s68 = sphi 0, %s67
    %s84 = sphi 0, %s68
    %s92 = sphi 0, %s94
    %s95 = sphi 0, %s92
    %s96 = sphi 0, %s95
    %s112 = sphi 0, %s96
    %s116 = sphi 0, %s116
    %s118 = sphi 0, %s116
    %s119 = sphi 0, %s118
    %s133 = sphi 0, %s119
    %s141 = sphi 0, %s143
    %s144 = sphi 0, %s141
    %s145 = sphi 0, %s144
    %s161 = sphi 0, %s145
    %s169 = sphi 0, %s171
    %s172 = sphi 0, %s169
    %s173 = sphi 0, %s172
    %s189 = sphi 0, %s173
    %s197 = sphi 0, %s199
    %s200 = sphi 0, %s197
    %s201 = sphi 0, %s200
    %s217 = sphi 0, %s201
  $region4: #{phase_transformer_forward.12} parent=0 // loop_header_branch
    %15 = sbr.rel (%p13) target = $region8
  $region5: #{phase_transformer_forward.12} parent=0 // loop_body
    %s17 = ssub.s32 %s12, 1
    %s18 = ssub.s32 %s12, 2
    %s25 = sadd.s32 1, %s20
    %p26 = scmp.ge.s32.totalorder %s25, 4
    %s27 = scalar_select %p26, 0, %s25
    %s28 = sadd.s32 1, %s19
    %s29 = scalar_select %p26, %s28, %s19
    %p30 = scmp.ge.s32.totalorder %s29, 2
    %s31 = scalar_select %p30, 0, %s29
    %s32 = ssub.s32 %s19, %s31
    %s33 = ssub.s32 %s20, %s27
    %s34 = sor.u32 %s32, %s33
    %p35 = scmp.eq.s32.totalorder %s34, 0
    %s37 = sadd.s32 %s36, 1
    %s38 = scalar_select %p35, %s36, %s37
    %p41 = pneg %p35
    %p42 = scmp.eq.s32.totalorder %s12, 7
    %p43 = por %p41, %p42
    %p44 = scmp.ne.s32.totalorder %s36, %s39
    %p45 = scmp.eq.s32.totalorder %s12, 0
    %p46 = por %p44, %p45
    %p47 = scmp.ne.s32.totalorder %s36, %s39
    %p48 = scmp.eq.s32.totalorder %s17, 7
    %p49 = por %p47, %p48
    %p50 = scmp.ne.s32.totalorder %s39, %s40
    %p51 = scmp.eq.s32.totalorder %s17, 0
    %p52 = por %p50, %p51
    %p53 = scmp.ne.s32.totalorder %s39, %s40
    %p54 = scmp.eq.s32.totalorder %s18, 7
    %p55 = por %p53, %p54
    %p57 = scmp.ne.s32.totalorder %s40, %s56
    %p58 = scmp.eq.s32.totalorder %s18, 0
    %p59 = por %p57, %p58
    %s60 = ssub.s32 %s19, %s31
    %s61 = ssub.s32 %s20, %s27
    %s62 = sor.u32 %s60, %s61
    %p63 = scmp.eq.s32.totalorder %s62, 0
    %s65 = sadd.s32 %s64, 1
    %s66 = scalar_select %p63, %s64, %s65
    %p69 = pneg %p63
    %p70 = scmp.eq.s32.totalorder %s12, 7
    %p71 = por %p69, %p70
    %p72 = scmp.ne.s32.totalorder %s64, %s67
    %p73 = scmp.eq.s32.totalorder %s12, 0
    %p74 = por %p72, %p73
    %p75 = scmp.ne.s32.totalorder %s64, %s67
    %p76 = scmp.eq.s32.totalorder %s17, 7
    %p77 = por %p75, %p76
    %p78 = scmp.ne.s32.totalorder %s67, %s68
    %p79 = scmp.eq.s32.totalorder %s17, 0
    %p80 = por %p78, %p79
    %p81 = scmp.ne.s32.totalorder %s67, %s68
    %p82 = scmp.eq.s32.totalorder %s18, 7
    %p83 = por %p81, %p82
    %p85 = scmp.ne.s32.totalorder %s68, %s84
    %p86 = scmp.eq.s32.totalorder %s18, 0
    %p87 = por %p85, %p86
    %s88 = ssub.s32 %s19, %s31
    %s89 = ssub.s32 %s20, %s27
    %s90 = sor.u32 %s88, %s89
    %p91 = scmp.eq.s32.totalorder %s90, 0
    %s93 = sadd.s32 %s92, 1
    %s94 = scalar_select %p91, %s92, %s93
    %p97 = pneg %p91
    %p98 = scmp.eq.s32.totalorder %s12, 7
    %p99 = por %p97, %p98
    %p100 = scmp.ne.s32.totalorder %s92, %s95
    %p101 = scmp.eq.s32.totalorder %s12, 0
    %p102 = por %p100, %p101
    %p103 = scmp.ne.s32.totalorder %s92, %s95
    %p104 = scmp.eq.s32.totalorder %s17, 7
    %p105 = por %p103, %p104
    %p106 = scmp.ne.s32.totalorder %s95, %s96
    %p107 = scmp.eq.s32.totalorder %s17, 0
    %p108 = por %p106, %p107
    %p109 = scmp.ne.s32.totalorder %s95, %s96
    %p110 = scmp.eq.s32.totalorder %s18, 7
    %p111 = por %p109, %p110
    %p113 = scmp.ne.s32.totalorder %s96, %s112
    %p114 = scmp.eq.s32.totalorder %s18, 0
    %p115 = por %p113, %p114
    %s117 = sadd.s32 %s116, 1
    %p120 = scmp.eq.s32.totalorder %s12, 7
    %p121 = scmp.ne.s32.totalorder %s116, %s118
    %p122 = scmp.eq.s32.totalorder %s12, 0
    %p123 = por %p121, %p122
    %p124 = scmp.ne.s32.totalorder %s116, %s118
    %p125 = scmp.eq.s32.totalorder %s17, 7
    %p126 = por %p124, %p125
    %p127 = scmp.ne.s32.totalorder %s118, %s119
    %p128 = scmp.eq.s32.totalorder %s17, 0
    %p129 = por %p127, %p128
    %p130 = scmp.ne.s32.totalorder %s118, %s119
    %p131 = scmp.eq.s32.totalorder %s18, 7
    %p132 = por %p130, %p131
    %p134 = scmp.ne.s32.totalorder %s119, %s133
    %p135 = scmp.eq.s32.totalorder %s18, 0
    %p136 = por %p134, %p135
    %s137 = ssub.s32 %s19, %s31
    %s138 = ssub.s32 %s20, %s27
    %s139 = sor.u32 %s137, %s138
    %p140 = scmp.eq.s32.totalorder %s139, 0
    %s142 = sadd.s32 %s141, 1
    %s143 = scalar_select %p140, %s141, %s142
    %p146 = pneg %p140
    %p147 = scmp.eq.s32.totalorder %s12, 7
    %p148 = por %p146, %p147
    %p149 = scmp.ne.s32.totalorder %s141, %s144
    %p150 = scmp.eq.s32.totalorder %s12, 0
    %p151 = por %p149, %p150
    %p152 = scmp.ne.s32.totalorder %s141, %s144
    %p153 = scmp.eq.s32.totalorder %s17, 7
    %p154 = por %p152, %p153
    %p155 = scmp.ne.s32.totalorder %s144, %s145
    %p156 = scmp.eq.s32.totalorder %s17, 0
    %p157 = por %p155, %p156
    %p158 = scmp.ne.s32.totalorder %s144, %s145
    %p159 = scmp.eq.s32.totalorder %s18, 7
    %p160 = por %p158, %p159
    %p162 = scmp.ne.s32.totalorder %s145, %s161
    %p163 = scmp.eq.s32.totalorder %s18, 0
    %p164 = por %p162, %p163
    %s165 = ssub.s32 %s19, %s31
    %s166 = ssub.s32 %s20, %s27
    %s167 = sor.u32 %s165, %s166
    %p168 = scmp.eq.s32.totalorder %s167, 0
    %s170 = sadd.s32 %s169, 1
    %s171 = scalar_select %p168, %s169, %s170
    %p174 = pneg %p168
    %p175 = scmp.eq.s32.totalorder %s12, 7
    %p176 = por %p174, %p175
    %p177 = scmp.ne.s32.totalorder %s169, %s172
    %p178 = scmp.eq.s32.totalorder %s12, 0
    %p179 = por %p177, %p178
    %p180 = scmp.ne.s32.totalorder %s169, %s172
    %p181 = scmp.eq.s32.totalorder %s17, 7
    %p182 = por %p180, %p181
    %p183 = scmp.ne.s32.totalorder %s172, %s173
    %p184 = scmp.eq.s32.totalorder %s17, 0
    %p185 = por %p183, %p184
    %p186 = scmp.ne.s32.totalorder %s172, %s173
    %p187 = scmp.eq.s32.totalorder %s18, 7
    %p188 = por %p186, %p187
    %p190 = scmp.ne.s32.totalorder %s173, %s189
    %p191 = scmp.eq.s32.totalorder %s18, 0
    %p192 = por %p190, %p191
    %s193 = ssub.s32 %s19, %s31
    %s194 = ssub.s32 %s20, %s27
    %s195 = sor.u32 %s193, %s194
    %p196 = scmp.eq.s32.totalorder %s195, 0
    %s198 = sadd.s32 %s197, 1
    %s199 = scalar_select %p196, %s197, %s198
    %p202 = pneg %p196
    %p203 = scmp.eq.s32.totalorder %s12, 7
    %p204 = por %p202, %p203
    %p205 = scmp.ne.s32.totalorder %s197, %s200
    %p206 = scmp.eq.s32.totalorder %s12, 0
    %p207 = por %p205, %p206
    %p208 = scmp.ne.s32.totalorder %s197, %s200
    %p209 = scmp.eq.s32.totalorder %s17, 7
    %p210 = por %p208, %p209
    %p211 = scmp.ne.s32.totalorder %s200, %s201
    %p212 = scmp.eq.s32.totalorder %s17, 0
    %p213 = por %p211, %p212
    %p214 = scmp.ne.s32.totalorder %s200, %s201
    %p215 = scmp.eq.s32.totalorder %s18, 7
    %p216 = por %p214, %p215
    %p218 = scmp.ne.s32.totalorder %s201, %s217
    %p219 = scmp.eq.s32.totalorder %s18, 0
    %p220 = por %p218, %p219
    %p221 = scmp.le.s32.totalorder 1, %s12
    %p222 = scmp.lt.s32.totalorder %s12, 9
    %p223 = pnand %p221, %p222
    %p224 = pneg %p223
    // Predicated region
    $region9: #{phase_transformer_forward.12} parent=5 // pred_check
      _
    $region10: #{phase_transformer_forward.12} parent=5 // pred_check_branch
      %226 = sbr.rel (%p223) target = $region12
    $region11: #{phase_transformer_forward.12} parent=5 // pred_region
      %s227 = ssub.s32 %s12, 1
      // Predicated region
      $region13: #{phase_transformer_forward.12} parent=11 // pred_check
        %p228 = pneg %p129
      $region14: #{phase_transformer_forward.12} parent=11 // pred_check_branch
        %230 = sbr.rel (%p228) target = $region16
      $region15: #{phase_transformer_forward.12} parent=11 // pred_region
        _
      $region16: #{phase_transformer_forward.12} parent=11 // pred_fallthru
        _
    $region12: #{phase_transformer_forward.12} parent=5 // pred_fallthru
      _
    %p231 = scmp.lt.s32.totalorder %s12, 8
    // Predicated region
    $region17: #{phase_transformer_forward.12} parent=5 // pred_check
      %p232 = pneg %p231
    $region18: #{phase_transformer_forward.12} parent=5 // pred_check_branch
      %234 = sbr.rel (%p232) target = $region20
    $region19: #{phase_transformer_forward.12} parent=5 // pred_region
      // Predicated region
      $region21: #{phase_transformer_forward.12} parent=19 // pred_check
        %p235 = pneg %p46
      $region22: #{phase_transformer_forward.12} parent=19 // pred_check_branch
        %237 = sbr.rel (%p235) target = $region24
      $region23: #{phase_transformer_forward.12} parent=19 // pred_region
        %p238 = scmp.lt.s32.totalorder %s19, 1
        %s239 = scalar_select %p238, %s19, 1
        %p240 = scmp.lt.s32.totalorder %s20, 3
        %s241 = scalar_select %p240, %s20, 3
        %s242 = smul.addr %s239, 4
        %s243 = sadd.s32 %s241, %s242
        %s244 = smul.addr %s243, 4
        %s245 = scalar_lea.vmem %s0, %s244
      $region24: #{phase_transformer_forward.12} parent=19 // pred_fallthru
        _
      // Predicated region
      $region25: #{phase_transformer_forward.12} parent=19 // pred_check
        %p246 = pneg %p74
      $region26: #{phase_transformer_forward.12} parent=19 // pred_check_branch
        %248 = sbr.rel (%p246) target = $region28
      $region27: #{phase_transformer_forward.12} parent=19 // pred_region
        %p249 = scmp.lt.s32.totalorder %s19, 1
        %s250 = scalar_select %p249, %s19, 1
        %p251 = scmp.lt.s32.totalorder %s20, 3
        %s252 = scalar_select %p251, %s20, 3
        %s253 = smul.addr %s252, 4
        %s254 = smul.addr %s250, 16
        %s255 = sadd.s32 %s253, %s254
        %s256 = smul.addr %s255, 4
        %s257 = scalar_lea.vmem %s1, %s256
      $region28: #{phase_transformer_forward.12} parent=19 // pred_fallthru
        _
      // Predicated region
      $region29: #{phase_transformer_forward.12} parent=19 // pred_check
        %p258 = pneg %p102
      $region30: #{phase_transformer_forward.12} parent=19 // pred_check_branch
        %260 = sbr.rel (%p258) target = $region32
      $region31: #{phase_transformer_forward.12} parent=19 // pred_region
        %p261 = scmp.lt.s32.totalorder %s19, 1
        %s262 = scalar_select %p261, %s19, 1
        %p263 = scmp.lt.s32.totalorder %s20, 3
        %s264 = scalar_select %p263, %s20, 3
        %s265 = smul.addr %s262, 4
        %s266 = sadd.s32 %s264, %s265
        %s267 = smul.addr %s266, 4
        %s268 = scalar_lea.vmem %s2, %s267
      $region32: #{phase_transformer_forward.12} parent=19 // pred_fallthru
        _
      // Predicated region
      $region33: #{phase_transformer_forward.12} parent=19 // pred_check
        %p269 = pneg %p151
      $region34: #{phase_transformer_forward.12} parent=19 // pred_check_branch
        %271 = sbr.rel (%p269) target = $region36
      $region35: #{phase_transformer_forward.12} parent=19 // pred_region
        %p272 = scmp.lt.s32.totalorder %s19, 1
        %s273 = scalar_select %p272, %s19, 1
        %p274 = scmp.lt.s32.totalorder %s20, 3
        %s275 = scalar_select %p274, %s20, 3
        %s276 = smul.addr %s273, 4
        %s277 = sadd.s32 %s275, %s276
        %s278 = smul.addr %s277, 8
        %s279 = scalar_lea.vmem %s4, %s278
      $region36: #{phase_transformer_forward.12} parent=19 // pred_fallthru
        _
      // Predicated region
      $region37: #{phase_transformer_forward.12} parent=19 // pred_check
        %p280 = pneg %p179
      $region38: #{phase_transformer_forward.12} parent=19 // pred_check_branch
        %282 = sbr.rel (%p280) target = $region40
      $region39: #{phase_transformer_forward.12} parent=19 // pred_region
        %p283 = scmp.lt.s32.totalorder %s19, 1
        %s284 = scalar_select %p283, %s19, 1
        %p285 = scmp.lt.s32.totalorder %s20, 3
        %s286 = scalar_select %p285, %s20, 3
        %s287 = smul.addr %s284, 4
        %s288 = sadd.s32 %s286, %s287
        %s289 = scalar_lea.vmem %s5, %s288
      $region40: #{phase_transformer_forward.12} parent=19 // pred_fallthru
        _
    $region20: #{phase_transformer_forward.12} parent=5 // pred_fallthru
      _
    %p290 = scmp.le.s32.totalorder 1, %s12
    %p291 = scmp.lt.s32.totalorder %s12, 9
    %p292 = pnand %p290, %p291
    %p293 = pneg %p292
    // Predicated region
    $region41: #{phase_transformer_forward.12} parent=5 // pred_check
      _
    $region42: #{phase_transformer_forward.12} parent=5 // pred_check_branch
      %295 = sbr.rel (%p292) target = $region44
    $region43: #{phase_transformer_forward.12} parent=5 // pred_region
      %s296 = ssub.s32 %s12, 1
      %p297 = scmp.lt.s32.totalorder %s21, 1
      %s298 = scalar_select %p297, %s21, 1
      %p299 = scmp.lt.s32.totalorder %s22, 3
      %s300 = scalar_select %p299, %s22, 3
      %s301 = smul.addr %s298, 4
      %s302 = sadd.s32 %s300, %s301
      %s303 = smul.addr %s302, 4
      %s304 = scalar_lea.vmem %s0, %s303
      %p305 = pneg %p52
      %p306 = pneg %p49
      %p307 = scmp.lt.s32.totalorder %s21, 1
      %s308 = scalar_select %p307, %s21, 1
      %p309 = scmp.lt.s32.totalorder %s22, 3
      %s310 = scalar_select %p309, %s22, 3
      %s311 = smul.addr %s310, 4
      %s312 = smul.addr %s308, 16
      %s313 = sadd.s32 %s311, %s312
      %s314 = smul.addr %s313, 4
      %s315 = scalar_lea.vmem %s1, %s314
      %p316 = pneg %p80
      %p317 = pneg %p77
      %p318 = scmp.lt.s32.totalorder %s21, 1
      %s319 = scalar_select %p318, %s21, 1
      %p320 = scmp.lt.s32.totalorder %s22, 3
      %s321 = scalar_select %p320, %s22, 3
      %s322 = smul.addr %s319, 4
      %s323 = sadd.s32 %s321, %s322
      %s324 = smul.addr %s323, 4
      %s325 = scalar_lea.vmem %s2, %s324
      %p326 = pneg %p108
      %p327 = pneg %p105
      %p328 = pneg %p129
      %p329 = pneg %p126
      %p330 = scmp.lt.s32.totalorder %s21, 1
      %s331 = scalar_select %p330, %s21, 1
      %p332 = scmp.lt.s32.totalorder %s22, 3
      %s333 = scalar_select %p332, %s22, 3
      %s334 = smul.addr %s331, 4
      %s335 = sadd.s32 %s333, %s334
      %s336 = smul.addr %s335, 8
      %s337 = scalar_lea.vmem %s4, %s336
      %p338 = pneg %p157
      %p339 = pneg %p154
      %p340 = scmp.lt.s32.totalorder %s21, 1
      %s341 = scalar_select %p340, %s21, 1
      %p342 = scmp.lt.s32.totalorder %s22, 3
      %s343 = scalar_select %p342, %s22, 3
      %s344 = smul.addr %s341, 4
      %s345 = sadd.s32 %s343, %s344
      %s346 = scalar_lea.vmem %s5, %s345
      %p347 = pneg %p185
      %p348 = pneg %p182
      %p349 = pneg %p213
      %p350 = pneg %p210
      %p351 = scmp.lt.s32.totalorder %s21, 1
      %s352 = scalar_select %p351, %s21, 1
      %p353 = scmp.lt.s32.totalorder %s22, 3
      %s354 = scalar_select %p353, %s22, 3
      %s355 = smul.addr %s352, 4
      %s356 = sadd.s32 %s354, %s355
      %s357 = smul.addr %s356, 4
      %s358 = scalar_lea.vmem %s6, %s357
      %p359 = scmp.lt.s32.totalorder %s21, 1
      %s360 = scalar_select %p359, %s21, 1
      %p361 = scmp.lt.s32.totalorder %s22, 3
      %s362 = scalar_select %p361, %s22, 3
      %s363 = smul.addr %s360, 4
      %s364 = sadd.s32 %s362, %s363
      %s365 = smul.addr %s364, 4
      %s366 = scalar_lea.vmem %s0, %s365
      %p367 = scmp.lt.s32.totalorder %s21, 1
      %s368 = scalar_select %p367, %s21, 1
      %p369 = scmp.lt.s32.totalorder %s22, 3
      %s370 = scalar_select %p369, %s22, 3
      %s371 = smul.addr %s370, 4
      %s372 = smul.addr %s368, 16
      %s373 = sadd.s32 %s371, %s372
      %s374 = smul.addr %s373, 4
      %s375 = scalar_lea.vmem %s1, %s374
      %p376 = scmp.lt.s32.totalorder %s21, 1
      %s377 = scalar_select %p376, %s21, 1
      %p378 = scmp.lt.s32.totalorder %s22, 3
      %s379 = scalar_select %p378, %s22, 3
      %s380 = smul.addr %s377, 4
      %s381 = sadd.s32 %s379, %s380
      %s382 = smul.addr %s381, 4
      %s383 = scalar_lea.vmem %s2, %s382
      %p384 = scmp.lt.s32.totalorder %s21, 1
      %s385 = scalar_select %p384, %s21, 1
      %p386 = scmp.lt.s32.totalorder %s22, 3
      %s387 = scalar_select %p386, %s22, 3
      %s388 = smul.addr %s385, 4
      %s389 = sadd.s32 %s387, %s388
      %s390 = smul.addr %s389, 8
      %s391 = scalar_lea.vmem %s4, %s390
      %p392 = scmp.lt.s32.totalorder %s21, 1
      %s393 = scalar_select %p392, %s21, 1
      %p394 = scmp.lt.s32.totalorder %s22, 3
      %s395 = scalar_select %p394, %s22, 3
      %s396 = smul.addr %s393, 4
      %s397 = sadd.s32 %s395, %s396
      %s398 = scalar_lea.vmem %s5, %s397
      %p399 = scmp.lt.s32.totalorder %s21, 1
      %s400 = scalar_select %p399, %s21, 1
      %p401 = scmp.lt.s32.totalorder %s22, 3
      %s402 = scalar_select %p401, %s22, 3
      %s403 = smul.addr %s400, 4
      %s404 = sadd.s32 %s402, %s403
      %s405 = smul.addr %s404, 4
      %s406 = scalar_lea.vmem %s6, %s405
      %v408 = vld [vmem:[%s366] sm:$0xf]
      %v409 = vld [vmem:[%s375] sm:$0xf]
      %v410 = vld [vmem:[%s375 + $0x4] sm:$0xf]
      %v411 = vld [vmem:[%s375 + $0x8] sm:$0xf]
      %v412 = vld [vmem:[%s375 + $0xc] sm:$0xf]
      %v413 = vld [vmem:[%s383] sm:$0xf]
      %v414 = vld [vmem:[%s3] sm:$0xf]
      %v415 = vld [vmem:[%s3 + $0x4] sm:$0xf]
      %v416 = vld [vmem:[%s3 + $0x8] sm:$0xf]
      %v417 = vld [vmem:[%s3 + $0xc] sm:$0xf]
      %v422 = vunpack.c.l.b16 %v414
      %v423 = vunpack.c.l.b16 %v415
      %v424 = vunpack.c.l.b16 %v416
      %v425 = vunpack.c.l.b16 %v417
      %v426 = vpack.c.b16 %v423, %v422
      %v427 = vpack.c.b16 %v425, %v424
      %vm430 = vcmask 261120
      %v432 = vsel %vm430, %v408, 0
      %434 = vmatprep.subr.bf16.mxu0 0
      %435 = vmatpush1.bf16.msra.mxu0 0
      %436 = vmatprep.subr.bf16.mxu0 0
      %437 = vmatpush1.bf16.msra.mxu0 0
      %438 = vmatprep.subr.bf16.mxu0 0
      %439 = vmatpush1.bf16.msra.mxu0 0
      %440 = vmatprep.subr.bf16.mxu0 0
      %441 = vmatpush1.bf16.msra.mxu0 0
      %442 = vmatprep.subr.bf16.mxu0 0
      %443 = vmatpush1.bf16.msra.mxu0 0
      %444 = vmatprep.subr.bf16.mxu0 0
      %445 = vmatpush1.bf16.msra.mxu0 0
      %446 = vmatprep.subr.bf16.mxu0 0
      %447 = vmatpush1.bf16.msra.mxu0 %v427
      %448 = vmatprep.subr.bf16.mxu0 0
      %449 = vmatpush1.bf16.msra.mxu0 %v426
      %450 = vmatprep.subr.bf16.mxu0 0
      %451 = vmatpush2.bf16.msra.mxu0 0
      %452 = vmatprep.subr.bf16.mxu0 0
      %453 = vmatpush2.bf16.msra.mxu0 0
      %454 = vmatprep.subr.bf16.mxu0 0
      %455 = vmatpush2.bf16.msra.mxu0 0
      %456 = vmatprep.subr.bf16.mxu0 0
      %457 = vmatpush2.bf16.msra.mxu0 0
      %458 = vmatprep.subr.bf16.mxu0 0
      %459 = vmatpush2.bf16.msra.mxu0 0
      %460 = vmatprep.subr.bf16.mxu0 0
      %461 = vmatpush2.bf16.msra.mxu0 0
      %462 = vmatprep.subr.bf16.mxu0 0
      %463 = vmatpush2.bf16.msra.mxu0 0
      %464 = vmatprep.subr.bf16.mxu0 0
      %465 = vmatpush2.bf16.msra.mxu0 0
      %466 = vmatprep.mubr.bf16.mxu0 0
      %467 = vmatmul.mubr.bf16.gmra.mxu0 %v432
      %v468 = vpop.f32.mrf.mxu0
      %v469 = vadd.f32 0.0, %v468
      %v470 = vpop.f32.mrf.mxu0
      %v471 = vpop.f32.mrf.mxu0
      %v472 = vpop.f32.mrf.mxu0
      %473 = vdwg.mxu0
      %s475 = sor.u32 256, 120
      %476 = vrot.lane.b32.xlu0 %v469, %s475
      %v477 = vpop.permute.xlu0 %476
      %v478 = vld [vmem:[%s391] sm:$0xff]
      %v479 = vld [vmem:[%s398] sm:$0x1]
      %481 = vset.pattern.permute.xlu0 0
      %482 = vperm.xlu0 %481, %v478
      %v483 = vpop.permute.xlu0 %482
      %v486 = vlaneseq
      %v487 = vshrl.u32 %v486, 7
      %v488 = vsub.s32 0, %v487
      %v489 = vrot.slane %v479, %v488
      %v491 = vsub.f32 %v483, %v489
      %v492 = vand.u32 2147483647, %v491
      %vm493 = vcmp.le.f32.partialorder %v492, 0.7853982
      %vm494 = vcmp.lt.s32.totalorder %v491, 0
      %v495 = vand.u32 %v491, 2139095040
      %v496 = vshrl.u32 %v495, 23
      %v497 = vsub.s32 %v496, 127
      %v498 = vand.u32 2147483647, %v491
      %v499 = vand.u32 %v498, 8388607
      %v500 = vor.u32 %v499, 8388608
      %v501 = vsub.s32 0, %v500
      %v502 = vadd.s32 %v497, 1
      %vm503 = vcmp.gt.s32.totalorder %v502, 0
      %v504 = vsel %vm503, %v502, 0
      %v505 = vshrl.u32 %v504, 5
      %v506 = vand.u32 %v504, 31
      %v507 = vsub.s32 32, %v506
      %v508 = vshrl.u32 683565275, %v507
      %v509 = vshll.u32 683565275, %v506
      %v510 = vshrl.u32 2475754826, %v507
      %v511 = vor.u32 %v509, %v510
      %v512 = vshll.u32 2475754826, %v506
      %v513 = vshrl.u32 2131351028, %v507
      %v514 = vor.u32 %v512, %v513
      %v515 = vshll.u32 2131351028, %v506
      %v516 = vshrl.u32 2102212464, %v507
      %v517 = vor.u32 %v515, %v516
      %v518 = vshll.u32 2102212464, %v506
      %v519 = vshrl.u32 920167782, %v507
      %v520 = vor.u32 %v518, %v519
      %v521 = vshll.u32 920167782, %v506
      %v522 = vshrl.u32 1326507024, %v507
      %v523 = vor.u32 %v521, %v522
      %vm524 = vcmp.lt.s32.totalorder %v505, 1
      %vm525 = vcmp.lt.s32.totalorder %v505, 2
      %vm526 = vcmp.lt.s32.totalorder %v505, 3
      %vm527 = vcmp.lt.s32.totalorder %v505, 4
      %v528 = vsel %vm524, %v508, %v511
      %v529 = vsel %vm527, %v517, 2102212464
      %v530 = vsel %vm526, %v514, %v529
      %v531 = vsel %vm525, %v528, %v530
      %v532 = vsel %vm524, %v511, %v514
      %v533 = vsel %vm527, %v520, 920167782
      %v534 = vsel %vm526, %v517, %v533
      %v535 = vsel %vm525, %v532, %v534
      %v536 = vsel %vm524, %v514, %v517
      %v537 = vsel %vm527, %v523, 1326507024
      %v538 = vsel %vm526, %v520, %v537
      %v539 = vsel %vm525, %v536, %v538
      %v540 = vshll.u32 %v500, 8
      %v541 = vmul.u32.u64.compose %v540, %v539
      %v542 = vextract.low.u32 %v541
      %v543 = vextract.high.u32 %v541
      %v544 = vmul.u32.u64.compose %v540, %v535
      %v545 = vextract.low.u32 %v544
      %v546 = vextract.high.u32 %v544
      %v547 = vmul.u32 %v540, %v531
      %v548 = vadd.s32 %v543, %v545
      %vm549 = vc.u32 %v543, %v545
      %v550 = vadd.s32 %v546, 1
      %v551 = vsel %vm549, %v550, %v546
      %v552 = vadd.s32 %v547, %v551
      %v553 = vadd.s32 %v552, 536870912
      %v554 = vshrl.u32 %v553, 30
      %v555 = vshll.u32 %v554, 30
      %v556 = vsub.s32 %v552, %v555
      %vm557 = vcmp.lt.s32.totalorder %v556, 0
      %v558 = vsub.s32 0, %v556
      %v559 = vsel %vm557, %v558, %v556
      %v560 = vclz %v559
      %v561 = vsub.s32 %v560, 2
      %vm562 = vcmp.gt.s32.totalorder 0, %v561
      %v563 = vsel %vm562, 0, %v561
      %v564 = vsub.s32 32, %v563
      %v565 = vshll.u32 %v556, %v563
      %v566 = vshrl.u32 %v548, %v564
      %v567 = vor.u32 %v565, %v566
      %v568 = vsub.s32 4294967266, %v563
      %v569 = vadd.s32 %v568, 127
      %v570 = vshll.u32 %v569, 23
      %v571 = vor.u32 4788187, %v570
      %v572 = vand.u32 2147483647, %v571
      %v574 = vcvt.s32.f32 %v567
      %v575 = vmul.f32 %v574, %v572
      %v576 = vxor.u32 %v575, 2147483648
      %v577 = vsel %vm494, %v576, %v575
      %v578 = vsub.s32 4, %v554
      %v579 = vsel %vm494, %v578, %v554
      %v580 = vsel %vm493, %v491, %v577
      %v581 = vsel %vm493, 0, %v579
      %v582 = vcosq.f32.pop %v580
      %v583 = vsinq.f32.pop %v580
      %vm584 = vweird.f32 %v491
      %v585 = vand.u32 %v581, 3
      %vm586 = vcmp.lt.s32.totalorder %v585, 2
      %vm587 = vcmp.eq.s32.totalorder %v585, 0
      %v588 = vxor.u32 %v583, 2147483648
      %v589 = vsel %vm587, %v582, %v588
      %vm590 = vcmp.eq.s32.totalorder %v585, 2
      %v591 = vxor.u32 %v582, 2147483648
      %v592 = vsel %vm590, %v591, %v583
      %v593 = vsel %vm586, %v589, %v592
      %v594 = vsel %vm584, nan, %v593
      %v599 = vunpack.c.l.b16 %v409
      %v600 = vunpack.c.l.b16 %v410
      %v601 = vunpack.c.l.b16 %v411
      %v602 = vunpack.c.l.b16 %v412
      %v603 = vpack.c.b16 %v600, %v599
      %v604 = vpack.c.b16 %v602, %v601
      %607 = vmatprep.subr.bf16.mxu0 0
      %608 = vmatpush1.bf16.msra.mxu0 0
      %609 = vmatprep.subr.bf16.mxu0 0
      %610 = vmatpush1.bf16.msra.mxu0 0
      %611 = vmatprep.subr.bf16.mxu0 0
      %612 = vmatpush1.bf16.msra.mxu0 0
      %613 = vmatprep.subr.bf16.mxu0 0
      %614 = vmatpush1.bf16.msra.mxu0 0
      %615 = vmatprep.subr.bf16.mxu0 0
      %616 = vmatpush1.bf16.msra.mxu0 0
      %617 = vmatprep.subr.bf16.mxu0 0
      %618 = vmatpush1.bf16.msra.mxu0 0
      %619 = vmatprep.subr.bf16.mxu0 0
      %620 = vmatpush1.bf16.msra.mxu0 %v604
      %621 = vmatprep.subr.bf16.mxu0 0
      %622 = vmatpush1.bf16.msra.mxu0 %v603
      %623 = vmatprep.subr.bf16.mxu0 0
      %624 = vmatpush2.bf16.msra.mxu0 0
      %625 = vmatprep.subr.bf16.mxu0 0
      %626 = vmatpush2.bf16.msra.mxu0 0
      %627 = vmatprep.subr.bf16.mxu0 0
      %628 = vmatpush2.bf16.msra.mxu0 0
      %629 = vmatprep.subr.bf16.mxu0 0
      %630 = vmatpush2.bf16.msra.mxu0 0
      %631 = vmatprep.subr.bf16.mxu0 0
      %632 = vmatpush2.bf16.msra.mxu0 0
      %633 = vmatprep.subr.bf16.mxu0 0
      %634 = vmatpush2.bf16.msra.mxu0 0
      %635 = vmatprep.subr.bf16.mxu0 0
      %636 = vmatpush2.bf16.msra.mxu0 0
      %637 = vmatprep.subr.bf16.mxu0 0
      %638 = vmatpush2.bf16.msra.mxu0 0
      %639 = vmatprep.mubr.bf16.mxu0 0
      %640 = vmatmul.mubr.bf16.gmra.mxu0 %v432
      %v641 = vpop.f32.mrf.mxu0
      %v642 = vadd.f32 %v477, %v641
      %v643 = vpop.f32.mrf.mxu0
      %v644 = vpop.f32.mrf.mxu0
      %v645 = vpop.f32.mrf.mxu0
      %646 = vdwg.mxu0
      %v647 = vmul.f32 %v642, 0.17677669
      %v648 = vadd.f32 %v647, %v594
      %vm649 = vcmask 64512
      %v650 = vsel %vm649, %v648, -inf
      %651 = vmax.xlane.f32.xlu0 %v650
      %v652 = vpop.xlane.xlu0 %651
      %v653 = vsub.f32 %v648, %v652
      %v654 = vmul.f32 %v653, 1.442695
      %v655 = vpow.pop %v654
      %v656 = vsel %vm649, %v655, 0.0
      %657 = vadd.xlane.f32.xlu0 %v656
      %v658 = vpop.xlane.xlu0 %657
      %v659 = vrcp.pop %v658
      %v660 = vmul.f32 %v655, %v659
      %v661 = vpack.c.bf16 %v660, %v660
      %v663 = vsel %vm649, %v661, 0
      %vm665 = vcmask 1043456
      %v667 = vsel %vm665, %v413, 0
      %669 = vmatprep.subr.bf16.mxu0 0
      %670 = vmatpush1.bf16.msra.mxu0 0
      %671 = vmatprep.subr.bf16.mxu0 0
      %672 = vmatpush1.bf16.msra.mxu0 0
      %673 = vmatprep.subr.bf16.mxu0 0
      %674 = vmatpush1.bf16.msra.mxu0 0
      %675 = vmatprep.subr.bf16.mxu0 0
      %676 = vmatpush1.bf16.msra.mxu0 0
      %677 = vmatprep.subr.bf16.mxu0 0
      %678 = vmatpush1.bf16.msra.mxu0 0
      %679 = vmatprep.subr.bf16.mxu0 0
      %680 = vmatpush1.bf16.msra.mxu0 0
      %681 = vmatprep.subr.bf16.mxu0 0
      %682 = vmatpush1.bf16.msra.mxu0 0
      %683 = vmatprep.subr.bf16.mxu0 0
      %684 = vmatpush1.bf16.msra.mxu0 %v667
      %685 = vmatprep.subr.bf16.mxu0 0
      %686 = vmatpush2.bf16.msra.mxu0 0
      %687 = vmatprep.subr.bf16.mxu0 0
      %688 = vmatpush2.bf16.msra.mxu0 0
      %689 = vmatprep.subr.bf16.mxu0 0
      %690 = vmatpush2.bf16.msra.mxu0 0
      %691 = vmatprep.subr.bf16.mxu0 0
      %692 = vmatpush2.bf16.msra.mxu0 0
      %693 = vmatprep.subr.bf16.mxu0 0
      %694 = vmatpush2.bf16.msra.mxu0 0
      %695 = vmatprep.subr.bf16.mxu0 0
      %696 = vmatpush2.bf16.msra.mxu0 0
      %697 = vmatprep.subr.bf16.mxu0 0
      %698 = vmatpush2.bf16.msra.mxu0 0
      %699 = vmatprep.subr.bf16.mxu0 0
      %700 = vmatpush2.bf16.msra.mxu0 0
      %701 = vmatprep.mubr.bf16.mxu0 0
      %702 = vmatmul.mubr.bf16.gmra.mxu0 %v663
      %v703 = vpop.f32.mrf.mxu0
      %v704 = vadd.f32 0.0, %v703
      %v705 = vpop.f32.mrf.mxu0
      %v706 = vpop.f32.mrf.mxu0
      %v707 = vpop.f32.mrf.mxu0
      %708 = vdwg.mxu0
      %v709 = vpack.c.bf16 %v704, %v704
      %vm710 = vcmask 257024
      %711 = vst.msk [vmem:[%s406] sm:$0xf] %vm710, %v709
      %p712 = scmp.lt.s32.totalorder %s21, 1
      %s713 = scalar_select %p712, %s21, 1
      %p714 = scmp.lt.s32.totalorder %s22, 3
      %s715 = scalar_select %p714, %s22, 3
      %s716 = smul.addr %s713, 4
      %s717 = sadd.s32 %s715, %s716
      %s718 = smul.addr %s717, 4
      %s719 = scalar_lea.vmem %s6, %s718
      // Predicated region
      $region45: #{phase_transformer_forward.12} parent=43 // pred_check
        %p720 = pneg %p210
      $region46: #{phase_transformer_forward.12} parent=43 // pred_check_branch
        %722 = sbr.rel (%p720) target = $region48
      $region47: #{phase_transformer_forward.12} parent=43 // pred_region
        _
      $region48: #{phase_transformer_forward.12} parent=43 // pred_fallthru
        _
    $region44: #{phase_transformer_forward.12} parent=5 // pred_fallthru
      _
    %p723 = scmp.le.s32.totalorder 2, %s12
    // Predicated region
    $region49: #{phase_transformer_forward.12} parent=5 // pred_check
      %p724 = pneg %p723
    $region50: #{phase_transformer_forward.12} parent=5 // pred_check_branch
      %726 = sbr.rel (%p724) target = $region52
    $region51: #{phase_transformer_forward.12} parent=5 // pred_region
      %s727 = ssub.s32 %s12, 2
      // Predicated region
      $region53: #{phase_transformer_forward.12} parent=51 // pred_check
        %p728 = pneg %p216
      $region54: #{phase_transformer_forward.12} parent=51 // pred_check_branch
        %730 = sbr.rel (%p728) target = $region56
      $region55: #{phase_transformer_forward.12} parent=51 // pred_region
        %p731 = scmp.lt.s32.totalorder %s23, 1
        %s732 = scalar_select %p731, %s23, 1
        %p733 = scmp.lt.s32.totalorder %s24, 3
        %s734 = scalar_select %p733, %s24, 3
        %s735 = smul.addr %s732, 4
        %s736 = sadd.s32 %s734, %s735
        %s737 = smul.addr %s736, 4
        %s738 = scalar_lea.vmem %s6, %s737
      $region56: #{phase_transformer_forward.12} parent=51 // pred_fallthru
        _
    $region52: #{phase_transformer_forward.12} parent=5 // pred_fallthru
      _
  $region6: #{phase_transformer_forward.12} parent=0 // loop_footer
    %s16 = sadd.s32 1, %s12
  $region7: #{phase_transformer_forward.12} parent=0 // loop_footer_branch
    %11 = sbr.rel target = $region3
  $region8: #{phase_transformer_forward.12} parent=0 // loop_exit
    _

// kernel: phase_transformer_forward.13
$region0: #{phase_transformer_forward.13}
  #allocation0 [shape = 'u32[]', space=smem, size = 0x4, offset = 0x4, fixed_abs, tag = 'smem constant byte address 0x4 - core index']
  #allocation1 [shape = 'u32[144,128]{1,0:T(1,128)}', space=vmem, size = 0x12000, scoped, tag = 'internal scratch']
  #allocation2 [shape = 'bf16[16,128]{1,0:T(8,128)(2,1)}', space=vmem, size = 0x1000, scoped, tag = 'scratch operand']
  #allocation3 [shape = 'f32[1]{0:T(128)S(6)}', space=smem, size = 0x200, scoped, tag = 'scoped memory for phase_transformer_forward.13']
  %s0 = inlined_call_operand.vmem [shape: f32[16,128], index: 0, kind: input, shape index: {}]
  %s1 = inlined_call_operand.vmem [shape: bf16[16,128], index: 1, kind: input, shape index: {}]
  %s2 = inlined_call_operand.vmem [shape: bf16[128,128], index: 2, kind: input, shape index: {}]
  %s3 = inlined_call_operand.vmem [shape: f32[1,128], index: 3, kind: input, shape index: {}]
  %s4 = inlined_call_operand.vmem [shape: f32[1,128], index: 4, kind: input, shape index: {}]
  %s5 = inlined_call_operand.vmem [shape: f32[1,128], index: 5, kind: input, shape index: {}]
  %s6 = inlined_call_operand.vmem [shape: bf16[128,256], index: 6, kind: input, shape index: {}]
  %s7 = inlined_call_operand.vmem [shape: f32[1,256], index: 7, kind: input, shape index: {}]
  %s8 = inlined_call_operand.vmem [shape: bf16[256,128], index: 8, kind: input, shape index: {}]
  %s9 = inlined_call_operand.vmem [shape: f32[1,128], index: 9, kind: input, shape index: {}]
  %s10 = inlined_call_operand.<no memory space> [shape: f32[1], index: 10, kind: input, shape index: {}]
  %s11 = inlined_call_operand.vmem [shape: f32[16,128], index: 11, kind: output, shape index: {}]
  %s12 = sld [smem:[#allocation0]]
  $region58: #{phase_transformer_forward.13} parent=0
    _
  %s14 = ssub.s32 1, %s12
  %s15 = scalar_select 0, %s14, %s12
  %16 = sst [smem:[#allocation3]] %s10
  // Predicated region
  $region2: #{phase_transformer_forward.13} parent=0 // pred_check
    _
  $region3: #{phase_transformer_forward.13} parent=0 // pred_check_branch
    %18 = sbr.rel (0) target = $region5
  $region4: #{phase_transformer_forward.13} parent=0 // pred_region
    _
  $region5: #{phase_transformer_forward.13} parent=0 // pred_fallthru
    _
  // Predicated region
  $region6: #{phase_transformer_forward.13} parent=0 // pred_check
    _
  $region7: #{phase_transformer_forward.13} parent=0 // pred_check_branch
    %20 = sbr.rel (0) target = $region9
  $region8: #{phase_transformer_forward.13} parent=0 // pred_region
    _
  $region9: #{phase_transformer_forward.13} parent=0 // pred_fallthru
    _
  // Predicated region
  $region10: #{phase_transformer_forward.13} parent=0 // pred_check
    _
  $region11: #{phase_transformer_forward.13} parent=0 // pred_check_branch
    %22 = sbr.rel (0) target = $region13
  $region12: #{phase_transformer_forward.13} parent=0 // pred_region
    _
  $region13: #{phase_transformer_forward.13} parent=0 // pred_fallthru
    _
  // Predicated region
  $region14: #{phase_transformer_forward.13} parent=0 // pred_check
    _
  $region15: #{phase_transformer_forward.13} parent=0 // pred_check_branch
    %24 = sbr.rel (0) target = $region17
  $region16: #{phase_transformer_forward.13} parent=0 // pred_region
    _
  $region17: #{phase_transformer_forward.13} parent=0 // pred_fallthru
    _
  // Predicated region
  $region18: #{phase_transformer_forward.13} parent=0 // pred_check
    _
  $region19: #{phase_transformer_forward.13} parent=0 // pred_check_branch
    %26 = sbr.rel (0) target = $region21
  $region20: #{phase_transformer_forward.13} parent=0 // pred_region
    _
  $region21: #{phase_transformer_forward.13} parent=0 // pred_fallthru
    _
  // Predicated region
  $region22: #{phase_transformer_forward.13} parent=0 // pred_check
    _
  $region23: #{phase_transformer_forward.13} parent=0 // pred_check_branch
    %28 = sbr.rel (0) target = $region25
  $region24: #{phase_transformer_forward.13} parent=0 // pred_region
    _
  $region25: #{phase_transformer_forward.13} parent=0 // pred_fallthru
    _
  // Predicated region
  $region26: #{phase_transformer_forward.13} parent=0 // pred_check
    _
  $region27: #{phase_transformer_forward.13} parent=0 // pred_check_branch
    %30 = sbr.rel (0) target = $region29
  $region28: #{phase_transformer_forward.13} parent=0 // pred_region
    _
  $region29: #{phase_transformer_forward.13} parent=0 // pred_fallthru
    _
  // Predicated region
  $region30: #{phase_transformer_forward.13} parent=0 // pred_check
    _
  $region31: #{phase_transformer_forward.13} parent=0 // pred_check_branch
    %32 = sbr.rel (0) target = $region33
  $region32: #{phase_transformer_forward.13} parent=0 // pred_region
    _
  $region33: #{phase_transformer_forward.13} parent=0 // pred_fallthru
    _
  // Predicated region
  $region34: #{phase_transformer_forward.13} parent=0 // pred_check
    _
  $region35: #{phase_transformer_forward.13} parent=0 // pred_check_branch
    %34 = sbr.rel (0) target = $region37
  $region36: #{phase_transformer_forward.13} parent=0 // pred_region
    _
  $region37: #{phase_transformer_forward.13} parent=0 // pred_fallthru
    _
  // Predicated region
  $region38: #{phase_transformer_forward.13} parent=0 // pred_check
    _
  $region39: #{phase_transformer_forward.13} parent=0 // pred_check_branch
    %36 = sbr.rel (0) target = $region41
  $region40: #{phase_transformer_forward.13} parent=0 // pred_region
    _
  $region41: #{phase_transformer_forward.13} parent=0 // pred_fallthru
    _
  // Predicated region
  $region42: #{phase_transformer_forward.13} parent=0 // pred_check
    _
  $region43: #{phase_transformer_forward.13} parent=0 // pred_check_branch
    %38 = sbr.rel (0) target = $region45
  $region44: #{phase_transformer_forward.13} parent=0 // pred_region
    _
  $region45: #{phase_transformer_forward.13} parent=0 // pred_fallthru
    _
  %p40 = scmp.eq.s32.totalorder 0, 0
  // Predicated region
  $region46: #{phase_transformer_forward.13} parent=0 // pred_check
    %p41 = pneg %p40
  $region47: #{phase_transformer_forward.13} parent=0 // pred_check_branch
    %43 = sbr.rel (%p41) target = $region49
  $region48: #{phase_transformer_forward.13} parent=0 // pred_region
    %v44 = vld [vmem:[%s0] sm:$0xff]
    %v45 = vld [vmem:[%s0 + $0x8] sm:$0xff]
    %v46 = vld [vmem:[%s1] sm:$0xf]
    %v47 = vld [vmem:[%s1 + $0x4] sm:$0xf]
    %v48 = vld [vmem:[%s2] sm:$0xf]
    %v49 = vld [vmem:[%s2 + $0x4] sm:$0xf]
    %v50 = vld [vmem:[%s2 + $0x8] sm:$0xf]
    %v51 = vld [vmem:[%s2 + $0xc] sm:$0xf]
    %v52 = vld [vmem:[%s2 + $0x10] sm:$0xf]
    %v53 = vld [vmem:[%s2 + $0x14] sm:$0xf]
    %v54 = vld [vmem:[%s2 + $0x18] sm:$0xf]
    %v55 = vld [vmem:[%s2 + $0x1c] sm:$0xf]
    %v56 = vld [vmem:[%s2 + $0x20] sm:$0xf]
    %v57 = vld [vmem:[%s2 + $0x24] sm:$0xf]
    %v58 = vld [vmem:[%s2 + $0x28] sm:$0xf]
    %v59 = vld [vmem:[%s2 + $0x2c] sm:$0xf]
    %v60 = vld [vmem:[%s2 + $0x30] sm:$0xf]
    %v61 = vld [vmem:[%s2 + $0x34] sm:$0xf]
    %v62 = vld [vmem:[%s2 + $0x38] sm:$0xf]
    %v63 = vld [vmem:[%s2 + $0x3c] sm:$0xf]
    %v66 = vunpack.c.l.b16 %v46
    %v67 = vunpack.c.l.b16 %v47
    %v68 = vpack.c.b16 %v67, %v66
    %v86 = vunpack.c.l.b16 %v48
    %v87 = vunpack.c.l.b16 %v49
    %v88 = vunpack.c.l.b16 %v50
    %v89 = vunpack.c.l.b16 %v51
    %v90 = vunpack.c.l.b16 %v52
    %v91 = vunpack.c.l.b16 %v53
    %v92 = vunpack.c.l.b16 %v54
    %v93 = vunpack.c.l.b16 %v55
    %v94 = vunpack.c.l.b16 %v56
    %v95 = vunpack.c.l.b16 %v57
    %v96 = vunpack.c.l.b16 %v58
    %v97 = vunpack.c.l.b16 %v59
    %v98 = vunpack.c.l.b16 %v60
    %v99 = vunpack.c.l.b16 %v61
    %v100 = vunpack.c.l.b16 %v62
    %v101 = vunpack.c.l.b16 %v63
    %v102 = vpack.c.b16 %v87, %v86
    %v103 = vpack.c.b16 %v89, %v88
    %v104 = vpack.c.b16 %v91, %v90
    %v105 = vpack.c.b16 %v93, %v92
    %v106 = vpack.c.b16 %v95, %v94
    %v107 = vpack.c.b16 %v97, %v96
    %v108 = vpack.c.b16 %v99, %v98
    %v109 = vpack.c.b16 %v101, %v100
    %118 = vmatprep.subr.bf16.mxu0 0
    %119 = vmatpush1.bf16.msra.mxu0 %v109
    %120 = vmatprep.subr.bf16.mxu0 0
    %121 = vmatpush1.bf16.msra.mxu0 %v108
    %122 = vmatprep.subr.bf16.mxu0 0
    %123 = vmatpush1.bf16.msra.mxu0 %v107
    %124 = vmatprep.subr.bf16.mxu0 0
    %125 = vmatpush1.bf16.msra.mxu0 %v106
    %126 = vmatprep.subr.bf16.mxu0 0
    %127 = vmatpush1.bf16.msra.mxu0 %v105
    %128 = vmatprep.subr.bf16.mxu0 0
    %129 = vmatpush1.bf16.msra.mxu0 %v104
    %130 = vmatprep.subr.bf16.mxu0 0
    %131 = vmatpush1.bf16.msra.mxu0 %v103
    %132 = vmatprep.subr.bf16.mxu0 0
    %133 = vmatpush1.bf16.msra.mxu0 %v102
    %134 = vmatprep.subr.bf16.mxu0 0
    %135 = vmatpush2.bf16.msra.mxu0 0
    %136 = vmatprep.subr.bf16.mxu0 0
    %137 = vmatpush2.bf16.msra.mxu0 0
    %138 = vmatprep.subr.bf16.mxu0 0
    %139 = vmatpush2.bf16.msra.mxu0 0
    %140 = vmatprep.subr.bf16.mxu0 0
    %141 = vmatpush2.bf16.msra.mxu0 0
    %142 = vmatprep.subr.bf16.mxu0 0
    %143 = vmatpush2.bf16.msra.mxu0 0
    %144 = vmatprep.subr.bf16.mxu0 0
    %145 = vmatpush2.bf16.msra.mxu0 0
    %146 = vmatprep.subr.bf16.mxu0 0
    %147 = vmatpush2.bf16.msra.mxu0 0
    %148 = vmatprep.subr.bf16.mxu0 0
    %149 = vmatpush2.bf16.msra.mxu0 0
    %150 = vmatprep.mubr.bf16.mxu0 0
    %151 = vmatmul.mubr.bf16.gmra.mxu0 %v68
    %v152 = vpop.f32.mrf.mxu0
    %v153 = vadd.f32 0.0, %v152
    %v154 = vpop.f32.mrf.mxu0
    %v155 = vpop.f32.mrf.mxu0
    %v156 = vadd.f32 0.0, %v155
    %v157 = vpop.f32.mrf.mxu0
    %158 = vdwg.mxu0
    %v159 = vadd.f32 %v44, %v153
    %v160 = vadd.f32 %v45, %v156
    %v161 = vld [vmem:[%s3] sm:$0x1]
    %v163 = vlaneseq
    %v164 = vshrl.u32 %v163, 7
    %v165 = vsub.s32 0, %v164
    %v166 = vrot.slane %v161, %v165
    %v168 = vadd.f32 %v159, %v166
    %v169 = vadd.f32 %v160, %v166
    %v170 = vld [vmem:[%s4] sm:$0x1]
    %v171 = vld [vmem:[%s5] sm:$0x1]
    %172 = vadd.xlane.f32.xlu0 %v168
    %v173 = vpop.xlane.xlu0 %172
    %174 = vadd.xlane.f32.xlu0 %v169
    %v175 = vpop.xlane.xlu0 %174
    %v176 = vrcp.pop 128.0
    %v177 = vmul.f32 %v173, %v176
    %v178 = vmul.f32 %v175, %v176
    %v179 = vsub.f32 %v168, %v177
    %v180 = vsub.f32 %v169, %v178
    %v181 = vmul.f32 %v179, %v179
    %v182 = vmul.f32 %v180, %v180
    %183 = vadd.xlane.f32.xlu0 %v181
    %v184 = vpop.xlane.xlu0 %183
    %185 = vadd.xlane.f32.xlu0 %v182
    %v186 = vpop.xlane.xlu0 %185
    %v187 = vmul.f32 %v184, %v176
    %v188 = vmul.f32 %v186, %v176
    %v189 = vadd.f32 %v187, 1e-06
    %v190 = vadd.f32 %v188, 1e-06
    %v191 = vrsqrt.pop %v189
    %v192 = vrsqrt.pop %v190
    %v193 = vmul.f32 %v179, %v191
    %v194 = vmul.f32 %v180, %v192
    %v196 = vlaneseq
    %v197 = vshrl.u32 %v196, 7
    %v198 = vsub.s32 0, %v197
    %v199 = vrot.slane %v170, %v198
    %v201 = vmul.f32 %v193, %v199
    %v202 = vmul.f32 %v194, %v199
    %v204 = vlaneseq
    %v205 = vshrl.u32 %v204, 7
    %v206 = vsub.s32 0, %v205
    %v207 = vrot.slane %v171, %v206
    %v209 = vadd.f32 %v201, %v207
    %v210 = vadd.f32 %v202, %v207
    %v211 = vpack.c.bf16 %v210, %v209
    %v213 = vunpack.c.l.b16 %v211
    %v214 = vunpack.c.h.b16 %v211
    %v215 = vpack.c.b16 %v213, %v213
    %v216 = vpack.c.b16 %v214, %v214
    %219 = vst [vmem:[#allocation2] sm:$0xf] %v215
    %220 = vst [vmem:[#allocation2 + $0x4] sm:$0xf] %v216
    %v221 = vld [vmem:[%s9] sm:$0x1]
    %v223 = vlaneseq
    %v224 = vshrl.u32 %v223, 7
    %v225 = vsub.s32 0, %v224
    %v226 = vrot.slane %v221, %v225
    %v228 = vadd.f32 %v168, %v226
    %v229 = vadd.f32 %v169, %v226
    %230 = vst [vmem:[%s11] sm:$0xff] %v228
    %231 = vst [vmem:[%s11 + $0x8] sm:$0xff] %v229
  $region49: #{phase_transformer_forward.13} parent=0 // pred_fallthru
    _
  %v232 = vld [vmem:[#allocation2] sm:$0xf]
  %v233 = vld [vmem:[#allocation2 + $0x4] sm:$0xf]
  %v234 = vld [vmem:[%s6] sm:$0xff]
  %v235 = vld [vmem:[%s6 + $0x8] sm:$0xff]
  %v236 = vld [vmem:[%s6 + $0x10] sm:$0xff]
  %v237 = vld [vmem:[%s6 + $0x18] sm:$0xff]
  %v238 = vld [vmem:[%s6 + $0x20] sm:$0xff]
  %v239 = vld [vmem:[%s6 + $0x28] sm:$0xff]
  %v240 = vld [vmem:[%s6 + $0x30] sm:$0xff]
  %v241 = vld [vmem:[%s6 + $0x38] sm:$0xff]
  %v242 = vld [vmem:[%s6 + $0x40] sm:$0xff]
  %v243 = vld [vmem:[%s6 + $0x48] sm:$0xff]
  %v244 = vld [vmem:[%s6 + $0x50] sm:$0xff]
  %v245 = vld [vmem:[%s6 + $0x58] sm:$0xff]
  %v246 = vld [vmem:[%s6 + $0x60] sm:$0xff]
  %v247 = vld [vmem:[%s6 + $0x68] sm:$0xff]
  %v248 = vld [vmem:[%s6 + $0x70] sm:$0xff]
  %v249 = vld [vmem:[%s6 + $0x78] sm:$0xff]
  %v250 = vld [vmem:[%s7] sm:$0x3]
  %v252 = vlaneseq
  %v253 = vshrl.u32 %v252, 7
  %v254 = vsub.s32 0, %v253
  %v255 = vrot.slane %v250, %v254
  %v256 = vlaneseq
  %v257 = vshrl.u32 %v256, 7
  %v258 = vsub.s32 1, %v257
  %v259 = vrot.slane %v250, %v258
  %v264 = vunpack.c.l.b16 %v232
  %v265 = vunpack.c.l.b16 %v233
  %v266 = vpack.c.b16 %v265, %v264
  %v284 = vunpack.c.l.b16 %v234
  %v285 = vunpack.c.h.b16 %v234
  %v286 = vunpack.c.l.b16 %v235
  %v287 = vunpack.c.h.b16 %v235
  %v288 = vunpack.c.l.b16 %v236
  %v289 = vunpack.c.h.b16 %v236
  %v290 = vunpack.c.l.b16 %v237
  %v291 = vunpack.c.h.b16 %v237
  %v292 = vunpack.c.l.b16 %v238
  %v293 = vunpack.c.h.b16 %v238
  %v294 = vunpack.c.l.b16 %v239
  %v295 = vunpack.c.h.b16 %v239
  %v296 = vunpack.c.l.b16 %v240
  %v297 = vunpack.c.h.b16 %v240
  %v298 = vunpack.c.l.b16 %v241
  %v299 = vunpack.c.h.b16 %v241
  %v300 = vunpack.c.l.b16 %v242
  %v301 = vunpack.c.h.b16 %v242
  %v302 = vunpack.c.l.b16 %v243
  %v303 = vunpack.c.h.b16 %v243
  %v304 = vunpack.c.l.b16 %v244
  %v305 = vunpack.c.h.b16 %v244
  %v306 = vunpack.c.l.b16 %v245
  %v307 = vunpack.c.h.b16 %v245
  %v308 = vunpack.c.l.b16 %v246
  %v309 = vunpack.c.h.b16 %v246
  %v310 = vunpack.c.l.b16 %v247
  %v311 = vunpack.c.h.b16 %v247
  %v312 = vunpack.c.l.b16 %v248
  %v313 = vunpack.c.h.b16 %v248
  %v314 = vunpack.c.l.b16 %v249
  %v315 = vunpack.c.h.b16 %v249
  %v316 = vpack.c.b16 %v286, %v284
  %v317 = vpack.c.b16 %v287, %v285
  %v318 = vpack.c.b16 %v290, %v288
  %v319 = vpack.c.b16 %v291, %v289
  %v320 = vpack.c.b16 %v294, %v292
  %v321 = vpack.c.b16 %v295, %v293
  %v322 = vpack.c.b16 %v298, %v296
  %v323 = vpack.c.b16 %v299, %v297
  %v324 = vpack.c.b16 %v302, %v300
  %v325 = vpack.c.b16 %v303, %v301
  %v326 = vpack.c.b16 %v306, %v304
  %v327 = vpack.c.b16 %v307, %v305
  %v328 = vpack.c.b16 %v310, %v308
  %v329 = vpack.c.b16 %v311, %v309
  %v330 = vpack.c.b16 %v314, %v312
  %v331 = vpack.c.b16 %v315, %v313
  %348 = vmatprep.subr.bf16.mxu0 %v331
  %349 = vmatpush1.bf16.msra.mxu0 %v330
  %350 = vmatprep.subr.bf16.mxu0 %v329
  %351 = vmatpush1.bf16.msra.mxu0 %v328
  %352 = vmatprep.subr.bf16.mxu0 %v327
  %353 = vmatpush1.bf16.msra.mxu0 %v326
  %354 = vmatprep.subr.bf16.mxu0 %v325
  %355 = vmatpush1.bf16.msra.mxu0 %v324
  %356 = vmatprep.subr.bf16.mxu0 %v323
  %357 = vmatpush1.bf16.msra.mxu0 %v322
  %358 = vmatprep.subr.bf16.mxu0 %v321
  %359 = vmatpush1.bf16.msra.mxu0 %v320
  %360 = vmatprep.subr.bf16.mxu0 %v319
  %361 = vmatpush1.bf16.msra.mxu0 %v318
  %362 = vmatprep.subr.bf16.mxu0 %v317
  %363 = vmatpush1.bf16.msra.mxu0 %v316
  %364 = vmatprep.subr.bf16.mxu0 0
  %365 = vmatpush2.bf16.msra.mxu0 0
  %366 = vmatprep.subr.bf16.mxu0 0
  %367 = vmatpush2.bf16.msra.mxu0 0
  %368 = vmatprep.subr.bf16.mxu0 0
  %369 = vmatpush2.bf16.msra.mxu0 0
  %370 = vmatprep.subr.bf16.mxu0 0
  %371 = vmatpush2.bf16.msra.mxu0 0
  %372 = vmatprep.subr.bf16.mxu0 0
  %373 = vmatpush2.bf16.msra.mxu0 0
  %374 = vmatprep.subr.bf16.mxu0 0
  %375 = vmatpush2.bf16.msra.mxu0 0
  %376 = vmatprep.subr.bf16.mxu0 0
  %377 = vmatpush2.bf16.msra.mxu0 0
  %378 = vmatprep.subr.bf16.mxu0 0
  %379 = vmatpush2.bf16.msra.mxu0 0
  %380 = vmatprep.mubr.bf16.mxu0 0
  %381 = vmatmul.mubr.bf16.gmra.mxu0 %v266
  %v382 = vpop.f32.mrf.mxu0
  %v383 = vadd.f32 %v255, %v382
  %v384 = vpop.f32.mrf.mxu0
  %v385 = vadd.f32 %v259, %v384
  %v386 = vpop.f32.mrf.mxu0
  %v387 = vadd.f32 %v255, %v386
  %v388 = vpop.f32.mrf.mxu0
  %v389 = vadd.f32 %v259, %v388
  %390 = vdwg.mxu0
  %vm391 = vcmp.ge.f32.partialorder %v383, 0.0
  %vm392 = vcmp.ge.f32.partialorder %v385, 0.0
  %vm393 = vcmp.ge.f32.partialorder %v387, 0.0
  %vm394 = vcmp.ge.f32.partialorder %v389, 0.0
  %s395 = sld [smem:[#allocation3]]
  %v396 = vstv %s395
  %v397 = vmul.f32 %v396, %v383
  %v398 = vmul.f32 %v396, %v385
  %v399 = vmul.f32 %v396, %v387
  %v400 = vmul.f32 %v396, %v389
  %v401 = vsel %vm391, %v383, %v397
  %v402 = vsel %vm392, %v385, %v398
  %v403 = vsel %vm393, %v387, %v399
  %v404 = vsel %vm394, %v389, %v400
  %v405 = vld [vmem:[%s11] sm:$0xff]
  %v406 = vld [vmem:[%s11 + $0x8] sm:$0xff]
  %v407 = vld [vmem:[%s8] sm:$0xf]
  %v408 = vld [vmem:[%s8 + $0x4] sm:$0xf]
  %v409 = vld [vmem:[%s8 + $0x8] sm:$0xf]
  %v410 = vld [vmem:[%s8 + $0xc] sm:$0xf]
  %v411 = vld [vmem:[%s8 + $0x10] sm:$0xf]
  %v412 = vld [vmem:[%s8 + $0x14] sm:$0xf]
  %v413 = vld [vmem:[%s8 + $0x18] sm:$0xf]
  %v414 = vld [vmem:[%s8 + $0x1c] sm:$0xf]
  %v415 = vld [vmem:[%s8 + $0x20] sm:$0xf]
  %v416 = vld [vmem:[%s8 + $0x24] sm:$0xf]
  %v417 = vld [vmem:[%s8 + $0x28] sm:$0xf]
  %v418 = vld [vmem:[%s8 + $0x2c] sm:$0xf]
  %v419 = vld [vmem:[%s8 + $0x30] sm:$0xf]
  %v420 = vld [vmem:[%s8 + $0x34] sm:$0xf]
  %v421 = vld [vmem:[%s8 + $0x38] sm:$0xf]
  %v422 = vld [vmem:[%s8 + $0x3c] sm:$0xf]
  %v423 = vld [vmem:[%s8 + $0x40] sm:$0xf]
  %v424 = vld [vmem:[%s8 + $0x44] sm:$0xf]
  %v425 = vld [vmem:[%s8 + $0x48] sm:$0xf]
  %v426 = vld [vmem:[%s8 + $0x4c] sm:$0xf]
  %v427 = vld [vmem:[%s8 + $0x50] sm:$0xf]
  %v428 = vld [vmem:[%s8 + $0x54] sm:$0xf]
  %v429 = vld [vmem:[%s8 + $0x58] sm:$0xf]
  %v430 = vld [vmem:[%s8 + $0x5c] sm:$0xf]
  %v431 = vld [vmem:[%s8 + $0x60] sm:$0xf]
  %v432 = vld [vmem:[%s8 + $0x64] sm:$0xf]
  %v433 = vld [vmem:[%s8 + $0x68] sm:$0xf]
  %v434 = vld [vmem:[%s8 + $0x6c] sm:$0xf]
  %v435 = vld [vmem:[%s8 + $0x70] sm:$0xf]
  %v436 = vld [vmem:[%s8 + $0x74] sm:$0xf]
  %v437 = vld [vmem:[%s8 + $0x78] sm:$0xf]
  %v438 = vld [vmem:[%s8 + $0x7c] sm:$0xf]
  %v439 = vpack.c.bf16 %v403, %v401
  %v440 = vpack.c.bf16 %v404, %v402
  %v473 = vunpack.c.l.b16 %v407
  %v474 = vunpack.c.l.b16 %v408
  %v475 = vunpack.c.l.b16 %v409
  %v476 = vunpack.c.l.b16 %v410
  %v477 = vunpack.c.l.b16 %v411
  %v478 = vunpack.c.l.b16 %v412
  %v479 = vunpack.c.l.b16 %v413
  %v480 = vunpack.c.l.b16 %v414
  %v481 = vunpack.c.l.b16 %v415
  %v482 = vunpack.c.l.b16 %v416
  %v483 = vunpack.c.l.b16 %v417
  %v484 = vunpack.c.l.b16 %v418
  %v485 = vunpack.c.l.b16 %v419
  %v486 = vunpack.c.l.b16 %v420
  %v487 = vunpack.c.l.b16 %v421
  %v488 = vunpack.c.l.b16 %v422
  %v489 = vunpack.c.l.b16 %v423
  %v490 = vunpack.c.l.b16 %v424
  %v491 = vunpack.c.l.b16 %v425
  %v492 = vunpack.c.l.b16 %v426
  %v493 = vunpack.c.l.b16 %v427
  %v494 = vunpack.c.l.b16 %v428
  %v495 = vunpack.c.l.b16 %v429
  %v496 = vunpack.c.l.b16 %v430
  %v497 = vunpack.c.l.b16 %v431
  %v498 = vunpack.c.l.b16 %v432
  %v499 = vunpack.c.l.b16 %v433
  %v500 = vunpack.c.l.b16 %v434
  %v501 = vunpack.c.l.b16 %v435
  %v502 = vunpack.c.l.b16 %v436
  %v503 = vunpack.c.l.b16 %v437
  %v504 = vunpack.c.l.b16 %v438
  %v505 = vpack.c.b16 %v474, %v473
  %v506 = vpack.c.b16 %v476, %v475
  %v507 = vpack.c.b16 %v478, %v477
  %v508 = vpack.c.b16 %v480, %v479
  %v509 = vpack.c.b16 %v482, %v481
  %v510 = vpack.c.b16 %v484, %v483
  %v511 = vpack.c.b16 %v486, %v485
  %v512 = vpack.c.b16 %v488, %v487
  %v513 = vpack.c.b16 %v490, %v489
  %v514 = vpack.c.b16 %v492, %v491
  %v515 = vpack.c.b16 %v494, %v493
  %v516 = vpack.c.b16 %v496, %v495
  %v517 = vpack.c.b16 %v498, %v497
  %v518 = vpack.c.b16 %v500, %v499
  %v519 = vpack.c.b16 %v502, %v501
  %v520 = vpack.c.b16 %v504, %v503
  %537 = vmatprep.subr.bf16.mxu0 0
  %538 = vmatpush1.bf16.msra.mxu0 %v512
  %539 = vmatprep.subr.bf16.mxu0 0
  %540 = vmatpush1.bf16.msra.mxu0 %v511
  %541 = vmatprep.subr.bf16.mxu0 0
  %542 = vmatpush1.bf16.msra.mxu0 %v510
  %543 = vmatprep.subr.bf16.mxu0 0
  %544 = vmatpush1.bf16.msra.mxu0 %v509
  %545 = vmatprep.subr.bf16.mxu0 0
  %546 = vmatpush1.bf16.msra.mxu0 %v508
  %547 = vmatprep.subr.bf16.mxu0 0
  %548 = vmatpush1.bf16.msra.mxu0 %v507
  %549 = vmatprep.subr.bf16.mxu0 0
  %550 = vmatpush1.bf16.msra.mxu0 %v506
  %551 = vmatprep.subr.bf16.mxu0 0
  %552 = vmatpush1.bf16.msra.mxu0 %v505
  %553 = vmatprep.subr.bf16.mxu0 0
  %554 = vmatpush2.bf16.msra.mxu0 %v520
  %555 = vmatprep.subr.bf16.mxu0 0
  %556 = vmatpush2.bf16.msra.mxu0 %v519
  %557 = vmatprep.subr.bf16.mxu0 0
  %558 = vmatpush2.bf16.msra.mxu0 %v518
  %559 = vmatprep.subr.bf16.mxu0 0
  %560 = vmatpush2.bf16.msra.mxu0 %v517
  %561 = vmatprep.subr.bf16.mxu0 0
  %562 = vmatpush2.bf16.msra.mxu0 %v516
  %563 = vmatprep.subr.bf16.mxu0 0
  %564 = vmatpush2.bf16.msra.mxu0 %v515
  %565 = vmatprep.subr.bf16.mxu0 0
  %566 = vmatpush2.bf16.msra.mxu0 %v514
  %567 = vmatprep.subr.bf16.mxu0 0
  %568 = vmatpush2.bf16.msra.mxu0 %v513
  %569 = vmatprep.mubr.bf16.mxu0 %v440
  %570 = vmatmul.mubr.bf16.gmra.mxu0 %v439
  %v571 = vpop.f32.mrf.mxu0
  %v572 = vadd.f32 0.0, %v571
  %v573 = vpop.f32.mrf.mxu0
  %v574 = vpop.f32.mrf.mxu0
  %v575 = vadd.f32 0.0, %v574
  %v576 = vpop.f32.mrf.mxu0
  %577 = vdwg.mxu0
  %v578 = vadd.f32 %v405, %v572
  %v579 = vadd.f32 %v406, %v575
  %580 = vst [vmem:[%s11] sm:$0xff] %v578
  %581 = vst [vmem:[%s11 + $0x8] sm:$0xff] %v579
  // Predicated region
  $region50: #{phase_transformer_forward.13} parent=0 // pred_check
    _
  $region51: #{phase_transformer_forward.13} parent=0 // pred_check_branch
    %583 = sbr.rel (0) target = $region53
  $region52: #{phase_transformer_forward.13} parent=0 // pred_region
    _
  $region53: #{phase_transformer_forward.13} parent=0 // pred_fallthru
    _
  // Predicated region
  $region54: #{phase_transformer_forward.13} parent=0 // pred_check
    _
  $region55: #{phase_transformer_forward.13} parent=0 // pred_check_branch
    %585 = sbr.rel (0) target = $region57
  $region56: #{phase_transformer_forward.13} parent=0 // pred_region
    _
  $region57: #{phase_transformer_forward.13} parent=0 // pred_fallthru
    _

// kernel: phase_transformer_forward.17
$region0: #{phase_transformer_forward.17}
  #allocation0 [shape = 'u32[]', space=smem, size = 0x4, offset = 0x4, fixed_abs, tag = 'smem constant byte address 0x4 - core index']
  #allocation1 [shape = 'u32[144,128]{1,0:T(1,128)}', space=vmem, size = 0x12000, scoped, tag = 'internal scratch']
  #allocation2 [shape = 'f32[1]{0:T(128)S(6)}', space=smem, size = 0x200, scoped, tag = 'scoped memory for phase_transformer_forward.17']
  #allocation3 [shape = 'f32[1]{0:T(128)S(6)}', space=smem, size = 0x200, scoped, tag = 'scoped memory for phase_transformer_forward.17']
  %s0 = inlined_call_operand.vmem [shape: f32[16,128], index: 0, kind: input, shape index: {}]
  %s1 = inlined_call_operand.vmem [shape: bf16[128,128], index: 1, kind: input, shape index: {}]
  %s2 = inlined_call_operand.vmem [shape: f32[1,128], index: 2, kind: input, shape index: {}]
  %s3 = inlined_call_operand.vmem [shape: bf16[128,8], index: 3, kind: input, shape index: {}]
  %s4 = inlined_call_operand.vmem [shape: f32[1,8], index: 4, kind: input, shape index: {}]
  %s5 = inlined_call_operand.<no memory space> [shape: f32[1], index: 5, kind: input, shape index: {}]
  %s6 = inlined_call_operand.<no memory space> [shape: f32[1], index: 6, kind: input, shape index: {}]
  %s7 = inlined_call_operand.vmem [shape: f32[16,8], index: 7, kind: output, shape index: {}]
  %s8 = sld [smem:[#allocation0]]
  $region38: #{phase_transformer_forward.17} parent=0
    _
  %s10 = ssub.s32 1, %s8
  %s11 = scalar_select 0, %s10, %s8
  %12 = sst [smem:[#allocation2]] %s5
  %13 = sst [smem:[#allocation3]] %s6
  // Predicated region
  $region2: #{phase_transformer_forward.17} parent=0 // pred_check
    _
  $region3: #{phase_transformer_forward.17} parent=0 // pred_check_branch
    %15 = sbr.rel (0) target = $region5
  $region4: #{phase_transformer_forward.17} parent=0 // pred_region
    _
  $region5: #{phase_transformer_forward.17} parent=0 // pred_fallthru
    _
  // Predicated region
  $region6: #{phase_transformer_forward.17} parent=0 // pred_check
    _
  $region7: #{phase_transformer_forward.17} parent=0 // pred_check_branch
    %17 = sbr.rel (0) target = $region9
  $region8: #{phase_transformer_forward.17} parent=0 // pred_region
    _
  $region9: #{phase_transformer_forward.17} parent=0 // pred_fallthru
    _
  // Predicated region
  $region10: #{phase_transformer_forward.17} parent=0 // pred_check
    _
  $region11: #{phase_transformer_forward.17} parent=0 // pred_check_branch
    %19 = sbr.rel (0) target = $region13
  $region12: #{phase_transformer_forward.17} parent=0 // pred_region
    _
  $region13: #{phase_transformer_forward.17} parent=0 // pred_fallthru
    _
  // Predicated region
  $region14: #{phase_transformer_forward.17} parent=0 // pred_check
    _
  $region15: #{phase_transformer_forward.17} parent=0 // pred_check_branch
    %21 = sbr.rel (0) target = $region17
  $region16: #{phase_transformer_forward.17} parent=0 // pred_region
    _
  $region17: #{phase_transformer_forward.17} parent=0 // pred_fallthru
    _
  // Predicated region
  $region18: #{phase_transformer_forward.17} parent=0 // pred_check
    _
  $region19: #{phase_transformer_forward.17} parent=0 // pred_check_branch
    %23 = sbr.rel (0) target = $region21
  $region20: #{phase_transformer_forward.17} parent=0 // pred_region
    _
  $region21: #{phase_transformer_forward.17} parent=0 // pred_fallthru
    _
  // Predicated region
  $region22: #{phase_transformer_forward.17} parent=0 // pred_check
    _
  $region23: #{phase_transformer_forward.17} parent=0 // pred_check_branch
    %25 = sbr.rel (0) target = $region25
  $region24: #{phase_transformer_forward.17} parent=0 // pred_region
    _
  $region25: #{phase_transformer_forward.17} parent=0 // pred_fallthru
    _
  // Predicated region
  $region26: #{phase_transformer_forward.17} parent=0 // pred_check
    _
  $region27: #{phase_transformer_forward.17} parent=0 // pred_check_branch
    %27 = sbr.rel (0) target = $region29
  $region28: #{phase_transformer_forward.17} parent=0 // pred_region
    _
  $region29: #{phase_transformer_forward.17} parent=0 // pred_fallthru
    _
  %v29 = vld [vmem:[%s0] sm:$0xff]
  %v30 = vld [vmem:[%s0 + $0x8] sm:$0xff]
  %v31 = vld [vmem:[%s1] sm:$0xf]
  %v32 = vld [vmem:[%s1 + $0x4] sm:$0xf]
  %v33 = vld [vmem:[%s1 + $0x8] sm:$0xf]
  %v34 = vld [vmem:[%s1 + $0xc] sm:$0xf]
  %v35 = vld [vmem:[%s1 + $0x10] sm:$0xf]
  %v36 = vld [vmem:[%s1 + $0x14] sm:$0xf]
  %v37 = vld [vmem:[%s1 + $0x18] sm:$0xf]
  %v38 = vld [vmem:[%s1 + $0x1c] sm:$0xf]
  %v39 = vld [vmem:[%s1 + $0x20] sm:$0xf]
  %v40 = vld [vmem:[%s1 + $0x24] sm:$0xf]
  %v41 = vld [vmem:[%s1 + $0x28] sm:$0xf]
  %v42 = vld [vmem:[%s1 + $0x2c] sm:$0xf]
  %v43 = vld [vmem:[%s1 + $0x30] sm:$0xf]
  %v44 = vld [vmem:[%s1 + $0x34] sm:$0xf]
  %v45 = vld [vmem:[%s1 + $0x38] sm:$0xf]
  %v46 = vld [vmem:[%s1 + $0x3c] sm:$0xf]
  %v47 = vpack.c.bf16 %v30, %v29
  %v48 = vld [vmem:[%s2] sm:$0x1]
  %v50 = vlaneseq
  %v51 = vshrl.u32 %v50, 7
  %v52 = vsub.s32 0, %v51
  %v53 = vrot.slane %v48, %v52
  %v71 = vunpack.c.l.b16 %v31
  %v72 = vunpack.c.l.b16 %v32
  %v73 = vunpack.c.l.b16 %v33
  %v74 = vunpack.c.l.b16 %v34
  %v75 = vunpack.c.l.b16 %v35
  %v76 = vunpack.c.l.b16 %v36
  %v77 = vunpack.c.l.b16 %v37
  %v78 = vunpack.c.l.b16 %v38
  %v79 = vunpack.c.l.b16 %v39
  %v80 = vunpack.c.l.b16 %v40
  %v81 = vunpack.c.l.b16 %v41
  %v82 = vunpack.c.l.b16 %v42
  %v83 = vunpack.c.l.b16 %v43
  %v84 = vunpack.c.l.b16 %v44
  %v85 = vunpack.c.l.b16 %v45
  %v86 = vunpack.c.l.b16 %v46
  %v87 = vpack.c.b16 %v72, %v71
  %v88 = vpack.c.b16 %v74, %v73
  %v89 = vpack.c.b16 %v76, %v75
  %v90 = vpack.c.b16 %v78, %v77
  %v91 = vpack.c.b16 %v80, %v79
  %v92 = vpack.c.b16 %v82, %v81
  %v93 = vpack.c.b16 %v84, %v83
  %v94 = vpack.c.b16 %v86, %v85
  %103 = vmatprep.subr.bf16.mxu0 0
  %104 = vmatpush1.bf16.msra.mxu0 %v94
  %105 = vmatprep.subr.bf16.mxu0 0
  %106 = vmatpush1.bf16.msra.mxu0 %v93
  %107 = vmatprep.subr.bf16.mxu0 0
  %108 = vmatpush1.bf16.msra.mxu0 %v92
  %109 = vmatprep.subr.bf16.mxu0 0
  %110 = vmatpush1.bf16.msra.mxu0 %v91
  %111 = vmatprep.subr.bf16.mxu0 0
  %112 = vmatpush1.bf16.msra.mxu0 %v90
  %113 = vmatprep.subr.bf16.mxu0 0
  %114 = vmatpush1.bf16.msra.mxu0 %v89
  %115 = vmatprep.subr.bf16.mxu0 0
  %116 = vmatpush1.bf16.msra.mxu0 %v88
  %117 = vmatprep.subr.bf16.mxu0 0
  %118 = vmatpush1.bf16.msra.mxu0 %v87
  %119 = vmatprep.subr.bf16.mxu0 0
  %120 = vmatpush2.bf16.msra.mxu0 0
  %121 = vmatprep.subr.bf16.mxu0 0
  %122 = vmatpush2.bf16.msra.mxu0 0
  %123 = vmatprep.subr.bf16.mxu0 0
  %124 = vmatpush2.bf16.msra.mxu0 0
  %125 = vmatprep.subr.bf16.mxu0 0
  %126 = vmatpush2.bf16.msra.mxu0 0
  %127 = vmatprep.subr.bf16.mxu0 0
  %128 = vmatpush2.bf16.msra.mxu0 0
  %129 = vmatprep.subr.bf16.mxu0 0
  %130 = vmatpush2.bf16.msra.mxu0 0
  %131 = vmatprep.subr.bf16.mxu0 0
  %132 = vmatpush2.bf16.msra.mxu0 0
  %133 = vmatprep.subr.bf16.mxu0 0
  %134 = vmatpush2.bf16.msra.mxu0 0
  %135 = vmatprep.mubr.bf16.mxu0 0
  %136 = vmatmul.mubr.bf16.gmra.mxu0 %v47
  %v137 = vpop.f32.mrf.mxu0
  %v138 = vadd.f32 %v53, %v137
  %v139 = vpop.f32.mrf.mxu0
  %v140 = vpop.f32.mrf.mxu0
  %v141 = vadd.f32 %v53, %v140
  %v142 = vpop.f32.mrf.mxu0
  %143 = vdwg.mxu0
  %vm144 = vcmp.ge.f32.partialorder %v138, 0.0
  %vm145 = vcmp.ge.f32.partialorder %v141, 0.0
  %s146 = sld [smem:[#allocation2]]
  %v147 = vstv %s146
  %v148 = vmul.f32 %v147, %v138
  %v149 = vmul.f32 %v147, %v141
  %v150 = vsel %vm144, %v138, %v148
  %v151 = vsel %vm145, %v141, %v149
  %v152 = vld [vmem:[%s3] sm:$0xf]
  %v153 = vld [vmem:[%s3 + $0x4] sm:$0xf]
  %v154 = vld [vmem:[%s3 + $0x8] sm:$0xf]
  %v155 = vld [vmem:[%s3 + $0xc] sm:$0xf]
  %v156 = vld [vmem:[%s3 + $0x10] sm:$0xf]
  %v157 = vld [vmem:[%s3 + $0x14] sm:$0xf]
  %v158 = vld [vmem:[%s3 + $0x18] sm:$0xf]
  %v159 = vld [vmem:[%s3 + $0x1c] sm:$0xf]
  %v160 = vld [vmem:[%s3 + $0x20] sm:$0xf]
  %v161 = vld [vmem:[%s3 + $0x24] sm:$0xf]
  %v162 = vld [vmem:[%s3 + $0x28] sm:$0xf]
  %v163 = vld [vmem:[%s3 + $0x2c] sm:$0xf]
  %v164 = vld [vmem:[%s3 + $0x30] sm:$0xf]
  %v165 = vld [vmem:[%s3 + $0x34] sm:$0xf]
  %v166 = vld [vmem:[%s3 + $0x38] sm:$0xf]
  %v167 = vld [vmem:[%s3 + $0x3c] sm:$0xf]
  %v168 = vpack.c.bf16 %v151, %v150
  %v169 = vld [vmem:[%s4] sm:$0x1]
  %v171 = vlaneseq
  %v172 = vshrl.u32 %v171, 7
  %v173 = vsub.s32 0, %v172
  %v174 = vrot.slane %v169, %v173
  %v192 = vunpack.c.l.b16 %v152
  %v193 = vunpack.c.l.b16 %v153
  %v194 = vunpack.c.l.b16 %v154
  %v195 = vunpack.c.l.b16 %v155
  %v196 = vunpack.c.l.b16 %v156
  %v197 = vunpack.c.l.b16 %v157
  %v198 = vunpack.c.l.b16 %v158
  %v199 = vunpack.c.l.b16 %v159
  %v200 = vunpack.c.l.b16 %v160
  %v201 = vunpack.c.l.b16 %v161
  %v202 = vunpack.c.l.b16 %v162
  %v203 = vunpack.c.l.b16 %v163
  %v204 = vunpack.c.l.b16 %v164
  %v205 = vunpack.c.l.b16 %v165
  %v206 = vunpack.c.l.b16 %v166
  %v207 = vunpack.c.l.b16 %v167
  %v208 = vpack.c.b16 %v193, %v192
  %v209 = vpack.c.b16 %v195, %v194
  %v210 = vpack.c.b16 %v197, %v196
  %v211 = vpack.c.b16 %v199, %v198
  %v212 = vpack.c.b16 %v201, %v200
  %v213 = vpack.c.b16 %v203, %v202
  %v214 = vpack.c.b16 %v205, %v204
  %v215 = vpack.c.b16 %v207, %v206
  %224 = vmatprep.subr.bf16.mxu0 0
  %225 = vmatpush1.bf16.msra.mxu0 %v215
  %226 = vmatprep.subr.bf16.mxu0 0
  %227 = vmatpush1.bf16.msra.mxu0 %v214
  %228 = vmatprep.subr.bf16.mxu0 0
  %229 = vmatpush1.bf16.msra.mxu0 %v213
  %230 = vmatprep.subr.bf16.mxu0 0
  %231 = vmatpush1.bf16.msra.mxu0 %v212
  %232 = vmatprep.subr.bf16.mxu0 0
  %233 = vmatpush1.bf16.msra.mxu0 %v211
  %234 = vmatprep.subr.bf16.mxu0 0
  %235 = vmatpush1.bf16.msra.mxu0 %v210
  %236 = vmatprep.subr.bf16.mxu0 0
  %237 = vmatpush1.bf16.msra.mxu0 %v209
  %238 = vmatprep.subr.bf16.mxu0 0
  %239 = vmatpush1.bf16.msra.mxu0 %v208
  %240 = vmatprep.subr.bf16.mxu0 0
  %241 = vmatpush2.bf16.msra.mxu0 0
  %242 = vmatprep.subr.bf16.mxu0 0
  %243 = vmatpush2.bf16.msra.mxu0 0
  %244 = vmatprep.subr.bf16.mxu0 0
  %245 = vmatpush2.bf16.msra.mxu0 0
  %246 = vmatprep.subr.bf16.mxu0 0
  %247 = vmatpush2.bf16.msra.mxu0 0
  %248 = vmatprep.subr.bf16.mxu0 0
  %249 = vmatpush2.bf16.msra.mxu0 0
  %250 = vmatprep.subr.bf16.mxu0 0
  %251 = vmatpush2.bf16.msra.mxu0 0
  %252 = vmatprep.subr.bf16.mxu0 0
  %253 = vmatpush2.bf16.msra.mxu0 0
  %254 = vmatprep.subr.bf16.mxu0 0
  %255 = vmatpush2.bf16.msra.mxu0 0
  %256 = vmatprep.mubr.bf16.mxu0 0
  %257 = vmatmul.mubr.bf16.gmra.mxu0 %v168
  %v258 = vpop.f32.mrf.mxu0
  %v259 = vadd.f32 %v174, %v258
  %v260 = vpop.f32.mrf.mxu0
  %v261 = vpop.f32.mrf.mxu0
  %v262 = vadd.f32 %v174, %v261
  %v263 = vpop.f32.mrf.mxu0
  %264 = vdwg.mxu0
  %vm265 = vcmask 64512
  %266 = vst.msk [vmem:[%s7] sm:$0xff] %vm265, %v259
  %267 = vst.msk [vmem:[%s7 + $0x8] sm:$0xff] %vm265, %v262
  // Predicated region
  $region30: #{phase_transformer_forward.17} parent=0 // pred_check
    _
  $region31: #{phase_transformer_forward.17} parent=0 // pred_check_branch
    %269 = sbr.rel (0) target = $region33
  $region32: #{phase_transformer_forward.17} parent=0 // pred_region
    _
  $region33: #{phase_transformer_forward.17} parent=0 // pred_fallthru
    _
  // Predicated region
  $region34: #{phase_transformer_forward.17} parent=0 // pred_check
    _
  $region35: #{phase_transformer_forward.17} parent=0 // pred_check_branch
    %271 = sbr.rel (0) target = $region37
  $region36: #{phase_transformer_forward.17} parent=0 // pred_region
    _
  $region37: #{phase_transformer_forward.17} parent=0 // pred_fallthru
    _

</llo_original>
